<compile_context>
chip_gen: v7x
topology: tpu7x:2x2x1
jax: 0.10.0
libtpu: 0.0.40
codegen_flags: <defaults>
</compile_context>

<pallas_src>
import functools
import math

import jax
import jax.numpy as jnp
from jax.experimental import pallas as pl
from jax.experimental.pallas import tpu as pltpu

NEG_INF = -1e10  # matches masked_fill value -10000000000.0
LN_EPS = 1e-5    # PyTorch nn.LayerNorm default


# ---------------------------------------------------------------------------
# Pallas kernels
# ---------------------------------------------------------------------------

def _mha_ln_kernel(x_ref, kv_ref, mask_ref,
                   wq_ref, bq_ref, wkv_ref, bkv_ref, wo_ref, bo_ref,
                   g_ref, beta_ref,
                   o_ref, attn_ref=None, *,
                   n_heads, head_dim, inv_scale, return_attn):
    """Fused multi-head-attention block for ONE batch element.

    x_ref   : (1, Lq, H)   query input (also the residual input)
    kv_ref  : (1, Lk, H)   key/value input
    mask_ref: (1, Lq, Lk)  additive mask (0 or NEG_INF)
    out     : LayerNorm(x + MHA(x, kv, kv))        -> (1, Lq, H)
    attn    : softmax(QK^T/sqrt(dh) + mask)        -> (1, nH, Lq, Lk)  [optional]
    """
    x = x_ref[0]                    # [Lq, H]
    kv_in = kv_ref[0]               # [Lk, H]
    mask = mask_ref[0]              # [Lq, Lk]
    H = n_heads * head_dim

    # projections (K and V fused into a single [H, 2H] matmul)
    q = jnp.dot(x, wq_ref[...], preferred_element_type=jnp.float32) + bq_ref[...]       # [Lq, H]
    kvp = jnp.dot(kv_in, wkv_ref[...], preferred_element_type=jnp.float32) + bkv_ref[...]  # [Lk, 2H]

    # per-head attention; output projection accumulated per head:
    #   ctx @ Wo == sum_h ctx_h @ Wo[h*dh:(h+1)*dh, :]
    out = jnp.zeros(x.shape, jnp.float32)
    for h in range(n_heads):
        lo = h * head_dim
        hi = lo + head_dim
        qh = q[:, lo:hi]                     # [Lq, dh]
        kh = kvp[:, lo:hi]                   # [Lk, dh]
        vh = kvp[:, H + lo:H + hi]           # [Lk, dh]

        e = jnp.dot(qh, kh.T, preferred_element_type=jnp.float32) * inv_scale + mask  # [Lq, Lk]
        m = jnp.max(e, axis=-1, keepdims=True)
        p = jnp.exp(e - m)
        a = p * pl.reciprocal(jnp.sum(p, axis=-1, keepdims=True), approx=True)         # [Lq, Lk]

        ctx_h = jnp.dot(a, vh, preferred_element_type=jnp.float32)                     # [Lq, dh]
        out = out + jnp.dot(ctx_h, wo_ref[lo:hi, :], preferred_element_type=jnp.float32)

        if return_attn:
            attn_ref[0, h] = a

    out = out + bo_ref[...]

    # residual + LayerNorm
    y = x + out
    mu = jnp.mean(y, axis=-1, keepdims=True)
    var = jnp.mean((y - mu) ** 2, axis=-1, keepdims=True)
    o_ref[0] = (y - mu) * jax.lax.rsqrt(var + LN_EPS) * g_ref[...] + beta_ref[...]


def _ffn_ln_kernel(x_ref, w1_ref, b1_ref, w2_ref, b2_ref, g_ref, beta_ref, o_ref):
    """Fused position-wise feed-forward block: LayerNorm(x + W2·relu(W1·x + b1) + b2)."""
    x = x_ref[...]                                                                        # [M, H]
    h = jnp.dot(x, w1_ref[...], preferred_element_type=jnp.float32) + b1_ref[...]
    h = jnp.maximum(h, 0.0)                                                               # [M, P]
    y = jnp.dot(h, w2_ref[...], preferred_element_type=jnp.float32) + b2_ref[...]
    y = x + y
    mu = jnp.mean(y, axis=-1, keepdims=True)
    var = jnp.mean((y - mu) ** 2, axis=-1, keepdims=True)
    o_ref[...] = (y - mu) * jax.lax.rsqrt(var + LN_EPS) * g_ref[...] + beta_ref[...]


def _linear_kernel(x_ref, w_ref, b_ref, o_ref):
    o_ref[...] = jnp.dot(x_ref[...], w_ref[...],
                         preferred_element_type=jnp.float32) + b_ref[...]


# ---------------------------------------------------------------------------
# Fused-block wrappers
# ---------------------------------------------------------------------------

def mha_block(x, kv, mask_add, ap, ln_g, ln_b, n_heads, return_attn=False):
    """x: [B, Lq, H]; kv: [B, Lk, H]; mask_add: [B, Lq, Lk] additive mask.

    Returns (LayerNorm(x + MHA(x, kv, kv)), attention-or-None)."""
    B, Lq, H = x.shape
    Lk = kv.shape[1]
    Dh = H // n_heads

    kernel = functools.partial(
        _mha_ln_kernel, n_heads=n_heads, head_dim=Dh,
        inv_scale=1.0 / math.sqrt(Dh), return_attn=return_attn)

    out_shape = [jax.ShapeDtypeStruct((B, Lq, H), jnp.float32)]
    out_specs = [pl.BlockSpec((1, Lq, H), lambda b: (b, 0, 0))]
    if return_attn:
        out_shape.append(jax.ShapeDtypeStruct((B, n_heads, Lq, Lk), jnp.float32))
        out_specs.append(pl.BlockSpec((1, n_heads, Lq, Lk), lambda b: (b, 0, 0, 0)))

    results = pl.pallas_call(
        kernel,
        grid=(B,),
        out_shape=tuple(out_shape),
        in_specs=[
            pl.BlockSpec((1, Lq, H), lambda b: (b, 0, 0)),
            pl.BlockSpec((1, Lk, H), lambda b: (b, 0, 0)),
            pl.BlockSpec((1, Lq, Lk), lambda b: (b, 0, 0)),
            pl.BlockSpec((H, H), lambda b: (0, 0)),          # wq
            pl.BlockSpec((1, H), lambda b: (0, 0)),          # bq
            pl.BlockSpec((H, 2 * H), lambda b: (0, 0)),      # wkv (fused K|V)
            pl.BlockSpec((1, 2 * H), lambda b: (0, 0)),      # bkv
            pl.BlockSpec((H, H), lambda b: (0, 0)),          # wo
            pl.BlockSpec((1, H), lambda b: (0, 0)),          # bo
            pl.BlockSpec((1, H), lambda b: (0, 0)),          # ln gamma
            pl.BlockSpec((1, H), lambda b: (0, 0)),          # ln beta
        ],
        out_specs=tuple(out_specs),
        compiler_params=pltpu.CompilerParams(dimension_semantics=("parallel",)),
    )(x, kv, mask_add,
      ap["wq"], ap["bq"].reshape(1, H),
      ap["wkv"], ap["bkv"].reshape(1, 2 * H),
      ap["wo"], ap["bo"].reshape(1, H),
      ln_g.reshape(1, H), ln_b.reshape(1, H))

    if return_attn:
        return results[0], results[1]
    return results[0], None


def ffn_block(x, w1, b1, w2, b2, ln_g, ln_b):
    """Fused FFN + residual + LayerNorm.  x: [B, L, H] -> [B, L, H]."""
    B, L, H = x.shape
    P = w1.shape[1]
    M = B * L
    out = pl.pallas_call(
        _ffn_ln_kernel,
        grid=(1,),
        out_shape=jax.ShapeDtypeStruct((M, H), jnp.float32),
        in_specs=[
            pl.BlockSpec((M, H), lambda i: (0, 0)),
            pl.BlockSpec((H, P), lambda i: (0, 0)),
            pl.BlockSpec((1, P), lambda i: (0, 0)),
            pl.BlockSpec((P, H), lambda i: (0, 0)),
            pl.BlockSpec((1, H), lambda i: (0, 0)),
            pl.BlockSpec((1, H), lambda i: (0, 0)),
            pl.BlockSpec((1, H), lambda i: (0, 0)),
        ],
        out_specs=pl.BlockSpec((M, H), lambda i: (0, 0)),
    )(x.reshape(M, H), w1, b1.reshape(1, P), w2, b2.reshape(1, H),
      ln_g.reshape(1, H), ln_b.reshape(1, H))
    return out.reshape(B, L, H)


def linear(x, w, b):
    """x: [M, K], w: [K, N], b: [N] -> [M, N]  (used once, for the vocab projection)."""
    M, K = x.shape
    N = w.shape[1]
    return pl.pallas_call(
        _linear_kernel,
        grid=(1,),
        out_shape=jax.ShapeDtypeStruct((M, N), jnp.float32),
        in_specs=[
            pl.BlockSpec((M, K), lambda i: (0, 0)),
            pl.BlockSpec((K, N), lambda i: (0, 0)),
            pl.BlockSpec((1, N), lambda i: (0, 0)),
        ],
        out_specs=pl.BlockSpec((M, N), lambda i: (0, 0)),
    )(x, w, b.reshape(1, N))


# ---------------------------------------------------------------------------
# Model (embedding gather + mask prep in plain JAX; all hot paths fused in Pallas)
# ---------------------------------------------------------------------------

def _additive_mask(mask, B, Lq, Lk):
    """Convert a 0/1 mask broadcastable to [B, 1, Lq, Lk] into an additive [B, Lq, Lk] mask."""
    m = jnp.broadcast_to(mask, (B, 1, Lq, Lk))[:, 0]
    return jnp.where(m == 0, NEG_INF, 0.0).astype(jnp.float32)


def decoder_layer(trg, enc_src, trg_mask_add, src_mask_add, lp, n_heads, need_attn):
    # self-attention block (fused with residual + LayerNorm)
    trg, _ = mha_block(trg, trg, trg_mask_add, lp["self_attn"],
                       lp["ln1_g"], lp["ln1_b"], n_heads, return_attn=False)
    # encoder-attention block (attention weights only materialized when needed)
    trg, attention = mha_block(trg, enc_src, src_mask_add, lp["enc_attn"],
                               lp["ln2_g"], lp["ln2_b"], n_heads, return_attn=need_attn)
    # position-wise feed-forward block (fused with residual + LayerNorm)
    trg = ffn_block(trg, lp["w1"], lp["b1"], lp["w2"], lp["b2"],
                    lp["ln3_g"], lp["ln3_b"])
    return trg, attention


def decoder_forward(params, trg_ids, enc_src, trg_mask, src_mask, n_heads):
    B, L = trg_ids.shape
    Lsrc = enc_src.shape[1]
    H = params["tok_emb"].shape[1]
    scale = math.sqrt(H)

    # embedding lookups are gathers (glue, not a matmul hot path)
    tok = jnp.take(params["tok_emb"], trg_ids, axis=0)                 # [B, L, H]
    pos = jnp.take(params["pos_emb"], jnp.arange(L), axis=0)[None]     # [1, L, H]
    trg = tok * scale + pos                                            # dropout = identity

    # precompute additive masks once (not broadcast over heads)
    trg_mask_add = _additive_mask(trg_mask, B, L, L)       # [B, L, L]
    src_mask_add = _additive_mask(src_mask, B, L, Lsrc)    # [B, L, Lsrc]

    attention = None
    n_layers = len(params["layers"])
    for li, lp in enumerate(params["layers"]):
        trg, attn = decoder_layer(trg, enc_src, trg_mask_add, src_mask_add,
                                  lp, n_heads, need_attn=(li == n_layers - 1))
        if attn is not None:
            attention = attn

    out = linear(trg.reshape(B * L, H), params["w_out"], params["b_out"])
    return out.reshape(B, L, -1), attention


# ---------------------------------------------------------------------------
# Deterministic parameter construction
# ---------------------------------------------------------------------------

def init_params(key, output_dim, hid_dim, n_layers, pf_dim, max_length):
    def nrm(k, shape, s=0.02):
        return (s * jax.random.normal(k, shape)).astype(jnp.float32)

    def zeros(n):
        return jnp.zeros((n,), jnp.float32)

    keys = jax.random.split(key, 4 + n_layers)
    params = {
        "tok_emb": nrm(keys[0], (output_dim, hid_dim)),
        "pos_emb": nrm(keys[1], (max_length, hid_dim)),
        "w_out": nrm(keys[2], (hid_dim, output_dim)),
        "b_out": zeros(output_dim),
        "layers": [],
    }

    def mha_params(k):
        ks = jax.random.split(k, 4)
        wk = nrm(ks[1], (hid_dim, hid_dim))
        wv = nrm(ks[2], (hid_dim, hid_dim))
        return {
            "wq": nrm(ks[0], (hid_dim, hid_dim)), "bq": zeros(hid_dim),
            "wkv": jnp.concatenate([wk, wv], axis=1), "bkv": zeros(2 * hid_dim),
            "wo": nrm(ks[3], (hid_dim, hid_dim)), "bo": zeros(hid_dim),
        }

    for li in range(n_layers):
        ks = jax.random.split(keys[4 + li], 4)
        lp = {
            "self_attn": mha_params(ks[0]),
            "enc_attn": mha_params(ks[1]),
            "w1": nrm(ks[2], (hid_dim, pf_dim)), "b1": zeros(pf_dim),
            "w2": nrm(ks[3], (pf_dim, hid_dim)), "b2": zeros(hid_dim),
            "ln1_g": jnp.ones((hid_dim,), jnp.float32), "ln1_b": zeros(hid_dim),
            "ln2_g": jnp.ones((hid_dim,), jnp.float32), "ln2_b": zeros(hid_dim),
            "ln3_g": jnp.ones((hid_dim,), jnp.float32), "ln3_b": zeros(hid_dim),
        }
        params["layers"].append(lp)
    return params


# ---------------------------------------------------------------------------

if __name__ == "__main__":
    output_dim = 50     # vocab size
    hid_dim = 32
    n_layers = 2
    n_heads = 4
    pf_dim = 64
    max_length = 128
    B, trg_len, src_len = 2, 8, 8

    root = jax.random.PRNGKey(0)
    k_par, k_trg, k_enc = jax.random.split(root, 3)

    params = init_params(k_par, output_dim, hid_dim, n_layers, pf_dim, max_length)

    trg_ids = jax.random.randint(k_trg, (B, trg_len), 0, output_dim, dtype=jnp.int32)
    enc_src = jax.random.normal(k_enc, (B, src_len, hid_dim), dtype=jnp.float32)

    # causal target mask [B, 1, L, L] and all-ones source mask [B, 1, 1, Lsrc]
    trg_mask = jnp.tril(jnp.ones((trg_len, trg_len), jnp.float32))[None, None]
    trg_mask = jnp.broadcast_to(trg_mask, (B, 1, trg_len, trg_len))
    src_mask = jnp.ones((B, 1, 1, src_len), jnp.float32)

    fwd = jax.jit(functools.partial(decoder_forward, n_heads=n_heads))
    output, attention = fwd(params, trg_ids, enc_src, trg_mask, src_mask)
    jax.block_until_ready((output, attention))

    assert output.shape == (B, trg_len, output_dim)
    assert attention.shape == (B, n_heads, trg_len, src_len)
    assert bool(jnp.all(jnp.isfinite(output)))
    assert bool(jnp.all(jnp.isfinite(attention)))
    print("KERNEL_OK")
</pallas_src>

<mosaic_0001>
module attributes {stable_mosaic.version = 11 : i64} {
  func.func @_ffn_ln_kernel(%arg0: i32, %arg1: memref<16x32xf32, #tpu.memory_space<vmem>>, %arg2: memref<32x64xf32, #tpu.memory_space<vmem>>, %arg3: memref<1x64xf32, #tpu.memory_space<vmem>>, %arg4: memref<64x32xf32, #tpu.memory_space<vmem>>, %arg5: memref<1x32xf32, #tpu.memory_space<vmem>>, %arg6: memref<1x32xf32, #tpu.memory_space<vmem>>, %arg7: memref<1x32xf32, #tpu.memory_space<vmem>>, %arg8: memref<16x32xf32, #tpu.memory_space<vmem>>) attributes {dimension_semantics = [#tpu.dimension_semantics<arbitrary>], iteration_bounds = array<i64: 1>, scalar_prefetch = 0 : i64, scratch_operands = 0 : i64, tpu.core_type = #tpu.core_type<tc>, window_params = [{pipeline_mode = #tpu.pipeline_mode<synchronous>, transform_indices = @transform_0, window_bounds = array<i64: 16, 32>}, {pipeline_mode = #tpu.pipeline_mode<synchronous>, transform_indices = @transform_1, window_bounds = array<i64: 32, 64>}, {pipeline_mode = #tpu.pipeline_mode<synchronous>, transform_indices = @transform_2, window_bounds = array<i64: 1, 64>}, {pipeline_mode = #tpu.pipeline_mode<synchronous>, transform_indices = @transform_3, window_bounds = array<i64: 64, 32>}, {pipeline_mode = #tpu.pipeline_mode<synchronous>, transform_indices = @transform_4, window_bounds = array<i64: 1, 32>}, {pipeline_mode = #tpu.pipeline_mode<synchronous>, transform_indices = @transform_5, window_bounds = array<i64: 1, 32>}, {pipeline_mode = #tpu.pipeline_mode<synchronous>, transform_indices = @transform_6, window_bounds = array<i64: 1, 32>}, {pipeline_mode = #tpu.pipeline_mode<synchronous>, transform_indices = @transform_7, window_bounds = array<i64: 16, 32>}]} {
    %c0 = arith.constant 0 : index
    %c0_0 = arith.constant 0 : index
    %0 = vector.load %arg1[%c0, %c0_0] : memref<16x32xf32, #tpu.memory_space<vmem>>, vector<16x32xf32>
    %c0_1 = arith.constant 0 : index
    %c0_2 = arith.constant 0 : index
    %1 = vector.load %arg2[%c0_1, %c0_2] : memref<32x64xf32, #tpu.memory_space<vmem>>, vector<32x64xf32>
    %cst = arith.constant dense<0.000000e+00> : vector<16x64xf32>
    %2 = tpu.matmul %0, %1, %cst {dimension_numbers = #tpu.dot_dimension_numbers<[1], [0], [0], [1], [0, 0, 1, 1], [], []>} : vector<16x32xf32>, vector<32x64xf32>, vector<16x64xf32> -> vector<16x64xf32>
    %c0_3 = arith.constant 0 : index
    %c0_4 = arith.constant 0 : index
    %3 = vector.load %arg3[%c0_3, %c0_4] : memref<1x64xf32, #tpu.memory_space<vmem>>, vector<1x64xf32>
    %4 = vector.broadcast %3 : vector<1x64xf32> to vector<16x64xf32>
    %5 = arith.addf %2, %4 : vector<16x64xf32>
    %cst_5 = arith.constant 0.000000e+00 : f32
    %6 = vector.broadcast %cst_5 : f32 to vector<16x64xf32>
    %7 = arith.maximumf %5, %6 : vector<16x64xf32>
    %c0_6 = arith.constant 0 : index
    %c0_7 = arith.constant 0 : index
    %8 = vector.load %arg4[%c0_6, %c0_7] : memref<64x32xf32, #tpu.memory_space<vmem>>, vector<64x32xf32>
    %cst_8 = arith.constant dense<0.000000e+00> : vector<16x32xf32>
    %9 = tpu.matmul %7, %8, %cst_8 {dimension_numbers = #tpu.dot_dimension_numbers<[1], [0], [0], [1], [0, 0, 1, 1], [], []>} : vector<16x64xf32>, vector<64x32xf32>, vector<16x32xf32> -> vector<16x32xf32>
    %c0_9 = arith.constant 0 : index
    %c0_10 = arith.constant 0 : index
    %10 = vector.load %arg5[%c0_9, %c0_10] : memref<1x32xf32, #tpu.memory_space<vmem>>, vector<1x32xf32>
    %11 = vector.broadcast %10 : vector<1x32xf32> to vector<16x32xf32>
    %12 = arith.addf %9, %11 : vector<16x32xf32>
    %13 = arith.addf %0, %12 : vector<16x32xf32>
    %cst_11 = arith.constant dense<0.000000e+00> : vector<16xf32>
    %14 = vector.multi_reduction <add>, %13, %cst_11 [1] : vector<16x32xf32> to vector<16xf32>
    %15 = vector.shape_cast %14 : vector<16xf32> to vector<16x1xf32>
    %cst_12 = arith.constant 3.200000e+01 : f32
    %16 = vector.broadcast %cst_12 : f32 to vector<16x1xf32>
    %17 = arith.divf %15, %16 : vector<16x1xf32>
    %18 = vector.broadcast %17 : vector<16x1xf32> to vector<16x32xf32>
    %19 = arith.subf %13, %18 : vector<16x32xf32>
    %20 = arith.mulf %19, %19 : vector<16x32xf32>
    %cst_13 = arith.constant dense<0.000000e+00> : vector<16xf32>
    %21 = vector.multi_reduction <add>, %20, %cst_13 [1] : vector<16x32xf32> to vector<16xf32>
    %22 = vector.shape_cast %21 : vector<16xf32> to vector<16x1xf32>
    %cst_14 = arith.constant 3.200000e+01 : f32
    %23 = vector.broadcast %cst_14 : f32 to vector<16x1xf32>
    %24 = arith.divf %22, %23 : vector<16x1xf32>
    %25 = vector.broadcast %17 : vector<16x1xf32> to vector<16x32xf32>
    %26 = arith.subf %13, %25 : vector<16x32xf32>
    %cst_15 = arith.constant 9.99999974E-6 : f32
    %27 = vector.broadcast %cst_15 : f32 to vector<16x1xf32>
    %28 = arith.addf %24, %27 : vector<16x1xf32>
    %29 = math.rsqrt %28 : vector<16x1xf32>
    %30 = vector.broadcast %29 : vector<16x1xf32> to vector<16x32xf32>
    %31 = arith.mulf %26, %30 : vector<16x32xf32>
    %c0_16 = arith.constant 0 : index
    %c0_17 = arith.constant 0 : index
    %32 = vector.load %arg6[%c0_16, %c0_17] : memref<1x32xf32, #tpu.memory_space<vmem>>, vector<1x32xf32>
    %33 = vector.broadcast %32 : vector<1x32xf32> to vector<16x32xf32>
    %34 = arith.mulf %31, %33 : vector<16x32xf32>
    %c0_18 = arith.constant 0 : index
    %c0_19 = arith.constant 0 : index
    %35 = vector.load %arg7[%c0_18, %c0_19] : memref<1x32xf32, #tpu.memory_space<vmem>>, vector<1x32xf32>
    %36 = vector.broadcast %35 : vector<1x32xf32> to vector<16x32xf32>
    %37 = arith.addf %34, %36 : vector<16x32xf32>
    %c0_20 = arith.constant 0 : index
    %c0_21 = arith.constant 0 : index
    %38 = vector.load %arg8[%c0_20, %c0_21] : memref<16x32xf32, #tpu.memory_space<vmem>>, vector<16x32xf32>
    tpu.vector_store %arg8[%c0_20, %c0_21], %37 {strides = array<i32>} : memref<16x32xf32, #tpu.memory_space<vmem>>, vector<16x32xf32>,
    return
  }
  func.func @transform_0(%arg0: i32) -> (i32, i32) {
    %c0_i32 = arith.constant 0 : i32
    %c0_i32_0 = arith.constant 0 : i32
    %c0_i32_1 = arith.constant 0 : i32
    return %c0_i32, %c0_i32_0 : i32, i32
  }
  func.func @transform_1(%arg0: i32) -> (i32, i32) {
    %c0_i32 = arith.constant 0 : i32
    %c0_i32_0 = arith.constant 0 : i32
    %c0_i32_1 = arith.constant 0 : i32
    return %c0_i32, %c0_i32_0 : i32, i32
  }
  func.func @transform_2(%arg0: i32) -> (i32, i32) {
    %c0_i32 = arith.constant 0 : i32
    %c0_i32_0 = arith.constant 0 : i32
    %c0_i32_1 = arith.constant 0 : i32
    return %c0_i32, %c0_i32_0 : i32, i32
  }
  func.func @transform_3(%arg0: i32) -> (i32, i32) {
    %c0_i32 = arith.constant 0 : i32
    %c0_i32_0 = arith.constant 0 : i32
    %c0_i32_1 = arith.constant 0 : i32
    return %c0_i32, %c0_i32_0 : i32, i32
  }
  func.func @transform_4(%arg0: i32) -> (i32, i32) {
    %c0_i32 = arith.constant 0 : i32
    %c0_i32_0 = arith.constant 0 : i32
    %c0_i32_1 = arith.constant 0 : i32
    return %c0_i32, %c0_i32_0 : i32, i32
  }
  func.func @transform_5(%arg0: i32) -> (i32, i32) {
    %c0_i32 = arith.constant 0 : i32
    %c0_i32_0 = arith.constant 0 : i32
    %c0_i32_1 = arith.constant 0 : i32
    return %c0_i32, %c0_i32_0 : i32, i32
  }
  func.func @transform_6(%arg0: i32) -> (i32, i32) {
    %c0_i32 = arith.constant 0 : i32
    %c0_i32_0 = arith.constant 0 : i32
    %c0_i32_1 = arith.constant 0 : i32
    return %c0_i32, %c0_i32_0 : i32, i32
  }
  func.func @transform_7(%arg0: i32) -> (i32, i32) {
    %c0_i32 = arith.constant 0 : i32
    %c0_i32_0 = arith.constant 0 : i32
    %c0_i32_1 = arith.constant 0 : i32
    return %c0_i32, %c0_i32_0 : i32, i32
  }
}

module attributes {stable_mosaic.version = 11 : i64} {
  func.func @_linear_kernel(%arg0: i32, %arg1: memref<16x32xf32, #tpu.memory_space<vmem>>, %arg2: memref<32x50xf32, #tpu.memory_space<vmem>>, %arg3: memref<1x50xf32, #tpu.memory_space<vmem>>, %arg4: memref<16x50xf32, #tpu.memory_space<vmem>>) attributes {dimension_semantics = [#tpu.dimension_semantics<arbitrary>], iteration_bounds = array<i64: 1>, scalar_prefetch = 0 : i64, scratch_operands = 0 : i64, tpu.core_type = #tpu.core_type<tc>, window_params = [{pipeline_mode = #tpu.pipeline_mode<synchronous>, transform_indices = @transform_0, window_bounds = array<i64: 16, 32>}, {pipeline_mode = #tpu.pipeline_mode<synchronous>, transform_indices = @transform_1, window_bounds = array<i64: 32, 50>}, {pipeline_mode = #tpu.pipeline_mode<synchronous>, transform_indices = @transform_2, window_bounds = array<i64: 1, 50>}, {pipeline_mode = #tpu.pipeline_mode<synchronous>, transform_indices = @transform_3, window_bounds = array<i64: 16, 50>}]} {
    %c0 = arith.constant 0 : index
    %c0_0 = arith.constant 0 : index
    %0 = vector.load %arg1[%c0, %c0_0] : memref<16x32xf32, #tpu.memory_space<vmem>>, vector<16x32xf32>
    %c0_1 = arith.constant 0 : index
    %c0_2 = arith.constant 0 : index
    %1 = vector.load %arg2[%c0_1, %c0_2] : memref<32x50xf32, #tpu.memory_space<vmem>>, vector<32x50xf32>
    %cst = arith.constant dense<0.000000e+00> : vector<16x50xf32>
    %2 = tpu.matmul %0, %1, %cst {dimension_numbers = #tpu.dot_dimension_numbers<[1], [0], [0], [1], [0, 0, 1, 1], [], []>} : vector<16x32xf32>, vector<32x50xf32>, vector<16x50xf32> -> vector<16x50xf32>
    %c0_3 = arith.constant 0 : index
    %c0_4 = arith.constant 0 : index
    %3 = vector.load %arg3[%c0_3, %c0_4] : memref<1x50xf32, #tpu.memory_space<vmem>>, vector<1x50xf32>
    %4 = vector.broadcast %3 : vector<1x50xf32> to vector<16x50xf32>
    %5 = arith.addf %2, %4 : vector<16x50xf32>
    %c0_5 = arith.constant 0 : index
    %c0_6 = arith.constant 0 : index
    %6 = vector.load %arg4[%c0_5, %c0_6] : memref<16x50xf32, #tpu.memory_space<vmem>>, vector<16x50xf32>
    tpu.vector_store %arg4[%c0_5, %c0_6], %5 {strides = array<i32>} : memref<16x50xf32, #tpu.memory_space<vmem>>, vector<16x50xf32>,
    return
  }
  func.func @transform_0(%arg0: i32) -> (i32, i32) {
    %c0_i32 = arith.constant 0 : i32
    %c0_i32_0 = arith.constant 0 : i32
    %c0_i32_1 = arith.constant 0 : i32
    return %c0_i32, %c0_i32_0 : i32, i32
  }
  func.func @transform_1(%arg0: i32) -> (i32, i32) {
    %c0_i32 = arith.constant 0 : i32
    %c0_i32_0 = arith.constant 0 : i32
    %c0_i32_1 = arith.constant 0 : i32
    return %c0_i32, %c0_i32_0 : i32, i32
  }
  func.func @transform_2(%arg0: i32) -> (i32, i32) {
    %c0_i32 = arith.constant 0 : i32
    %c0_i32_0 = arith.constant 0 : i32
    %c0_i32_1 = arith.constant 0 : i32
    return %c0_i32, %c0_i32_0 : i32, i32
  }
  func.func @transform_3(%arg0: i32) -> (i32, i32) {
    %c0_i32 = arith.constant 0 : i32
    %c0_i32_0 = arith.constant 0 : i32
    %c0_i32_1 = arith.constant 0 : i32
    return %c0_i32, %c0_i32_0 : i32, i32
  }
}

module attributes {stable_mosaic.version = 11 : i64} {
  func.func @_mha_ln_kernel(%arg0: i32, %arg1: memref<1x8x32xf32, #tpu.memory_space<vmem>>, %arg2: memref<1x8x32xf32, #tpu.memory_space<vmem>>, %arg3: memref<1x8x8xf32, #tpu.memory_space<vmem>>, %arg4: memref<32x32xf32, #tpu.memory_space<vmem>>, %arg5: memref<1x32xf32, #tpu.memory_space<vmem>>, %arg6: memref<32x64xf32, #tpu.memory_space<vmem>>, %arg7: memref<1x64xf32, #tpu.memory_space<vmem>>, %arg8: memref<32x32xf32, #tpu.memory_space<vmem>>, %arg9: memref<1x32xf32, #tpu.memory_space<vmem>>, %arg10: memref<1x32xf32, #tpu.memory_space<vmem>>, %arg11: memref<1x32xf32, #tpu.memory_space<vmem>>, %arg12: memref<1x8x32xf32, #tpu.memory_space<vmem>>) attributes {dimension_semantics = [#tpu.dimension_semantics<parallel>], iteration_bounds = array<i64: 2>, scalar_prefetch = 0 : i64, scratch_operands = 0 : i64, tpu.core_type = #tpu.core_type<tc>, window_params = [{transform_indices = @transform_0, window_bounds = array<i64: 1, 8, 32>}, {transform_indices = @transform_1, window_bounds = array<i64: 1, 8, 32>}, {transform_indices = @transform_2, window_bounds = array<i64: 1, 8, 8>}, {pipeline_mode = #tpu.pipeline_mode<synchronous>, transform_indices = @transform_3, window_bounds = array<i64: 32, 32>}, {pipeline_mode = #tpu.pipeline_mode<synchronous>, transform_indices = @transform_4, window_bounds = array<i64: 1, 32>}, {pipeline_mode = #tpu.pipeline_mode<synchronous>, transform_indices = @transform_5, window_bounds = array<i64: 32, 64>}, {pipeline_mode = #tpu.pipeline_mode<synchronous>, transform_indices = @transform_6, window_bounds = array<i64: 1, 64>}, {pipeline_mode = #tpu.pipeline_mode<synchronous>, transform_indices = @transform_7, window_bounds = array<i64: 32, 32>}, {pipeline_mode = #tpu.pipeline_mode<synchronous>, transform_indices = @transform_8, window_bounds = array<i64: 1, 32>}, {pipeline_mode = #tpu.pipeline_mode<synchronous>, transform_indices = @transform_9, window_bounds = array<i64: 1, 32>}, {pipeline_mode = #tpu.pipeline_mode<synchronous>, transform_indices = @transform_10, window_bounds = array<i64: 1, 32>}, {transform_indices = @transform_11, window_bounds = array<i64: 1, 8, 32>}]} {
    %c0 = arith.constant 0 : index
    %c0_0 = arith.constant 0 : index
    %c0_1 = arith.constant 0 : index
    %0 = vector.load %arg1[%c0, %c0_0, %c0_1] : memref<1x8x32xf32, #tpu.memory_space<vmem>>, vector<1x8x32xf32>
    %1 = vector.shape_cast %0 : vector<1x8x32xf32> to vector<8x32xf32>
    %c0_2 = arith.constant 0 : index
    %c0_3 = arith.constant 0 : index
    %c0_4 = arith.constant 0 : index
    %2 = vector.load %arg2[%c0_2, %c0_3, %c0_4] : memref<1x8x32xf32, #tpu.memory_space<vmem>>, vector<1x8x32xf32>
    %3 = vector.shape_cast %2 : vector<1x8x32xf32> to vector<8x32xf32>
    %c0_5 = arith.constant 0 : index
    %c0_6 = arith.constant 0 : index
    %c0_7 = arith.constant 0 : index
    %4 = vector.load %arg3[%c0_5, %c0_6, %c0_7] : memref<1x8x8xf32, #tpu.memory_space<vmem>>, vector<1x8x8xf32>
    %5 = vector.shape_cast %4 : vector<1x8x8xf32> to vector<8x8xf32>
    %c0_8 = arith.constant 0 : index
    %c0_9 = arith.constant 0 : index
    %6 = vector.load %arg4[%c0_8, %c0_9] : memref<32x32xf32, #tpu.memory_space<vmem>>, vector<32x32xf32>
    %cst = arith.constant dense<0.000000e+00> : vector<8x32xf32>
    %7 = tpu.matmul %1, %6, %cst {dimension_numbers = #tpu.dot_dimension_numbers<[1], [0], [0], [1], [0, 0, 1, 1], [], []>} : vector<8x32xf32>, vector<32x32xf32>, vector<8x32xf32> -> vector<8x32xf32>
    %c0_10 = arith.constant 0 : index
    %c0_11 = arith.constant 0 : index
    %8 = vector.load %arg5[%c0_10, %c0_11] : memref<1x32xf32, #tpu.memory_space<vmem>>, vector<1x32xf32>
    %9 = vector.broadcast %8 : vector<1x32xf32> to vector<8x32xf32>
    %10 = arith.addf %7, %9 : vector<8x32xf32>
    %c0_12 = arith.constant 0 : index
    %c0_13 = arith.constant 0 : index
    %11 = vector.load %arg6[%c0_12, %c0_13] : memref<32x64xf32, #tpu.memory_space<vmem>>, vector<32x64xf32>
    %cst_14 = arith.constant dense<0.000000e+00> : vector<8x64xf32>
    %12 = tpu.matmul %3, %11, %cst_14 {dimension_numbers = #tpu.dot_dimension_numbers<[1], [0], [0], [1], [0, 0, 1, 1], [], []>} : vector<8x32xf32>, vector<32x64xf32>, vector<8x64xf32> -> vector<8x64xf32>
    %c0_15 = arith.constant 0 : index
    %c0_16 = arith.constant 0 : index
    %13 = vector.load %arg7[%c0_15, %c0_16] : memref<1x64xf32, #tpu.memory_space<vmem>>, vector<1x64xf32>
    %14 = vector.broadcast %13 : vector<1x64xf32> to vector<8x64xf32>
    %15 = arith.addf %12, %14 : vector<8x64xf32>
    %cst_17 = arith.constant 0.000000e+00 : f32
    %16 = vector.broadcast %cst_17 : f32 to vector<8x32xf32>
    %17 = vector.extract_strided_slice %10 {offsets = [0, 0], sizes = [8, 8], strides = [1, 1]} : vector<8x32xf32> to vector<8x8xf32>
    %18 = vector.extract_strided_slice %15 {offsets = [0, 0], sizes = [8, 8], strides = [1, 1]} : vector<8x64xf32> to vector<8x8xf32>
    %19 = vector.extract_strided_slice %15 {offsets = [0, 32], sizes = [8, 8], strides = [1, 1]} : vector<8x64xf32> to vector<8x8xf32>
    %20 = tpu.transpose %18, [1, 0] : vector<8x8xf32> -> vector<8x8xf32>
    %cst_18 = arith.constant dense<0.000000e+00> : vector<8x8xf32>
    %21 = tpu.matmul %17, %20, %cst_18 {dimension_numbers = #tpu.dot_dimension_numbers<[1], [0], [0], [1], [0, 0, 1, 1], [], []>} : vector<8x8xf32>, vector<8x8xf32>, vector<8x8xf32> -> vector<8x8xf32>
    %cst_19 = arith.constant 0.353553385 : f32
    %22 = vector.broadcast %cst_19 : f32 to vector<8x8xf32>
    %23 = arith.mulf %21, %22 : vector<8x8xf32>
    %24 = arith.addf %23, %5 : vector<8x8xf32>
    %cst_20 = arith.constant dense<0xFF800000> : vector<8xf32>
    %25 = vector.multi_reduction <maximumf>, %24, %cst_20 [1] : vector<8x8xf32> to vector<8xf32>
    %26 = vector.shape_cast %25 : vector<8xf32> to vector<8x1xf32>
    %27 = vector.broadcast %26 : vector<8x1xf32> to vector<8x8xf32>
    %28 = arith.subf %24, %27 : vector<8x8xf32>
    %29 = math.exp %28 : vector<8x8xf32>
    %cst_21 = arith.constant dense<0.000000e+00> : vector<8xf32>
    %30 = vector.multi_reduction <add>, %29, %cst_21 [1] : vector<8x8xf32> to vector<8xf32>
    %31 = vector.shape_cast %30 : vector<8xf32> to vector<8x1xf32>
    %32 = tpu.reciprocal %31 {approx = true} : vector<8x1xf32> -> vector<8x1xf32>
    %33 = vector.broadcast %32 : vector<8x1xf32> to vector<8x8xf32>
    %34 = arith.mulf %29, %33 : vector<8x8xf32>
    %cst_22 = arith.constant dense<0.000000e+00> : vector<8x8xf32>
    %35 = tpu.matmul %34, %19, %cst_22 {dimension_numbers = #tpu.dot_dimension_numbers<[1], [0], [0], [1], [0, 0, 1, 1], [], []>} : vector<8x8xf32>, vector<8x8xf32>, vector<8x8xf32> -> vector<8x8xf32>
    %c0_23 = arith.constant 0 : index
    %c0_24 = arith.constant 0 : index
    %36 = vector.load %arg8[%c0_23, %c0_24] : memref<32x32xf32, #tpu.memory_space<vmem>>, vector<8x32xf32>
    %cst_25 = arith.constant dense<0.000000e+00> : vector<8x32xf32>
    %37 = tpu.matmul %35, %36, %cst_25 {dimension_numbers = #tpu.dot_dimension_numbers<[1], [0], [0], [1], [0, 0, 1, 1], [], []>} : vector<8x8xf32>, vector<8x32xf32>, vector<8x32xf32> -> vector<8x32xf32>
    %38 = arith.addf %16, %37 : vector<8x32xf32>
    %39 = vector.extract_strided_slice %10 {offsets = [0, 8], sizes = [8, 8], strides = [1, 1]} : vector<8x32xf32> to vector<8x8xf32>
    %40 = vector.extract_strided_slice %15 {offsets = [0, 8], sizes = [8, 8], strides = [1, 1]} : vector<8x64xf32> to vector<8x8xf32>
    %41 = vector.extract_strided_slice %15 {offsets = [0, 40], sizes = [8, 8], strides = [1, 1]} : vector<8x64xf32> to vector<8x8xf32>
    %42 = tpu.transpose %40, [1, 0] : vector<8x8xf32> -> vector<8x8xf32>
    %cst_26 = arith.constant dense<0.000000e+00> : vector<8x8xf32>
    %43 = tpu.matmul %39, %42, %cst_26 {dimension_numbers = #tpu.dot_dimension_numbers<[1], [0], [0], [1], [0, 0, 1, 1], [], []>} : vector<8x8xf32>, vector<8x8xf32>, vector<8x8xf32> -> vector<8x8xf32>
    %cst_27 = arith.constant 0.353553385 : f32
    %44 = vector.broadcast %cst_27 : f32 to vector<8x8xf32>
    %45 = arith.mulf %43, %44 : vector<8x8xf32>
    %46 = arith.addf %45, %5 : vector<8x8xf32>
    %cst_28 = arith.constant dense<0xFF800000> : vector<8xf32>
    %47 = vector.multi_reduction <maximumf>, %46, %cst_28 [1] : vector<8x8xf32> to vector<8xf32>
    %48 = vector.shape_cast %47 : vector<8xf32> to vector<8x1xf32>
    %49 = vector.broadcast %48 : vector<8x1xf32> to vector<8x8xf32>
    %50 = arith.subf %46, %49 : vector<8x8xf32>
    %51 = math.exp %50 : vector<8x8xf32>
    %cst_29 = arith.constant dense<0.000000e+00> : vector<8xf32>
    %52 = vector.multi_reduction <add>, %51, %cst_29 [1] : vector<8x8xf32> to vector<8xf32>
    %53 = vector.shape_cast %52 : vector<8xf32> to vector<8x1xf32>
    %54 = tpu.reciprocal %53 {approx = true} : vector<8x1xf32> -> vector<8x1xf32>
    %55 = vector.broadcast %54 : vector<8x1xf32> to vector<8x8xf32>
    %56 = arith.mulf %51, %55 : vector<8x8xf32>
    %cst_30 = arith.constant dense<0.000000e+00> : vector<8x8xf32>
    %57 = tpu.matmul %56, %41, %cst_30 {dimension_numbers = #tpu.dot_dimension_numbers<[1], [0], [0], [1], [0, 0, 1, 1], [], []>} : vector<8x8xf32>, vector<8x8xf32>, vector<8x8xf32> -> vector<8x8xf32>
    %c8 = arith.constant 8 : index
    %c0_31 = arith.constant 0 : index
    %58 = vector.load %arg8[%c8, %c0_31] : memref<32x32xf32, #tpu.memory_space<vmem>>, vector<8x32xf32>
    %cst_32 = arith.constant dense<0.000000e+00> : vector<8x32xf32>
    %59 = tpu.matmul %57, %58, %cst_32 {dimension_numbers = #tpu.dot_dimension_numbers<[1], [0], [0], [1], [0, 0, 1, 1], [], []>} : vector<8x8xf32>, vector<8x32xf32>, vector<8x32xf32> -> vector<8x32xf32>
    %60 = arith.addf %38, %59 : vector<8x32xf32>
    %61 = vector.extract_strided_slice %10 {offsets = [0, 16], sizes = [8, 8], strides = [1, 1]} : vector<8x32xf32> to vector<8x8xf32>
    %62 = vector.extract_strided_slice %15 {offsets = [0, 16], sizes = [8, 8], strides = [1, 1]} : vector<8x64xf32> to vector<8x8xf32>
    %63 = vector.extract_strided_slice %15 {offsets = [0, 48], sizes = [8, 8], strides = [1, 1]} : vector<8x64xf32> to vector<8x8xf32>
    %64 = tpu.transpose %62, [1, 0] : vector<8x8xf32> -> vector<8x8xf32>
    %cst_33 = arith.constant dense<0.000000e+00> : vector<8x8xf32>
    %65 = tpu.matmul %61, %64, %cst_33 {dimension_numbers = #tpu.dot_dimension_numbers<[1], [0], [0], [1], [0, 0, 1, 1], [], []>} : vector<8x8xf32>, vector<8x8xf32>, vector<8x8xf32> -> vector<8x8xf32>
    %cst_34 = arith.constant 0.353553385 : f32
    %66 = vector.broadcast %cst_34 : f32 to vector<8x8xf32>
    %67 = arith.mulf %65, %66 : vector<8x8xf32>
    %68 = arith.addf %67, %5 : vector<8x8xf32>
    %cst_35 = arith.constant dense<0xFF800000> : vector<8xf32>
    %69 = vector.multi_reduction <maximumf>, %68, %cst_35 [1] : vector<8x8xf32> to vector<8xf32>
    %70 = vector.shape_cast %69 : vector<8xf32> to vector<8x1xf32>
    %71 = vector.broadcast %70 : vector<8x1xf32> to vector<8x8xf32>
    %72 = arith.subf %68, %71 : vector<8x8xf32>
    %73 = math.exp %72 : vector<8x8xf32>
    %cst_36 = arith.constant dense<0.000000e+00> : vector<8xf32>
    %74 = vector.multi_reduction <add>, %73, %cst_36 [1] : vector<8x8xf32> to vector<8xf32>
    %75 = vector.shape_cast %74 : vector<8xf32> to vector<8x1xf32>
    %76 = tpu.reciprocal %75 {approx = true} : vector<8x1xf32> -> vector<8x1xf32>
    %77 = vector.broadcast %76 : vector<8x1xf32> to vector<8x8xf32>
    %78 = arith.mulf %73, %77 : vector<8x8xf32>
    %cst_37 = arith.constant dense<0.000000e+00> : vector<8x8xf32>
    %79 = tpu.matmul %78, %63, %cst_37 {dimension_numbers = #tpu.dot_dimension_numbers<[1], [0], [0], [1], [0, 0, 1, 1], [], []>} : vector<8x8xf32>, vector<8x8xf32>, vector<8x8xf32> -> vector<8x8xf32>
    %c16 = arith.constant 16 : index
    %c0_38 = arith.constant 0 : index
    %80 = vector.load %arg8[%c16, %c0_38] : memref<32x32xf32, #tpu.memory_space<vmem>>, vector<8x32xf32>
    %cst_39 = arith.constant dense<0.000000e+00> : vector<8x32xf32>
    %81 = tpu.matmul %79, %80, %cst_39 {dimension_numbers = #tpu.dot_dimension_numbers<[1], [0], [0], [1], [0, 0, 1, 1], [], []>} : vector<8x8xf32>, vector<8x32xf32>, vector<8x32xf32> -> vector<8x32xf32>
    %82 = arith.addf %60, %81 : vector<8x32xf32>
    %83 = vector.extract_strided_slice %10 {offsets = [0, 24], sizes = [8, 8], strides = [1, 1]} : vector<8x32xf32> to vector<8x8xf32>
    %84 = vector.extract_strided_slice %15 {offsets = [0, 24], sizes = [8, 8], strides = [1, 1]} : vector<8x64xf32> to vector<8x8xf32>
    %85 = vector.extract_strided_slice %15 {offsets = [0, 56], sizes = [8, 8], strides = [1, 1]} : vector<8x64xf32> to vector<8x8xf32>
    %86 = tpu.transpose %84, [1, 0] : vector<8x8xf32> -> vector<8x8xf32>
    %cst_40 = arith.constant dense<0.000000e+00> : vector<8x8xf32>
    %87 = tpu.matmul %83, %86, %cst_40 {dimension_numbers = #tpu.dot_dimension_numbers<[1], [0], [0], [1], [0, 0, 1, 1], [], []>} : vector<8x8xf32>, vector<8x8xf32>, vector<8x8xf32> -> vector<8x8xf32>
    %cst_41 = arith.constant 0.353553385 : f32
    %88 = vector.broadcast %cst_41 : f32 to vector<8x8xf32>
    %89 = arith.mulf %87, %88 : vector<8x8xf32>
    %90 = arith.addf %89, %5 : vector<8x8xf32>
    %cst_42 = arith.constant dense<0xFF800000> : vector<8xf32>
    %91 = vector.multi_reduction <maximumf>, %90, %cst_42 [1] : vector<8x8xf32> to vector<8xf32>
    %92 = vector.shape_cast %91 : vector<8xf32> to vector<8x1xf32>
    %93 = vector.broadcast %92 : vector<8x1xf32> to vector<8x8xf32>
    %94 = arith.subf %90, %93 : vector<8x8xf32>
    %95 = math.exp %94 : vector<8x8xf32>
    %cst_43 = arith.constant dense<0.000000e+00> : vector<8xf32>
    %96 = vector.multi_reduction <add>, %95, %cst_43 [1] : vector<8x8xf32> to vector<8xf32>
    %97 = vector.shape_cast %96 : vector<8xf32> to vector<8x1xf32>
    %98 = tpu.reciprocal %97 {approx = true} : vector<8x1xf32> -> vector<8x1xf32>
    %99 = vector.broadcast %98 : vector<8x1xf32> to vector<8x8xf32>
    %100 = arith.mulf %95, %99 : vector<8x8xf32>
    %cst_44 = arith.constant dense<0.000000e+00> : vector<8x8xf32>
    %101 = tpu.matmul %100, %85, %cst_44 {dimension_numbers = #tpu.dot_dimension_numbers<[1], [0], [0], [1], [0, 0, 1, 1], [], []>} : vector<8x8xf32>, vector<8x8xf32>, vector<8x8xf32> -> vector<8x8xf32>
    %c24 = arith.constant 24 : index
    %c0_45 = arith.constant 0 : index
    %102 = vector.load %arg8[%c24, %c0_45] : memref<32x32xf32, #tpu.memory_space<vmem>>, vector<8x32xf32>
    %cst_46 = arith.constant dense<0.000000e+00> : vector<8x32xf32>
    %103 = tpu.matmul %101, %102, %cst_46 {dimension_numbers = #tpu.dot_dimension_numbers<[1], [0], [0], [1], [0, 0, 1, 1], [], []>} : vector<8x8xf32>, vector<8x32xf32>, vector<8x32xf32> -> vector<8x32xf32>
    %104 = arith.addf %82, %103 : vector<8x32xf32>
    %c0_47 = arith.constant 0 : index
    %c0_48 = arith.constant 0 : index
    %105 = vector.load %arg9[%c0_47, %c0_48] : memref<1x32xf32, #tpu.memory_space<vmem>>, vector<1x32xf32>
    %106 = vector.broadcast %105 : vector<1x32xf32> to vector<8x32xf32>
    %107 = arith.addf %104, %106 : vector<8x32xf32>
    %108 = arith.addf %1, %107 : vector<8x32xf32>
    %cst_49 = arith.constant dense<0.000000e+00> : vector<8xf32>
    %109 = vector.multi_reduction <add>, %108, %cst_49 [1] : vector<8x32xf32> to vector<8xf32>
    %110 = vector.shape_cast %109 : vector<8xf32> to vector<8x1xf32>
    %cst_50 = arith.constant 3.200000e+01 : f32
    %111 = vector.broadcast %cst_50 : f32 to vector<8x1xf32>
    %112 = arith.divf %110, %111 : vector<8x1xf32>
    %113 = vector.broadcast %112 : vector<8x1xf32> to vector<8x32xf32>
    %114 = arith.subf %108, %113 : vector<8x32xf32>
    %115 = arith.mulf %114, %114 : vector<8x32xf32>
    %cst_51 = arith.constant dense<0.000000e+00> : vector<8xf32>
    %116 = vector.multi_reduction <add>, %115, %cst_51 [1] : vector<8x32xf32> to vector<8xf32>
    %117 = vector.shape_cast %116 : vector<8xf32> to vector<8x1xf32>
    %cst_52 = arith.constant 3.200000e+01 : f32
    %118 = vector.broadcast %cst_52 : f32 to vector<8x1xf32>
    %119 = arith.divf %117, %118 : vector<8x1xf32>
    %120 = vector.broadcast %112 : vector<8x1xf32> to vector<8x32xf32>
    %121 = arith.subf %108, %120 : vector<8x32xf32>
    %cst_53 = arith.constant 9.99999974E-6 : f32
    %122 = vector.broadcast %cst_53 : f32 to vector<8x1xf32>
    %123 = arith.addf %119, %122 : vector<8x1xf32>
    %124 = math.rsqrt %123 : vector<8x1xf32>
    %125 = vector.broadcast %124 : vector<8x1xf32> to vector<8x32xf32>
    %126 = arith.mulf %121, %125 : vector<8x32xf32>
    %c0_54 = arith.constant 0 : index
    %c0_55 = arith.constant 0 : index
    %127 = vector.load %arg10[%c0_54, %c0_55] : memref<1x32xf32, #tpu.memory_space<vmem>>, vector<1x32xf32>
    %128 = vector.broadcast %127 : vector<1x32xf32> to vector<8x32xf32>
    %129 = arith.mulf %126, %128 : vector<8x32xf32>
    %c0_56 = arith.constant 0 : index
    %c0_57 = arith.constant 0 : index
    %130 = vector.load %arg11[%c0_56, %c0_57] : memref<1x32xf32, #tpu.memory_space<vmem>>, vector<1x32xf32>
    %131 = vector.broadcast %130 : vector<1x32xf32> to vector<8x32xf32>
    %132 = arith.addf %129, %131 : vector<8x32xf32>
    %c0_58 = arith.constant 0 : index
    %c0_59 = arith.constant 0 : index
    %c0_60 = arith.constant 0 : index
    %133 = vector.load %arg12[%c0_58, %c0_59, %c0_60] : memref<1x8x32xf32, #tpu.memory_space<vmem>>, vector<1x8x32xf32>
    %134 = vector.shape_cast %133 : vector<1x8x32xf32> to vector<8x32xf32>
    %135 = vector.shape_cast %132 : vector<8x32xf32> to vector<1x8x32xf32>
    tpu.vector_store %arg12[%c0_58, %c0_59, %c0_60], %135 {strides = array<i32>} : memref<1x8x32xf32, #tpu.memory_space<vmem>>, vector<1x8x32xf32>,
    return
  }
  func.func @transform_0(%arg0: i32) -> (i32, i32, i32) {
    %c0_i32 = arith.constant 0 : i32
    %c0_i32_0 = arith.constant 0 : i32
    %c0_i32_1 = arith.constant 0 : i32
    return %arg0, %c0_i32, %c0_i32_0 : i32, i32, i32
  }
  func.func @transform_1(%arg0: i32) -> (i32, i32, i32) {
    %c0_i32 = arith.constant 0 : i32
    %c0_i32_0 = arith.constant 0 : i32
    %c0_i32_1 = arith.constant 0 : i32
    return %arg0, %c0_i32, %c0_i32_0 : i32, i32, i32
  }
  func.func @transform_2(%arg0: i32) -> (i32, i32, i32) {
    %c0_i32 = arith.constant 0 : i32
    %c0_i32_0 = arith.constant 0 : i32
    %c0_i32_1 = arith.constant 0 : i32
    return %arg0, %c0_i32, %c0_i32_0 : i32, i32, i32
  }
  func.func @transform_3(%arg0: i32) -> (i32, i32) {
    %c0_i32 = arith.constant 0 : i32
    %c0_i32_0 = arith.constant 0 : i32
    %c0_i32_1 = arith.constant 0 : i32
    return %c0_i32, %c0_i32_0 : i32, i32
  }
  func.func @transform_4(%arg0: i32) -> (i32, i32) {
    %c0_i32 = arith.constant 0 : i32
    %c0_i32_0 = arith.constant 0 : i32
    %c0_i32_1 = arith.constant 0 : i32
    return %c0_i32, %c0_i32_0 : i32, i32
  }
  func.func @transform_5(%arg0: i32) -> (i32, i32) {
    %c0_i32 = arith.constant 0 : i32
    %c0_i32_0 = arith.constant 0 : i32
    %c0_i32_1 = arith.constant 0 : i32
    return %c0_i32, %c0_i32_0 : i32, i32
  }
  func.func @transform_6(%arg0: i32) -> (i32, i32) {
    %c0_i32 = arith.constant 0 : i32
    %c0_i32_0 = arith.constant 0 : i32
    %c0_i32_1 = arith.constant 0 : i32
    return %c0_i32, %c0_i32_0 : i32, i32
  }
  func.func @transform_7(%arg0: i32) -> (i32, i32) {
    %c0_i32 = arith.constant 0 : i32
    %c0_i32_0 = arith.constant 0 : i32
    %c0_i32_1 = arith.constant 0 : i32
    return %c0_i32, %c0_i32_0 : i32, i32
  }
  func.func @transform_8(%arg0: i32) -> (i32, i32) {
    %c0_i32 = arith.constant 0 : i32
    %c0_i32_0 = arith.constant 0 : i32
    %c0_i32_1 = arith.constant 0 : i32
    return %c0_i32, %c0_i32_0 : i32, i32
  }
  func.func @transform_9(%arg0: i32) -> (i32, i32) {
    %c0_i32 = arith.constant 0 : i32
    %c0_i32_0 = arith.constant 0 : i32
    %c0_i32_1 = arith.constant 0 : i32
    return %c0_i32, %c0_i32_0 : i32, i32
  }
  func.func @transform_10(%arg0: i32) -> (i32, i32) {
    %c0_i32 = arith.constant 0 : i32
    %c0_i32_0 = arith.constant 0 : i32
    %c0_i32_1 = arith.constant 0 : i32
    return %c0_i32, %c0_i32_0 : i32, i32
  }
  func.func @transform_11(%arg0: i32) -> (i32, i32, i32) {
    %c0_i32 = arith.constant 0 : i32
    %c0_i32_0 = arith.constant 0 : i32
    %c0_i32_1 = arith.constant 0 : i32
    return %arg0, %c0_i32, %c0_i32_0 : i32, i32, i32
  }
}

module attributes {stable_mosaic.version = 11 : i64} {
  func.func @_mha_ln_kernel(%arg0: i32, %arg1: memref<1x8x32xf32, #tpu.memory_space<vmem>>, %arg2: memref<1x8x32xf32, #tpu.memory_space<vmem>>, %arg3: memref<1x8x8xf32, #tpu.memory_space<vmem>>, %arg4: memref<32x32xf32, #tpu.memory_space<vmem>>, %arg5: memref<1x32xf32, #tpu.memory_space<vmem>>, %arg6: memref<32x64xf32, #tpu.memory_space<vmem>>, %arg7: memref<1x64xf32, #tpu.memory_space<vmem>>, %arg8: memref<32x32xf32, #tpu.memory_space<vmem>>, %arg9: memref<1x32xf32, #tpu.memory_space<vmem>>, %arg10: memref<1x32xf32, #tpu.memory_space<vmem>>, %arg11: memref<1x32xf32, #tpu.memory_space<vmem>>, %arg12: memref<1x8x32xf32, #tpu.memory_space<vmem>>, %arg13: memref<1x4x8x8xf32, #tpu.memory_space<vmem>>) attributes {dimension_semantics = [#tpu.dimension_semantics<parallel>], iteration_bounds = array<i64: 2>, scalar_prefetch = 0 : i64, scratch_operands = 0 : i64, tpu.core_type = #tpu.core_type<tc>, window_params = [{transform_indices = @transform_0, window_bounds = array<i64: 1, 8, 32>}, {transform_indices = @transform_1, window_bounds = array<i64: 1, 8, 32>}, {transform_indices = @transform_2, window_bounds = array<i64: 1, 8, 8>}, {pipeline_mode = #tpu.pipeline_mode<synchronous>, transform_indices = @transform_3, window_bounds = array<i64: 32, 32>}, {pipeline_mode = #tpu.pipeline_mode<synchronous>, transform_indices = @transform_4, window_bounds = array<i64: 1, 32>}, {pipeline_mode = #tpu.pipeline_mode<synchronous>, transform_indices = @transform_5, window_bounds = array<i64: 32, 64>}, {pipeline_mode = #tpu.pipeline_mode<synchronous>, transform_indices = @transform_6, window_bounds = array<i64: 1, 64>}, {pipeline_mode = #tpu.pipeline_mode<synchronous>, transform_indices = @transform_7, window_bounds = array<i64: 32, 32>}, {pipeline_mode = #tpu.pipeline_mode<synchronous>, transform_indices = @transform_8, window_bounds = array<i64: 1, 32>}, {pipeline_mode = #tpu.pipeline_mode<synchronous>, transform_indices = @transform_9, window_bounds = array<i64: 1, 32>}, {pipeline_mode = #tpu.pipeline_mode<synchronous>, transform_indices = @transform_10, window_bounds = array<i64: 1, 32>}, {transform_indices = @transform_11, window_bounds = array<i64: 1, 8, 32>}, {transform_indices = @transform_12, window_bounds = array<i64: 1, 4, 8, 8>}]} {
    %c0 = arith.constant 0 : index
    %c0_0 = arith.constant 0 : index
    %c0_1 = arith.constant 0 : index
    %0 = vector.load %arg1[%c0, %c0_0, %c0_1] : memref<1x8x32xf32, #tpu.memory_space<vmem>>, vector<1x8x32xf32>
    %1 = vector.shape_cast %0 : vector<1x8x32xf32> to vector<8x32xf32>
    %c0_2 = arith.constant 0 : index
    %c0_3 = arith.constant 0 : index
    %c0_4 = arith.constant 0 : index
    %2 = vector.load %arg2[%c0_2, %c0_3, %c0_4] : memref<1x8x32xf32, #tpu.memory_space<vmem>>, vector<1x8x32xf32>
    %3 = vector.shape_cast %2 : vector<1x8x32xf32> to vector<8x32xf32>
    %c0_5 = arith.constant 0 : index
    %c0_6 = arith.constant 0 : index
    %c0_7 = arith.constant 0 : index
    %4 = vector.load %arg3[%c0_5, %c0_6, %c0_7] : memref<1x8x8xf32, #tpu.memory_space<vmem>>, vector<1x8x8xf32>
    %5 = vector.shape_cast %4 : vector<1x8x8xf32> to vector<8x8xf32>
    %c0_8 = arith.constant 0 : index
    %c0_9 = arith.constant 0 : index
    %6 = vector.load %arg4[%c0_8, %c0_9] : memref<32x32xf32, #tpu.memory_space<vmem>>, vector<32x32xf32>
    %cst = arith.constant dense<0.000000e+00> : vector<8x32xf32>
    %7 = tpu.matmul %1, %6, %cst {dimension_numbers = #tpu.dot_dimension_numbers<[1], [0], [0], [1], [0, 0, 1, 1], [], []>} : vector<8x32xf32>, vector<32x32xf32>, vector<8x32xf32> -> vector<8x32xf32>
    %c0_10 = arith.constant 0 : index
    %c0_11 = arith.constant 0 : index
    %8 = vector.load %arg5[%c0_10, %c0_11] : memref<1x32xf32, #tpu.memory_space<vmem>>, vector<1x32xf32>
    %9 = vector.broadcast %8 : vector<1x32xf32> to vector<8x32xf32>
    %10 = arith.addf %7, %9 : vector<8x32xf32>
    %c0_12 = arith.constant 0 : index
    %c0_13 = arith.constant 0 : index
    %11 = vector.load %arg6[%c0_12, %c0_13] : memref<32x64xf32, #tpu.memory_space<vmem>>, vector<32x64xf32>
    %cst_14 = arith.constant dense<0.000000e+00> : vector<8x64xf32>
    %12 = tpu.matmul %3, %11, %cst_14 {dimension_numbers = #tpu.dot_dimension_numbers<[1], [0], [0], [1], [0, 0, 1, 1], [], []>} : vector<8x32xf32>, vector<32x64xf32>, vector<8x64xf32> -> vector<8x64xf32>
    %c0_15 = arith.constant 0 : index
    %c0_16 = arith.constant 0 : index
    %13 = vector.load %arg7[%c0_15, %c0_16] : memref<1x64xf32, #tpu.memory_space<vmem>>, vector<1x64xf32>
    %14 = vector.broadcast %13 : vector<1x64xf32> to vector<8x64xf32>
    %15 = arith.addf %12, %14 : vector<8x64xf32>
    %cst_17 = arith.constant 0.000000e+00 : f32
    %16 = vector.broadcast %cst_17 : f32 to vector<8x32xf32>
    %17 = vector.extract_strided_slice %10 {offsets = [0, 0], sizes = [8, 8], strides = [1, 1]} : vector<8x32xf32> to vector<8x8xf32>
    %18 = vector.extract_strided_slice %15 {offsets = [0, 0], sizes = [8, 8], strides = [1, 1]} : vector<8x64xf32> to vector<8x8xf32>
    %19 = vector.extract_strided_slice %15 {offsets = [0, 32], sizes = [8, 8], strides = [1, 1]} : vector<8x64xf32> to vector<8x8xf32>
    %20 = tpu.transpose %18, [1, 0] : vector<8x8xf32> -> vector<8x8xf32>
    %cst_18 = arith.constant dense<0.000000e+00> : vector<8x8xf32>
    %21 = tpu.matmul %17, %20, %cst_18 {dimension_numbers = #tpu.dot_dimension_numbers<[1], [0], [0], [1], [0, 0, 1, 1], [], []>} : vector<8x8xf32>, vector<8x8xf32>, vector<8x8xf32> -> vector<8x8xf32>
    %cst_19 = arith.constant 0.353553385 : f32
    %22 = vector.broadcast %cst_19 : f32 to vector<8x8xf32>
    %23 = arith.mulf %21, %22 : vector<8x8xf32>
    %24 = arith.addf %23, %5 : vector<8x8xf32>
    %cst_20 = arith.constant dense<0xFF800000> : vector<8xf32>
    %25 = vector.multi_reduction <maximumf>, %24, %cst_20 [1] : vector<8x8xf32> to vector<8xf32>
    %26 = vector.shape_cast %25 : vector<8xf32> to vector<8x1xf32>
    %27 = vector.broadcast %26 : vector<8x1xf32> to vector<8x8xf32>
    %28 = arith.subf %24, %27 : vector<8x8xf32>
    %29 = math.exp %28 : vector<8x8xf32>
    %cst_21 = arith.constant dense<0.000000e+00> : vector<8xf32>
    %30 = vector.multi_reduction <add>, %29, %cst_21 [1] : vector<8x8xf32> to vector<8xf32>
    %31 = vector.shape_cast %30 : vector<8xf32> to vector<8x1xf32>
    %32 = tpu.reciprocal %31 {approx = true} : vector<8x1xf32> -> vector<8x1xf32>
    %33 = vector.broadcast %32 : vector<8x1xf32> to vector<8x8xf32>
    %34 = arith.mulf %29, %33 : vector<8x8xf32>
    %cst_22 = arith.constant dense<0.000000e+00> : vector<8x8xf32>
    %35 = tpu.matmul %34, %19, %cst_22 {dimension_numbers = #tpu.dot_dimension_numbers<[1], [0], [0], [1], [0, 0, 1, 1], [], []>} : vector<8x8xf32>, vector<8x8xf32>, vector<8x8xf32> -> vector<8x8xf32>
    %c0_23 = arith.constant 0 : index
    %c0_24 = arith.constant 0 : index
    %36 = vector.load %arg8[%c0_23, %c0_24] : memref<32x32xf32, #tpu.memory_space<vmem>>, vector<8x32xf32>
    %cst_25 = arith.constant dense<0.000000e+00> : vector<8x32xf32>
    %37 = tpu.matmul %35, %36, %cst_25 {dimension_numbers = #tpu.dot_dimension_numbers<[1], [0], [0], [1], [0, 0, 1, 1], [], []>} : vector<8x8xf32>, vector<8x32xf32>, vector<8x32xf32> -> vector<8x32xf32>
    %38 = arith.addf %16, %37 : vector<8x32xf32>
    %c0_26 = arith.constant 0 : index
    %c0_27 = arith.constant 0 : index
    %c0_28 = arith.constant 0 : index
    %c0_29 = arith.constant 0 : index
    %39 = vector.load %arg13[%c0_26, %c0_27, %c0_28, %c0_29] : memref<1x4x8x8xf32, #tpu.memory_space<vmem>>, vector<1x1x8x8xf32>
    %40 = vector.shape_cast %39 : vector<1x1x8x8xf32> to vector<8x8xf32>
    %41 = vector.shape_cast %34 : vector<8x8xf32> to vector<1x1x8x8xf32>
    tpu.vector_store %arg13[%c0_26, %c0_27, %c0_28, %c0_29], %41 {strides = array<i32>} : memref<1x4x8x8xf32, #tpu.memory_space<vmem>>, vector<1x1x8x8xf32>,
    %42 = vector.extract_strided_slice %10 {offsets = [0, 8], sizes = [8, 8], strides = [1, 1]} : vector<8x32xf32> to vector<8x8xf32>
    %43 = vector.extract_strided_slice %15 {offsets = [0, 8], sizes = [8, 8], strides = [1, 1]} : vector<8x64xf32> to vector<8x8xf32>
    %44 = vector.extract_strided_slice %15 {offsets = [0, 40], sizes = [8, 8], strides = [1, 1]} : vector<8x64xf32> to vector<8x8xf32>
    %45 = tpu.transpose %43, [1, 0] : vector<8x8xf32> -> vector<8x8xf32>
    %cst_30 = arith.constant dense<0.000000e+00> : vector<8x8xf32>
    %46 = tpu.matmul %42, %45, %cst_30 {dimension_numbers = #tpu.dot_dimension_numbers<[1], [0], [0], [1], [0, 0, 1, 1], [], []>} : vector<8x8xf32>, vector<8x8xf32>, vector<8x8xf32> -> vector<8x8xf32>
    %cst_31 = arith.constant 0.353553385 : f32
    %47 = vector.broadcast %cst_31 : f32 to vector<8x8xf32>
    %48 = arith.mulf %46, %47 : vector<8x8xf32>
    %49 = arith.addf %48, %5 : vector<8x8xf32>
    %cst_32 = arith.constant dense<0xFF800000> : vector<8xf32>
    %50 = vector.multi_reduction <maximumf>, %49, %cst_32 [1] : vector<8x8xf32> to vector<8xf32>
    %51 = vector.shape_cast %50 : vector<8xf32> to vector<8x1xf32>
    %52 = vector.broadcast %51 : vector<8x1xf32> to vector<8x8xf32>
    %53 = arith.subf %49, %52 : vector<8x8xf32>
    %54 = math.exp %53 : vector<8x8xf32>
    %cst_33 = arith.constant dense<0.000000e+00> : vector<8xf32>
    %55 = vector.multi_reduction <add>, %54, %cst_33 [1] : vector<8x8xf32> to vector<8xf32>
    %56 = vector.shape_cast %55 : vector<8xf32> to vector<8x1xf32>
    %57 = tpu.reciprocal %56 {approx = true} : vector<8x1xf32> -> vector<8x1xf32>
    %58 = vector.broadcast %57 : vector<8x1xf32> to vector<8x8xf32>
    %59 = arith.mulf %54, %58 : vector<8x8xf32>
    %cst_34 = arith.constant dense<0.000000e+00> : vector<8x8xf32>
    %60 = tpu.matmul %59, %44, %cst_34 {dimension_numbers = #tpu.dot_dimension_numbers<[1], [0], [0], [1], [0, 0, 1, 1], [], []>} : vector<8x8xf32>, vector<8x8xf32>, vector<8x8xf32> -> vector<8x8xf32>
    %c8 = arith.constant 8 : index
    %c0_35 = arith.constant 0 : index
    %61 = vector.load %arg8[%c8, %c0_35] : memref<32x32xf32, #tpu.memory_space<vmem>>, vector<8x32xf32>
    %cst_36 = arith.constant dense<0.000000e+00> : vector<8x32xf32>
    %62 = tpu.matmul %60, %61, %cst_36 {dimension_numbers = #tpu.dot_dimension_numbers<[1], [0], [0], [1], [0, 0, 1, 1], [], []>} : vector<8x8xf32>, vector<8x32xf32>, vector<8x32xf32> -> vector<8x32xf32>
    %63 = arith.addf %38, %62 : vector<8x32xf32>
    %c0_37 = arith.constant 0 : index
    %c1 = arith.constant 1 : index
    %c0_38 = arith.constant 0 : index
    %c0_39 = arith.constant 0 : index
    %64 = vector.load %arg13[%c0_37, %c1, %c0_38, %c0_39] : memref<1x4x8x8xf32, #tpu.memory_space<vmem>>, vector<1x1x8x8xf32>
    %65 = vector.shape_cast %64 : vector<1x1x8x8xf32> to vector<8x8xf32>
    %66 = vector.shape_cast %59 : vector<8x8xf32> to vector<1x1x8x8xf32>
    tpu.vector_store %arg13[%c0_37, %c1, %c0_38, %c0_39], %66 {strides = array<i32>} : memref<1x4x8x8xf32, #tpu.memory_space<vmem>>, vector<1x1x8x8xf32>,
    %67 = vector.extract_strided_slice %10 {offsets = [0, 16], sizes = [8, 8], strides = [1, 1]} : vector<8x32xf32> to vector<8x8xf32>
    %68 = vector.extract_strided_slice %15 {offsets = [0, 16], sizes = [8, 8], strides = [1, 1]} : vector<8x64xf32> to vector<8x8xf32>
    %69 = vector.extract_strided_slice %15 {offsets = [0, 48], sizes = [8, 8], strides = [1, 1]} : vector<8x64xf32> to vector<8x8xf32>
    %70 = tpu.transpose %68, [1, 0] : vector<8x8xf32> -> vector<8x8xf32>
    %cst_40 = arith.constant dense<0.000000e+00> : vector<8x8xf32>
    %71 = tpu.matmul %67, %70, %cst_40 {dimension_numbers = #tpu.dot_dimension_numbers<[1], [0], [0], [1], [0, 0, 1, 1], [], []>} : vector<8x8xf32>, vector<8x8xf32>, vector<8x8xf32> -> vector<8x8xf32>
    %cst_41 = arith.constant 0.353553385 : f32
    %72 = vector.broadcast %cst_41 : f32 to vector<8x8xf32>
    %73 = arith.mulf %71, %72 : vector<8x8xf32>
    %74 = arith.addf %73, %5 : vector<8x8xf32>
    %cst_42 = arith.constant dense<0xFF800000> : vector<8xf32>
    %75 = vector.multi_reduction <maximumf>, %74, %cst_42 [1] : vector<8x8xf32> to vector<8xf32>
    %76 = vector.shape_cast %75 : vector<8xf32> to vector<8x1xf32>
    %77 = vector.broadcast %76 : vector<8x1xf32> to vector<8x8xf32>
    %78 = arith.subf %74, %77 : vector<8x8xf32>
    %79 = math.exp %78 : vector<8x8xf32>
    %cst_43 = arith.constant dense<0.000000e+00> : vector<8xf32>
    %80 = vector.multi_reduction <add>, %79, %cst_43 [1] : vector<8x8xf32> to vector<8xf32>
    %81 = vector.shape_cast %80 : vector<8xf32> to vector<8x1xf32>
    %82 = tpu.reciprocal %81 {approx = true} : vector<8x1xf32> -> vector<8x1xf32>
    %83 = vector.broadcast %82 : vector<8x1xf32> to vector<8x8xf32>
    %84 = arith.mulf %79, %83 : vector<8x8xf32>
    %cst_44 = arith.constant dense<0.000000e+00> : vector<8x8xf32>
    %85 = tpu.matmul %84, %69, %cst_44 {dimension_numbers = #tpu.dot_dimension_numbers<[1], [0], [0], [1], [0, 0, 1, 1], [], []>} : vector<8x8xf32>, vector<8x8xf32>, vector<8x8xf32> -> vector<8x8xf32>
    %c16 = arith.constant 16 : index
    %c0_45 = arith.constant 0 : index
    %86 = vector.load %arg8[%c16, %c0_45] : memref<32x32xf32, #tpu.memory_space<vmem>>, vector<8x32xf32>
    %cst_46 = arith.constant dense<0.000000e+00> : vector<8x32xf32>
    %87 = tpu.matmul %85, %86, %cst_46 {dimension_numbers = #tpu.dot_dimension_numbers<[1], [0], [0], [1], [0, 0, 1, 1], [], []>} : vector<8x8xf32>, vector<8x32xf32>, vector<8x32xf32> -> vector<8x32xf32>
    %88 = arith.addf %63, %87 : vector<8x32xf32>
    %c0_47 = arith.constant 0 : index
    %c2 = arith.constant 2 : index
    %c0_48 = arith.constant 0 : index
    %c0_49 = arith.constant 0 : index
    %89 = vector.load %arg13[%c0_47, %c2, %c0_48, %c0_49] : memref<1x4x8x8xf32, #tpu.memory_space<vmem>>, vector<1x1x8x8xf32>
    %90 = vector.shape_cast %89 : vector<1x1x8x8xf32> to vector<8x8xf32>
    %91 = vector.shape_cast %84 : vector<8x8xf32> to vector<1x1x8x8xf32>
    tpu.vector_store %arg13[%c0_47, %c2, %c0_48, %c0_49], %91 {strides = array<i32>} : memref<1x4x8x8xf32, #tpu.memory_space<vmem>>, vector<1x1x8x8xf32>,
    %92 = vector.extract_strided_slice %10 {offsets = [0, 24], sizes = [8, 8], strides = [1, 1]} : vector<8x32xf32> to vector<8x8xf32>
    %93 = vector.extract_strided_slice %15 {offsets = [0, 24], sizes = [8, 8], strides = [1, 1]} : vector<8x64xf32> to vector<8x8xf32>
    %94 = vector.extract_strided_slice %15 {offsets = [0, 56], sizes = [8, 8], strides = [1, 1]} : vector<8x64xf32> to vector<8x8xf32>
    %95 = tpu.transpose %93, [1, 0] : vector<8x8xf32> -> vector<8x8xf32>
    %cst_50 = arith.constant dense<0.000000e+00> : vector<8x8xf32>
    %96 = tpu.matmul %92, %95, %cst_50 {dimension_numbers = #tpu.dot_dimension_numbers<[1], [0], [0], [1], [0, 0, 1, 1], [], []>} : vector<8x8xf32>, vector<8x8xf32>, vector<8x8xf32> -> vector<8x8xf32>
    %cst_51 = arith.constant 0.353553385 : f32
    %97 = vector.broadcast %cst_51 : f32 to vector<8x8xf32>
    %98 = arith.mulf %96, %97 : vector<8x8xf32>
    %99 = arith.addf %98, %5 : vector<8x8xf32>
    %cst_52 = arith.constant dense<0xFF800000> : vector<8xf32>
    %100 = vector.multi_reduction <maximumf>, %99, %cst_52 [1] : vector<8x8xf32> to vector<8xf32>
    %101 = vector.shape_cast %100 : vector<8xf32> to vector<8x1xf32>
    %102 = vector.broadcast %101 : vector<8x1xf32> to vector<8x8xf32>
    %103 = arith.subf %99, %102 : vector<8x8xf32>
    %104 = math.exp %103 : vector<8x8xf32>
    %cst_53 = arith.constant dense<0.000000e+00> : vector<8xf32>
    %105 = vector.multi_reduction <add>, %104, %cst_53 [1] : vector<8x8xf32> to vector<8xf32>
    %106 = vector.shape_cast %105 : vector<8xf32> to vector<8x1xf32>
    %107 = tpu.reciprocal %106 {approx = true} : vector<8x1xf32> -> vector<8x1xf32>
    %108 = vector.broadcast %107 : vector<8x1xf32> to vector<8x8xf32>
    %109 = arith.mulf %104, %108 : vector<8x8xf32>
    %cst_54 = arith.constant dense<0.000000e+00> : vector<8x8xf32>
    %110 = tpu.matmul %109, %94, %cst_54 {dimension_numbers = #tpu.dot_dimension_numbers<[1], [0], [0], [1], [0, 0, 1, 1], [], []>} : vector<8x8xf32>, vector<8x8xf32>, vector<8x8xf32> -> vector<8x8xf32>
    %c24 = arith.constant 24 : index
    %c0_55 = arith.constant 0 : index
    %111 = vector.load %arg8[%c24, %c0_55] : memref<32x32xf32, #tpu.memory_space<vmem>>, vector<8x32xf32>
    %cst_56 = arith.constant dense<0.000000e+00> : vector<8x32xf32>
    %112 = tpu.matmul %110, %111, %cst_56 {dimension_numbers = #tpu.dot_dimension_numbers<[1], [0], [0], [1], [0, 0, 1, 1], [], []>} : vector<8x8xf32>, vector<8x32xf32>, vector<8x32xf32> -> vector<8x32xf32>
    %113 = arith.addf %88, %112 : vector<8x32xf32>
    %c0_57 = arith.constant 0 : index
    %c3 = arith.constant 3 : index
    %c0_58 = arith.constant 0 : index
    %c0_59 = arith.constant 0 : index
    %114 = vector.load %arg13[%c0_57, %c3, %c0_58, %c0_59] : memref<1x4x8x8xf32, #tpu.memory_space<vmem>>, vector<1x1x8x8xf32>
    %115 = vector.shape_cast %114 : vector<1x1x8x8xf32> to vector<8x8xf32>
    %116 = vector.shape_cast %109 : vector<8x8xf32> to vector<1x1x8x8xf32>
    tpu.vector_store %arg13[%c0_57, %c3, %c0_58, %c0_59], %116 {strides = array<i32>} : memref<1x4x8x8xf32, #tpu.memory_space<vmem>>, vector<1x1x8x8xf32>,
    %c0_60 = arith.constant 0 : index
    %c0_61 = arith.constant 0 : index
    %117 = vector.load %arg9[%c0_60, %c0_61] : memref<1x32xf32, #tpu.memory_space<vmem>>, vector<1x32xf32>
    %118 = vector.broadcast %117 : vector<1x32xf32> to vector<8x32xf32>
    %119 = arith.addf %113, %118 : vector<8x32xf32>
    %120 = arith.addf %1, %119 : vector<8x32xf32>
    %cst_62 = arith.constant dense<0.000000e+00> : vector<8xf32>
    %121 = vector.multi_reduction <add>, %120, %cst_62 [1] : vector<8x32xf32> to vector<8xf32>
    %122 = vector.shape_cast %121 : vector<8xf32> to vector<8x1xf32>
    %cst_63 = arith.constant 3.200000e+01 : f32
    %123 = vector.broadcast %cst_63 : f32 to vector<8x1xf32>
    %124 = arith.divf %122, %123 : vector<8x1xf32>
    %125 = vector.broadcast %124 : vector<8x1xf32> to vector<8x32xf32>
    %126 = arith.subf %120, %125 : vector<8x32xf32>
    %127 = arith.mulf %126, %126 : vector<8x32xf32>
    %cst_64 = arith.constant dense<0.000000e+00> : vector<8xf32>
    %128 = vector.multi_reduction <add>, %127, %cst_64 [1] : vector<8x32xf32> to vector<8xf32>
    %129 = vector.shape_cast %128 : vector<8xf32> to vector<8x1xf32>
    %cst_65 = arith.constant 3.200000e+01 : f32
    %130 = vector.broadcast %cst_65 : f32 to vector<8x1xf32>
    %131 = arith.divf %129, %130 : vector<8x1xf32>
    %132 = vector.broadcast %124 : vector<8x1xf32> to vector<8x32xf32>
    %133 = arith.subf %120, %132 : vector<8x32xf32>
    %cst_66 = arith.constant 9.99999974E-6 : f32
    %134 = vector.broadcast %cst_66 : f32 to vector<8x1xf32>
    %135 = arith.addf %131, %134 : vector<8x1xf32>
    %136 = math.rsqrt %135 : vector<8x1xf32>
    %137 = vector.broadcast %136 : vector<8x1xf32> to vector<8x32xf32>
    %138 = arith.mulf %133, %137 : vector<8x32xf32>
    %c0_67 = arith.constant 0 : index
    %c0_68 = arith.constant 0 : index
    %139 = vector.load %arg10[%c0_67, %c0_68] : memref<1x32xf32, #tpu.memory_space<vmem>>, vector<1x32xf32>
    %140 = vector.broadcast %139 : vector<1x32xf32> to vector<8x32xf32>
    %141 = arith.mulf %138, %140 : vector<8x32xf32>
    %c0_69 = arith.constant 0 : index
    %c0_70 = arith.constant 0 : index
    %142 = vector.load %arg11[%c0_69, %c0_70] : memref<1x32xf32, #tpu.memory_space<vmem>>, vector<1x32xf32>
    %143 = vector.broadcast %142 : vector<1x32xf32> to vector<8x32xf32>
    %144 = arith.addf %141, %143 : vector<8x32xf32>
    %c0_71 = arith.constant 0 : index
    %c0_72 = arith.constant 0 : index
    %c0_73 = arith.constant 0 : index
    %145 = vector.load %arg12[%c0_71, %c0_72, %c0_73] : memref<1x8x32xf32, #tpu.memory_space<vmem>>, vector<1x8x32xf32>
    %146 = vector.shape_cast %145 : vector<1x8x32xf32> to vector<8x32xf32>
    %147 = vector.shape_cast %144 : vector<8x32xf32> to vector<1x8x32xf32>
    tpu.vector_store %arg12[%c0_71, %c0_72, %c0_73], %147 {strides = array<i32>} : memref<1x8x32xf32, #tpu.memory_space<vmem>>, vector<1x8x32xf32>,
    return
  }
  func.func @transform_0(%arg0: i32) -> (i32, i32, i32) {
    %c0_i32 = arith.constant 0 : i32
    %c0_i32_0 = arith.constant 0 : i32
    %c0_i32_1 = arith.constant 0 : i32
    return %arg0, %c0_i32, %c0_i32_0 : i32, i32, i32
  }
  func.func @transform_1(%arg0: i32) -> (i32, i32, i32) {
    %c0_i32 = arith.constant 0 : i32
    %c0_i32_0 = arith.constant 0 : i32
    %c0_i32_1 = arith.constant 0 : i32
    return %arg0, %c0_i32, %c0_i32_0 : i32, i32, i32
  }
  func.func @transform_2(%arg0: i32) -> (i32, i32, i32) {
    %c0_i32 = arith.constant 0 : i32
    %c0_i32_0 = arith.constant 0 : i32
    %c0_i32_1 = arith.constant 0 : i32
    return %arg0, %c0_i32, %c0_i32_0 : i32, i32, i32
  }
  func.func @transform_3(%arg0: i32) -> (i32, i32) {
    %c0_i32 = arith.constant 0 : i32
    %c0_i32_0 = arith.constant 0 : i32
    %c0_i32_1 = arith.constant 0 : i32
    return %c0_i32, %c0_i32_0 : i32, i32
  }
  func.func @transform_4(%arg0: i32) -> (i32, i32) {
    %c0_i32 = arith.constant 0 : i32
    %c0_i32_0 = arith.constant 0 : i32
    %c0_i32_1 = arith.constant 0 : i32
    return %c0_i32, %c0_i32_0 : i32, i32
  }
  func.func @transform_5(%arg0: i32) -> (i32, i32) {
    %c0_i32 = arith.constant 0 : i32
    %c0_i32_0 = arith.constant 0 : i32
    %c0_i32_1 = arith.constant 0 : i32
    return %c0_i32, %c0_i32_0 : i32, i32
  }
  func.func @transform_6(%arg0: i32) -> (i32, i32) {
    %c0_i32 = arith.constant 0 : i32
    %c0_i32_0 = arith.constant 0 : i32
    %c0_i32_1 = arith.constant 0 : i32
    return %c0_i32, %c0_i32_0 : i32, i32
  }
  func.func @transform_7(%arg0: i32) -> (i32, i32) {
    %c0_i32 = arith.constant 0 : i32
    %c0_i32_0 = arith.constant 0 : i32
    %c0_i32_1 = arith.constant 0 : i32
    return %c0_i32, %c0_i32_0 : i32, i32
  }
  func.func @transform_8(%arg0: i32) -> (i32, i32) {
    %c0_i32 = arith.constant 0 : i32
    %c0_i32_0 = arith.constant 0 : i32
    %c0_i32_1 = arith.constant 0 : i32
    return %c0_i32, %c0_i32_0 : i32, i32
  }
  func.func @transform_9(%arg0: i32) -> (i32, i32) {
    %c0_i32 = arith.constant 0 : i32
    %c0_i32_0 = arith.constant 0 : i32
    %c0_i32_1 = arith.constant 0 : i32
    return %c0_i32, %c0_i32_0 : i32, i32
  }
  func.func @transform_10(%arg0: i32) -> (i32, i32) {
    %c0_i32 = arith.constant 0 : i32
    %c0_i32_0 = arith.constant 0 : i32
    %c0_i32_1 = arith.constant 0 : i32
    return %c0_i32, %c0_i32_0 : i32, i32
  }
  func.func @transform_11(%arg0: i32) -> (i32, i32, i32) {
    %c0_i32 = arith.constant 0 : i32
    %c0_i32_0 = arith.constant 0 : i32
    %c0_i32_1 = arith.constant 0 : i32
    return %arg0, %c0_i32, %c0_i32_0 : i32, i32, i32
  }
  func.func @transform_12(%arg0: i32) -> (i32, i32, i32, i32) {
    %c0_i32 = arith.constant 0 : i32
    %c0_i32_0 = arith.constant 0 : i32
    %c0_i32_1 = arith.constant 0 : i32
    %c0_i32_2 = arith.constant 0 : i32
    return %arg0, %c0_i32, %c0_i32_0, %c0_i32_1 : i32, i32, i32, i32
  }
}

</mosaic_0001>

<llo_original>
// kernel: decoder_forward.13
$region0: #{decoder_forward.13}
  #allocation0 [shape = 'u32[]', space=smem, size = 0x4, offset = 0x4, fixed_abs, tag = 'smem constant byte address 0x4 - core index']
  #allocation1 [shape = 'u32[144,128]{1,0:T(1,128)}', space=vmem, size = 0x12000, scoped, tag = 'internal scratch']
  %s0 = inlined_call_operand.vmem [shape: f32[16,32], index: 0, kind: input, shape index: {}]
  %s1 = inlined_call_operand.vmem [shape: f32[32,50], index: 1, kind: input, shape index: {}]
  %s2 = inlined_call_operand.vmem [shape: f32[1,50], index: 2, kind: input, shape index: {}]
  %s3 = inlined_call_operand.hbm [shape: f32[16,50], index: 3, kind: output, shape index: {}]
  %s4 = sld [smem:[#allocation0]]
  $region22: #{decoder_forward.13} parent=0
    _
  %s6 = ssub.s32 1, %s4
  %s7 = scalar_select 0, %s6, %s4
  $region1: #{decoder_forward.13} parent=0
    #allocation2 [shape = 'u8[8192]{0}', space=vmem, size = 0x2000, scoped, tag = 'output window, operand 0, single buffered']
    #allocation3 [shape = 's32[1]{0}', space=sflag, size = 0x4, scoped, tag = 'scoped memory for decoder_forward.13']
    %8 = vsyncpa [#allocation3], 0
    // Predicated region
    $region2: #{decoder_forward.13} parent=1 // pred_check
      _
    $region3: #{decoder_forward.13} parent=1 // pred_check_branch
      %10 = sbr.rel (0) target = $region5
    $region4: #{decoder_forward.13} parent=1 // pred_region
      _
    $region5: #{decoder_forward.13} parent=1 // pred_fallthru
      _
    // Predicated region
    $region6: #{decoder_forward.13} parent=1 // pred_check
      _
    $region7: #{decoder_forward.13} parent=1 // pred_check_branch
      %12 = sbr.rel (0) target = $region9
    $region8: #{decoder_forward.13} parent=1 // pred_region
      _
    $region9: #{decoder_forward.13} parent=1 // pred_fallthru
      _
    // Predicated region
    $region10: #{decoder_forward.13} parent=1 // pred_check
      _
    $region11: #{decoder_forward.13} parent=1 // pred_check_branch
      %14 = sbr.rel (0) target = $region13
    $region12: #{decoder_forward.13} parent=1 // pred_region
      _
    $region13: #{decoder_forward.13} parent=1 // pred_fallthru
      _
    %v15 = vld [vmem:[%s0] sm:$0xff]
    %v16 = vld [vmem:[%s0 + $0x8] sm:$0xff]
    %v17 = vld [vmem:[%s1] sm:$0xff]
    %v18 = vld [vmem:[%s1 + $0x8] sm:$0xff]
    %v19 = vld [vmem:[%s1 + $0x10] sm:$0xff]
    %v20 = vld [vmem:[%s1 + $0x18] sm:$0xff]
    %v21 = vld [vmem:[%s2] sm:$0x1]
    %v23 = vlaneseq
    %v24 = vshrl.u32 %v23, 7
    %v25 = vsub.s32 0, %v24
    %v26 = vrot.slane %v21, %v25
    %vm28 = vcmask 261120
    %v30 = vsel %vm28, %v15, 0
    %v33 = vsel %vm28, %v16, 0
    %35 = vmatprep.subr.mxu0 0.0
    %36 = vmatpush1.msra.mxu0 %v17
    %37 = vmatprep.subr.mxu0 0.0
    %38 = vmatpush1.msra.mxu0 %v18
    %39 = vmatprep.subr.mxu0 0.0
    %40 = vmatpush1.msra.mxu0 %v19
    %41 = vmatprep.subr.mxu0 0.0
    %42 = vmatpush1.msra.mxu0 %v20
    %43 = vmatprep.subr.mxu0 0.0
    %44 = vmatpush1.msra.mxu0 0.0
    %45 = vmatprep.subr.mxu0 0.0
    %46 = vmatpush1.msra.mxu0 0.0
    %47 = vmatprep.subr.mxu0 0.0
    %48 = vmatpush1.msra.mxu0 0.0
    %49 = vmatprep.subr.mxu0 0.0
    %50 = vmatpush1.msra.mxu0 0.0
    %51 = vmatprep.subr.mxu0 0.0
    %52 = vmatpush1.msra.mxu0 0.0
    %53 = vmatprep.subr.mxu0 0.0
    %54 = vmatpush1.msra.mxu0 0.0
    %55 = vmatprep.subr.mxu0 0.0
    %56 = vmatpush1.msra.mxu0 0.0
    %57 = vmatprep.subr.mxu0 0.0
    %58 = vmatpush1.msra.mxu0 0.0
    %59 = vmatprep.subr.mxu0 0.0
    %60 = vmatpush1.msra.mxu0 0.0
    %61 = vmatprep.subr.mxu0 0.0
    %62 = vmatpush1.msra.mxu0 0.0
    %63 = vmatprep.subr.mxu0 0.0
    %64 = vmatpush1.msra.mxu0 0.0
    %65 = vmatprep.subr.mxu0 0.0
    %66 = vmatpush1.msra.mxu0 0.0
    %67 = vmatprep.subr.mxu0 0.0
    %68 = vmatpush1.msra.mxu0 0.0
    %69 = vmatprep.subr.mxu0 0.0
    %70 = vmatpush1.msra.mxu0 0.0
    %71 = vmatprep.subr.mxu0 0.0
    %72 = vmatpush1.msra.mxu0 0.0
    %73 = vmatprep.subr.mxu0 0.0
    %74 = vmatpush1.msra.mxu0 0.0
    %75 = vmatprep.subr.mxu0 0.0
    %76 = vmatpush1.msra.mxu0 0.0
    %77 = vmatprep.subr.mxu0 0.0
    %78 = vmatpush1.msra.mxu0 0.0
    %79 = vmatprep.subr.mxu0 0.0
    %80 = vmatpush1.msra.mxu0 0.0
    %81 = vmatprep.subr.mxu0 0.0
    %82 = vmatpush1.msra.mxu0 0.0
    %83 = vmatprep.subr.mxu0 0.0
    %84 = vmatpush1.msra.mxu0 0.0
    %85 = vmatprep.subr.mxu0 0.0
    %86 = vmatpush1.msra.mxu0 0.0
    %87 = vmatprep.subr.mxu0 0.0
    %88 = vmatpush1.msra.mxu0 0.0
    %89 = vmatprep.subr.mxu0 0.0
    %90 = vmatpush1.msra.mxu0 0.0
    %91 = vmatprep.subr.mxu0 0.0
    %92 = vmatpush1.msra.mxu0 0.0
    %93 = vmatprep.subr.mxu0 0.0
    %94 = vmatpush1.msra.mxu0 0.0
    %95 = vmatprep.subr.mxu0 0.0
    %96 = vmatpush1.msra.mxu0 0.0
    %97 = vmatprep.subr.mxu0 0.0
    %98 = vmatpush1.msra.mxu0 0.0
    %99 = vmatprep.mubr.f32.mxu0 0.0
    %100 = vmatmul.mubr.f32.gmra.mrb[0].mxu0 %v30
    %v101 = vpop.f32.mrb[0].mxu0
    %v102 = vadd.f32 %v26, %v101
    %v103 = vpop.f32.mrb[0].mxu0
    %104 = vmatprep.mubr.f32.mxu0 0.0
    %105 = vmatmul.mubr.f32.gmra.mrb[0].mxu0 %v33
    %v106 = vpop.f32.mrb[0].mxu0
    %v107 = vadd.f32 %v26, %v106
    %v108 = vpop.f32.mrb[0].mxu0
    %109 = vdwg.mxu0
    %vm110 = vcmask 408576
    %111 = vst.msk [vmem:[#allocation2] sm:$0xff] %vm110, %v102
    %112 = vst.msk [vmem:[#allocation2 + $0x8] sm:$0xff] %vm110, %v107
    // Predicated region
    $region14: #{decoder_forward.13} parent=1 // pred_check
      _
    $region15: #{decoder_forward.13} parent=1 // pred_check_branch
      %114 = sbr.rel (0) target = $region17
    $region16: #{decoder_forward.13} parent=1 // pred_region
      %s116 = ssub.s32 256, 256
      %117 = vsyncadd [#allocation3], %s116
      %s118 = sshll.u32 [#allocation2], 4
      %s119 = int_to_ptr.vmem [resolvable:$true] %s118
      %124 = dma.vmem_to_hbm [thread:$0]  %s119, 256, %s3, [#allocation3], 128, 128, 8
    $region17: #{decoder_forward.13} parent=1 // pred_fallthru
      _
    // Predicated region
    $region18: #{decoder_forward.13} parent=1 // pred_check
      _
    $region19: #{decoder_forward.13} parent=1 // pred_check_branch
      %126 = sbr.rel (0) target = $region21
    $region20: #{decoder_forward.13} parent=1 // pred_region
      %127 = dma.done [#allocation3], 256
    $region21: #{decoder_forward.13} parent=1 // pred_fallthru
      _
    %128 = vsyncpa [#allocation3], 1

// kernel: decoder_forward.9
$region0: #{decoder_forward.9}
  #allocation0 [shape = 'u32[]', space=smem, size = 0x4, offset = 0x4, fixed_abs, tag = 'smem constant byte address 0x4 - core index']
  #allocation1 [shape = 'u32[144,128]{1,0:T(1,128)}', space=vmem, size = 0x12000, scoped, tag = 'internal scratch']
  %s0 = inlined_call_operand.vmem [shape: f32[16,32], index: 0, kind: input, shape index: {}]
  %s1 = inlined_call_operand.vmem [shape: f32[32,64], index: 1, kind: input, shape index: {}]
  %s2 = inlined_call_operand.vmem [shape: f32[1,64], index: 2, kind: input, shape index: {}]
  %s3 = inlined_call_operand.vmem [shape: f32[64,32], index: 3, kind: input, shape index: {}]
  %s4 = inlined_call_operand.vmem [shape: f32[1,32], index: 4, kind: input, shape index: {}]
  %s5 = inlined_call_operand.vmem [shape: f32[1,32], index: 5, kind: input, shape index: {}]
  %s6 = inlined_call_operand.vmem [shape: f32[1,32], index: 6, kind: input, shape index: {}]
  %s7 = inlined_call_operand.vmem [shape: f32[16,32], index: 7, kind: output, shape index: {}]
  %s8 = sld [smem:[#allocation0]]
  $region38: #{decoder_forward.9} parent=0
    _
  %s10 = ssub.s32 1, %s8
  %s11 = scalar_select 0, %s10, %s8
  // Predicated region
  $region2: #{decoder_forward.9} parent=0 // pred_check
    _
  $region3: #{decoder_forward.9} parent=0 // pred_check_branch
    %13 = sbr.rel (0) target = $region5
  $region4: #{decoder_forward.9} parent=0 // pred_region
    _
  $region5: #{decoder_forward.9} parent=0 // pred_fallthru
    _
  // Predicated region
  $region6: #{decoder_forward.9} parent=0 // pred_check
    _
  $region7: #{decoder_forward.9} parent=0 // pred_check_branch
    %15 = sbr.rel (0) target = $region9
  $region8: #{decoder_forward.9} parent=0 // pred_region
    _
  $region9: #{decoder_forward.9} parent=0 // pred_fallthru
    _
  // Predicated region
  $region10: #{decoder_forward.9} parent=0 // pred_check
    _
  $region11: #{decoder_forward.9} parent=0 // pred_check_branch
    %17 = sbr.rel (0) target = $region13
  $region12: #{decoder_forward.9} parent=0 // pred_region
    _
  $region13: #{decoder_forward.9} parent=0 // pred_fallthru
    _
  // Predicated region
  $region14: #{decoder_forward.9} parent=0 // pred_check
    _
  $region15: #{decoder_forward.9} parent=0 // pred_check_branch
    %19 = sbr.rel (0) target = $region17
  $region16: #{decoder_forward.9} parent=0 // pred_region
    _
  $region17: #{decoder_forward.9} parent=0 // pred_fallthru
    _
  // Predicated region
  $region18: #{decoder_forward.9} parent=0 // pred_check
    _
  $region19: #{decoder_forward.9} parent=0 // pred_check_branch
    %21 = sbr.rel (0) target = $region21
  $region20: #{decoder_forward.9} parent=0 // pred_region
    _
  $region21: #{decoder_forward.9} parent=0 // pred_fallthru
    _
  // Predicated region
  $region22: #{decoder_forward.9} parent=0 // pred_check
    _
  $region23: #{decoder_forward.9} parent=0 // pred_check_branch
    %23 = sbr.rel (0) target = $region25
  $region24: #{decoder_forward.9} parent=0 // pred_region
    _
  $region25: #{decoder_forward.9} parent=0 // pred_fallthru
    _
  // Predicated region
  $region26: #{decoder_forward.9} parent=0 // pred_check
    _
  $region27: #{decoder_forward.9} parent=0 // pred_check_branch
    %25 = sbr.rel (0) target = $region29
  $region28: #{decoder_forward.9} parent=0 // pred_region
    _
  $region29: #{decoder_forward.9} parent=0 // pred_fallthru
    _
  %v26 = vld [vmem:[%s0] sm:$0xff]
  %v27 = vld [vmem:[%s0 + $0x8] sm:$0xff]
  %v28 = vld [vmem:[%s1] sm:$0xff]
  %v29 = vld [vmem:[%s1 + $0x8] sm:$0xff]
  %v30 = vld [vmem:[%s1 + $0x10] sm:$0xff]
  %v31 = vld [vmem:[%s1 + $0x18] sm:$0xff]
  %v32 = vld [vmem:[%s2] sm:$0x1]
  %v34 = vlaneseq
  %v35 = vshrl.u32 %v34, 7
  %v36 = vsub.s32 0, %v35
  %v37 = vrot.slane %v32, %v36
  %vm39 = vcmask 261120
  %v41 = vsel %vm39, %v26, 0
  %v44 = vsel %vm39, %v27, 0
  %46 = vmatprep.subr.mxu0 0.0
  %47 = vmatpush1.msra.mxu0 %v28
  %48 = vmatprep.subr.mxu0 0.0
  %49 = vmatpush1.msra.mxu0 %v29
  %50 = vmatprep.subr.mxu0 0.0
  %51 = vmatpush1.msra.mxu0 %v30
  %52 = vmatprep.subr.mxu0 0.0
  %53 = vmatpush1.msra.mxu0 %v31
  %54 = vmatprep.subr.mxu0 0.0
  %55 = vmatpush1.msra.mxu0 0.0
  %56 = vmatprep.subr.mxu0 0.0
  %57 = vmatpush1.msra.mxu0 0.0
  %58 = vmatprep.subr.mxu0 0.0
  %59 = vmatpush1.msra.mxu0 0.0
  %60 = vmatprep.subr.mxu0 0.0
  %61 = vmatpush1.msra.mxu0 0.0
  %62 = vmatprep.subr.mxu0 0.0
  %63 = vmatpush1.msra.mxu0 0.0
  %64 = vmatprep.subr.mxu0 0.0
  %65 = vmatpush1.msra.mxu0 0.0
  %66 = vmatprep.subr.mxu0 0.0
  %67 = vmatpush1.msra.mxu0 0.0
  %68 = vmatprep.subr.mxu0 0.0
  %69 = vmatpush1.msra.mxu0 0.0
  %70 = vmatprep.subr.mxu0 0.0
  %71 = vmatpush1.msra.mxu0 0.0
  %72 = vmatprep.subr.mxu0 0.0
  %73 = vmatpush1.msra.mxu0 0.0
  %74 = vmatprep.subr.mxu0 0.0
  %75 = vmatpush1.msra.mxu0 0.0
  %76 = vmatprep.subr.mxu0 0.0
  %77 = vmatpush1.msra.mxu0 0.0
  %78 = vmatprep.subr.mxu0 0.0
  %79 = vmatpush1.msra.mxu0 0.0
  %80 = vmatprep.subr.mxu0 0.0
  %81 = vmatpush1.msra.mxu0 0.0
  %82 = vmatprep.subr.mxu0 0.0
  %83 = vmatpush1.msra.mxu0 0.0
  %84 = vmatprep.subr.mxu0 0.0
  %85 = vmatpush1.msra.mxu0 0.0
  %86 = vmatprep.subr.mxu0 0.0
  %87 = vmatpush1.msra.mxu0 0.0
  %88 = vmatprep.subr.mxu0 0.0
  %89 = vmatpush1.msra.mxu0 0.0
  %90 = vmatprep.subr.mxu0 0.0
  %91 = vmatpush1.msra.mxu0 0.0
  %92 = vmatprep.subr.mxu0 0.0
  %93 = vmatpush1.msra.mxu0 0.0
  %94 = vmatprep.subr.mxu0 0.0
  %95 = vmatpush1.msra.mxu0 0.0
  %96 = vmatprep.subr.mxu0 0.0
  %97 = vmatpush1.msra.mxu0 0.0
  %98 = vmatprep.subr.mxu0 0.0
  %99 = vmatpush1.msra.mxu0 0.0
  %100 = vmatprep.subr.mxu0 0.0
  %101 = vmatpush1.msra.mxu0 0.0
  %102 = vmatprep.subr.mxu0 0.0
  %103 = vmatpush1.msra.mxu0 0.0
  %104 = vmatprep.subr.mxu0 0.0
  %105 = vmatpush1.msra.mxu0 0.0
  %106 = vmatprep.subr.mxu0 0.0
  %107 = vmatpush1.msra.mxu0 0.0
  %108 = vmatprep.subr.mxu0 0.0
  %109 = vmatpush1.msra.mxu0 0.0
  %110 = vmatprep.mubr.f32.mxu0 0.0
  %111 = vmatmul.mubr.f32.gmra.mrb[0].mxu0 %v41
  %v112 = vpop.f32.mrb[0].mxu0
  %v113 = vadd.f32 %v37, %v112
  %v114 = vpop.f32.mrb[0].mxu0
  %115 = vmatprep.mubr.f32.mxu0 0.0
  %116 = vmatmul.mubr.f32.gmra.mrb[0].mxu0 %v44
  %v117 = vpop.f32.mrb[0].mxu0
  %v118 = vadd.f32 %v37, %v117
  %v119 = vpop.f32.mrb[0].mxu0
  %120 = vdwg.mxu0
  %v121 = vmax.f32 %v113, 0.0
  %v122 = vmax.f32 %v118, 0.0
  %v123 = vld [vmem:[%s3] sm:$0xff]
  %v124 = vld [vmem:[%s3 + $0x8] sm:$0xff]
  %v125 = vld [vmem:[%s3 + $0x10] sm:$0xff]
  %v126 = vld [vmem:[%s3 + $0x18] sm:$0xff]
  %v127 = vld [vmem:[%s3 + $0x20] sm:$0xff]
  %v128 = vld [vmem:[%s3 + $0x28] sm:$0xff]
  %v129 = vld [vmem:[%s3 + $0x30] sm:$0xff]
  %v130 = vld [vmem:[%s3 + $0x38] sm:$0xff]
  %v131 = vld [vmem:[%s4] sm:$0x1]
  %v133 = vlaneseq
  %v134 = vshrl.u32 %v133, 7
  %v135 = vsub.s32 0, %v134
  %v136 = vrot.slane %v131, %v135
  %vm138 = vcmask 523264
  %v140 = vsel %vm138, %v121, 0
  %v143 = vsel %vm138, %v122, 0
  %145 = vmatprep.subr.mxu0 0.0
  %146 = vmatpush1.msra.mxu0 %v123
  %147 = vmatprep.subr.mxu0 0.0
  %148 = vmatpush1.msra.mxu0 %v124
  %149 = vmatprep.subr.mxu0 0.0
  %150 = vmatpush1.msra.mxu0 %v125
  %151 = vmatprep.subr.mxu0 0.0
  %152 = vmatpush1.msra.mxu0 %v126
  %153 = vmatprep.subr.mxu0 0.0
  %154 = vmatpush1.msra.mxu0 %v127
  %155 = vmatprep.subr.mxu0 0.0
  %156 = vmatpush1.msra.mxu0 %v128
  %157 = vmatprep.subr.mxu0 0.0
  %158 = vmatpush1.msra.mxu0 %v129
  %159 = vmatprep.subr.mxu0 0.0
  %160 = vmatpush1.msra.mxu0 %v130
  %161 = vmatprep.subr.mxu0 0.0
  %162 = vmatpush1.msra.mxu0 0.0
  %163 = vmatprep.subr.mxu0 0.0
  %164 = vmatpush1.msra.mxu0 0.0
  %165 = vmatprep.subr.mxu0 0.0
  %166 = vmatpush1.msra.mxu0 0.0
  %167 = vmatprep.subr.mxu0 0.0
  %168 = vmatpush1.msra.mxu0 0.0
  %169 = vmatprep.subr.mxu0 0.0
  %170 = vmatpush1.msra.mxu0 0.0
  %171 = vmatprep.subr.mxu0 0.0
  %172 = vmatpush1.msra.mxu0 0.0
  %173 = vmatprep.subr.mxu0 0.0
  %174 = vmatpush1.msra.mxu0 0.0
  %175 = vmatprep.subr.mxu0 0.0
  %176 = vmatpush1.msra.mxu0 0.0
  %177 = vmatprep.subr.mxu0 0.0
  %178 = vmatpush1.msra.mxu0 0.0
  %179 = vmatprep.subr.mxu0 0.0
  %180 = vmatpush1.msra.mxu0 0.0
  %181 = vmatprep.subr.mxu0 0.0
  %182 = vmatpush1.msra.mxu0 0.0
  %183 = vmatprep.subr.mxu0 0.0
  %184 = vmatpush1.msra.mxu0 0.0
  %185 = vmatprep.subr.mxu0 0.0
  %186 = vmatpush1.msra.mxu0 0.0
  %187 = vmatprep.subr.mxu0 0.0
  %188 = vmatpush1.msra.mxu0 0.0
  %189 = vmatprep.subr.mxu0 0.0
  %190 = vmatpush1.msra.mxu0 0.0
  %191 = vmatprep.subr.mxu0 0.0
  %192 = vmatpush1.msra.mxu0 0.0
  %193 = vmatprep.subr.mxu0 0.0
  %194 = vmatpush1.msra.mxu0 0.0
  %195 = vmatprep.subr.mxu0 0.0
  %196 = vmatpush1.msra.mxu0 0.0
  %197 = vmatprep.subr.mxu0 0.0
  %198 = vmatpush1.msra.mxu0 0.0
  %199 = vmatprep.subr.mxu0 0.0
  %200 = vmatpush1.msra.mxu0 0.0
  %201 = vmatprep.subr.mxu0 0.0
  %202 = vmatpush1.msra.mxu0 0.0
  %203 = vmatprep.subr.mxu0 0.0
  %204 = vmatpush1.msra.mxu0 0.0
  %205 = vmatprep.subr.mxu0 0.0
  %206 = vmatpush1.msra.mxu0 0.0
  %207 = vmatprep.subr.mxu0 0.0
  %208 = vmatpush1.msra.mxu0 0.0
  %209 = vmatprep.mubr.f32.mxu0 0.0
  %210 = vmatmul.mubr.f32.gmra.mrb[0].mxu0 %v140
  %v211 = vpop.f32.mrb[0].mxu0
  %v212 = vadd.f32 %v136, %v211
  %v213 = vpop.f32.mrb[0].mxu0
  %214 = vmatprep.mubr.f32.mxu0 0.0
  %215 = vmatmul.mubr.f32.gmra.mrb[0].mxu0 %v143
  %v216 = vpop.f32.mrb[0].mxu0
  %v217 = vadd.f32 %v136, %v216
  %v218 = vpop.f32.mrb[0].mxu0
  %219 = vdwg.mxu0
  %v220 = vadd.f32 %v26, %v212
  %v221 = vadd.f32 %v27, %v217
  %v222 = vsel %vm39, %v220, 0.0
  %223 = vadd.xlane.f32.xlu0 %v222
  %v224 = vpop.xlane.xlu0 %223
  %v225 = vsel %vm39, %v221, 0.0
  %226 = vadd.xlane.f32.xlu0 %v225
  %v227 = vpop.xlane.xlu0 %226
  %v228 = vrcp.pop 32.0
  %v229 = vmul.f32 %v224, %v228
  %v230 = vmul.f32 %v227, %v228
  %v231 = vsub.f32 %v220, %v229
  %v232 = vsub.f32 %v221, %v230
  %v233 = vmul.f32 %v231, %v231
  %v234 = vmul.f32 %v232, %v232
  %v235 = vsel %vm39, %v233, 0.0
  %236 = vadd.xlane.f32.xlu0 %v235
  %v237 = vpop.xlane.xlu0 %236
  %v238 = vsel %vm39, %v234, 0.0
  %239 = vadd.xlane.f32.xlu0 %v238
  %v240 = vpop.xlane.xlu0 %239
  %v241 = vmul.f32 %v237, %v228
  %v242 = vmul.f32 %v240, %v228
  %v243 = vadd.f32 %v241, 1e-05
  %v244 = vadd.f32 %v242, 1e-05
  %v245 = vrsqrt.pop %v243
  %v246 = vrsqrt.pop %v244
  %v247 = vmul.f32 %v231, %v245
  %v248 = vmul.f32 %v232, %v246
  %v249 = vld [vmem:[%s5] sm:$0x1]
  %v251 = vlaneseq
  %v252 = vshrl.u32 %v251, 7
  %v253 = vsub.s32 0, %v252
  %v254 = vrot.slane %v249, %v253
  %v256 = vmul.f32 %v247, %v254
  %v257 = vmul.f32 %v248, %v254
  %v258 = vld [vmem:[%s6] sm:$0x1]
  %v260 = vlaneseq
  %v261 = vshrl.u32 %v260, 7
  %v262 = vsub.s32 0, %v261
  %v263 = vrot.slane %v258, %v262
  %v265 = vadd.f32 %v256, %v263
  %v266 = vadd.f32 %v257, %v263
  %267 = vst.msk [vmem:[%s7] sm:$0xff] %vm39, %v265
  %268 = vst.msk [vmem:[%s7 + $0x8] sm:$0xff] %vm39, %v266
  // Predicated region
  $region30: #{decoder_forward.9} parent=0 // pred_check
    _
  $region31: #{decoder_forward.9} parent=0 // pred_check_branch
    %270 = sbr.rel (0) target = $region33
  $region32: #{decoder_forward.9} parent=0 // pred_region
    _
  $region33: #{decoder_forward.9} parent=0 // pred_fallthru
    _
  // Predicated region
  $region34: #{decoder_forward.9} parent=0 // pred_check
    _
  $region35: #{decoder_forward.9} parent=0 // pred_check_branch
    %272 = sbr.rel (0) target = $region37
  $region36: #{decoder_forward.9} parent=0 // pred_region
    _
  $region37: #{decoder_forward.9} parent=0 // pred_fallthru
    _

// kernel: decoder_forward.7
$region0: #{decoder_forward.7}
  #allocation0 [shape = 'u32[]', space=smem, size = 0x4, offset = 0x4, fixed_abs, tag = 'smem constant byte address 0x4 - core index']
  #allocation1 [shape = 'u32[144,128]{1,0:T(1,128)}', space=vmem, size = 0x12000, scoped, tag = 'internal scratch']
  %s0 = inlined_call_operand.vmem [shape: f32[2,8,32], index: 0, kind: input, shape index: {}, may-alias: {0,1}]
  %s1 = inlined_call_operand.vmem [shape: f32[2,8,32], index: 1, kind: input, shape index: {}, may-alias: {0,1}]
  %s2 = inlined_call_operand.vmem [shape: f32[2,8,8], index: 2, kind: input, shape index: {}]
  %s3 = inlined_call_operand.vmem [shape: f32[32,32], index: 3, kind: input, shape index: {}]
  %s4 = inlined_call_operand.vmem [shape: f32[1,32], index: 4, kind: input, shape index: {}]
  %s5 = inlined_call_operand.vmem [shape: f32[32,64], index: 5, kind: input, shape index: {}]
  %s6 = inlined_call_operand.vmem [shape: f32[1,64], index: 6, kind: input, shape index: {}]
  %s7 = inlined_call_operand.vmem [shape: f32[32,32], index: 7, kind: input, shape index: {}]
  %s8 = inlined_call_operand.vmem [shape: f32[1,32], index: 8, kind: input, shape index: {}]
  %s9 = inlined_call_operand.vmem [shape: f32[1,32], index: 9, kind: input, shape index: {}]
  %s10 = inlined_call_operand.vmem [shape: f32[1,32], index: 10, kind: input, shape index: {}]
  %s11 = inlined_call_operand.vmem [shape: f32[2,8,32], index: 11, kind: output, shape index: {}]
  %s12 = sld [smem:[#allocation0]]
  $region77: #{decoder_forward.7} parent=0
    _
  %s14 = ssub.s32 1, %s12
  %s15 = scalar_select 0, %s14, %s12
  loop: start=0, step=1, limit=4
  $region2: #{decoder_forward.7} parent=0 // loop_pre_header
    _
  $region3: #{decoder_forward.7} parent=0 // loop_header
    %s17 = sphi 0, %s21
    %p18 = scmp.ge.s32.totalorder %s17, 4
    %s27 = sphi 0, %s29
    %s30 = sphi 0, %s27
    %s31 = sphi 0, %s30
    %s47 = sphi 0, %s31
    %s53 = sphi 0, %s55
    %s56 = sphi 0, %s53
    %s57 = sphi 0, %s56
    %s73 = sphi 0, %s57
    %s79 = sphi 0, %s81
    %s82 = sphi 0, %s79
    %s83 = sphi 0, %s82
    %s99 = sphi 0, %s83
    %s103 = sphi 0, %s103
    %s105 = sphi 0, %s103
    %s106 = sphi 0, %s105
    %s120 = sphi 0, %s106
    %s124 = sphi 0, %s124
    %s126 = sphi 0, %s124
    %s127 = sphi 0, %s126
    %s141 = sphi 0, %s127
    %s145 = sphi 0, %s145
    %s147 = sphi 0, %s145
    %s148 = sphi 0, %s147
    %s162 = sphi 0, %s148
    %s166 = sphi 0, %s166
    %s168 = sphi 0, %s166
    %s169 = sphi 0, %s168
    %s183 = sphi 0, %s169
    %s187 = sphi 0, %s187
    %s189 = sphi 0, %s187
    %s190 = sphi 0, %s189
    %s204 = sphi 0, %s190
    %s208 = sphi 0, %s208
    %s210 = sphi 0, %s208
    %s211 = sphi 0, %s210
    %s225 = sphi 0, %s211
    %s229 = sphi 0, %s229
    %s231 = sphi 0, %s229
    %s232 = sphi 0, %s231
    %s246 = sphi 0, %s232
    %s250 = sphi 0, %s250
    %s252 = sphi 0, %s250
    %s253 = sphi 0, %s252
    %s267 = sphi 0, %s253
    %s273 = sphi 0, %s275
    %s276 = sphi 0, %s273
    %s277 = sphi 0, %s276
    %s293 = sphi 0, %s277
  $region4: #{decoder_forward.7} parent=0 // loop_header_branch
    %20 = sbr.rel (%p18) target = $region8
  $region5: #{decoder_forward.7} parent=0 // loop_body
    %s22 = ssub.s32 %s17, 1
    %s23 = ssub.s32 %s17, 2
    %s24 = sadd.s32 %s17, 1
    %s25 = ssub.s32 %s17, %s24
    %p26 = scmp.eq.s32.totalorder %s25, 0
    %s28 = sadd.s32 %s27, 1
    %s29 = scalar_select %p26, %s27, %s28
    %p32 = pneg %p26
    %p33 = scmp.eq.s32.totalorder %s17, 1
    %p34 = por %p32, %p33
    %p35 = scmp.ne.s32.totalorder %s27, %s30
    %p36 = scmp.eq.s32.totalorder %s17, 0
    %p37 = por %p35, %p36
    %p38 = scmp.ne.s32.totalorder %s27, %s30
    %p39 = scmp.eq.s32.totalorder %s22, 1
    %p40 = por %p38, %p39
    %p41 = scmp.ne.s32.totalorder %s30, %s31
    %p42 = scmp.eq.s32.totalorder %s22, 0
    %p43 = por %p41, %p42
    %p44 = scmp.ne.s32.totalorder %s30, %s31
    %p45 = scmp.eq.s32.totalorder %s23, 1
    %p46 = por %p44, %p45
    %p48 = scmp.ne.s32.totalorder %s31, %s47
    %p49 = scmp.eq.s32.totalorder %s23, 0
    %p50 = por %p48, %p49
    %s51 = ssub.s32 %s17, %s24
    %p52 = scmp.eq.s32.totalorder %s51, 0
    %s54 = sadd.s32 %s53, 1
    %s55 = scalar_select %p52, %s53, %s54
    %p58 = pneg %p52
    %p59 = scmp.eq.s32.totalorder %s17, 1
    %p60 = por %p58, %p59
    %p61 = scmp.ne.s32.totalorder %s53, %s56
    %p62 = scmp.eq.s32.totalorder %s17, 0
    %p63 = por %p61, %p62
    %p64 = scmp.ne.s32.totalorder %s53, %s56
    %p65 = scmp.eq.s32.totalorder %s22, 1
    %p66 = por %p64, %p65
    %p67 = scmp.ne.s32.totalorder %s56, %s57
    %p68 = scmp.eq.s32.totalorder %s22, 0
    %p69 = por %p67, %p68
    %p70 = scmp.ne.s32.totalorder %s56, %s57
    %p71 = scmp.eq.s32.totalorder %s23, 1
    %p72 = por %p70, %p71
    %p74 = scmp.ne.s32.totalorder %s57, %s73
    %p75 = scmp.eq.s32.totalorder %s23, 0
    %p76 = por %p74, %p75
    %s77 = ssub.s32 %s17, %s24
    %p78 = scmp.eq.s32.totalorder %s77, 0
    %s80 = sadd.s32 %s79, 1
    %s81 = scalar_select %p78, %s79, %s80
    %p84 = pneg %p78
    %p85 = scmp.eq.s32.totalorder %s17, 1
    %p86 = por %p84, %p85
    %p87 = scmp.ne.s32.totalorder %s79, %s82
    %p88 = scmp.eq.s32.totalorder %s17, 0
    %p89 = por %p87, %p88
    %p90 = scmp.ne.s32.totalorder %s79, %s82
    %p91 = scmp.eq.s32.totalorder %s22, 1
    %p92 = por %p90, %p91
    %p93 = scmp.ne.s32.totalorder %s82, %s83
    %p94 = scmp.eq.s32.totalorder %s22, 0
    %p95 = por %p93, %p94
    %p96 = scmp.ne.s32.totalorder %s82, %s83
    %p97 = scmp.eq.s32.totalorder %s23, 1
    %p98 = por %p96, %p97
    %p100 = scmp.ne.s32.totalorder %s83, %s99
    %p101 = scmp.eq.s32.totalorder %s23, 0
    %p102 = por %p100, %p101
    %s104 = sadd.s32 %s103, 1
    %p107 = scmp.eq.s32.totalorder %s17, 1
    %p108 = scmp.ne.s32.totalorder %s103, %s105
    %p109 = scmp.eq.s32.totalorder %s17, 0
    %p110 = por %p108, %p109
    %p111 = scmp.ne.s32.totalorder %s103, %s105
    %p112 = scmp.eq.s32.totalorder %s22, 1
    %p113 = por %p111, %p112
    %p114 = scmp.ne.s32.totalorder %s105, %s106
    %p115 = scmp.eq.s32.totalorder %s22, 0
    %p116 = por %p114, %p115
    %p117 = scmp.ne.s32.totalorder %s105, %s106
    %p118 = scmp.eq.s32.totalorder %s23, 1
    %p119 = por %p117, %p118
    %p121 = scmp.ne.s32.totalorder %s106, %s120
    %p122 = scmp.eq.s32.totalorder %s23, 0
    %p123 = por %p121, %p122
    %s125 = sadd.s32 %s124, 1
    %p128 = scmp.eq.s32.totalorder %s17, 1
    %p129 = scmp.ne.s32.totalorder %s124, %s126
    %p130 = scmp.eq.s32.totalorder %s17, 0
    %p131 = por %p129, %p130
    %p132 = scmp.ne.s32.totalorder %s124, %s126
    %p133 = scmp.eq.s32.totalorder %s22, 1
    %p134 = por %p132, %p133
    %p135 = scmp.ne.s32.totalorder %s126, %s127
    %p136 = scmp.eq.s32.totalorder %s22, 0
    %p137 = por %p135, %p136
    %p138 = scmp.ne.s32.totalorder %s126, %s127
    %p139 = scmp.eq.s32.totalorder %s23, 1
    %p140 = por %p138, %p139
    %p142 = scmp.ne.s32.totalorder %s127, %s141
    %p143 = scmp.eq.s32.totalorder %s23, 0
    %p144 = por %p142, %p143
    %s146 = sadd.s32 %s145, 1
    %p149 = scmp.eq.s32.totalorder %s17, 1
    %p150 = scmp.ne.s32.totalorder %s145, %s147
    %p151 = scmp.eq.s32.totalorder %s17, 0
    %p152 = por %p150, %p151
    %p153 = scmp.ne.s32.totalorder %s145, %s147
    %p154 = scmp.eq.s32.totalorder %s22, 1
    %p155 = por %p153, %p154
    %p156 = scmp.ne.s32.totalorder %s147, %s148
    %p157 = scmp.eq.s32.totalorder %s22, 0
    %p158 = por %p156, %p157
    %p159 = scmp.ne.s32.totalorder %s147, %s148
    %p160 = scmp.eq.s32.totalorder %s23, 1
    %p161 = por %p159, %p160
    %p163 = scmp.ne.s32.totalorder %s148, %s162
    %p164 = scmp.eq.s32.totalorder %s23, 0
    %p165 = por %p163, %p164
    %s167 = sadd.s32 %s166, 1
    %p170 = scmp.eq.s32.totalorder %s17, 1
    %p171 = scmp.ne.s32.totalorder %s166, %s168
    %p172 = scmp.eq.s32.totalorder %s17, 0
    %p173 = por %p171, %p172
    %p174 = scmp.ne.s32.totalorder %s166, %s168
    %p175 = scmp.eq.s32.totalorder %s22, 1
    %p176 = por %p174, %p175
    %p177 = scmp.ne.s32.totalorder %s168, %s169
    %p178 = scmp.eq.s32.totalorder %s22, 0
    %p179 = por %p177, %p178
    %p180 = scmp.ne.s32.totalorder %s168, %s169
    %p181 = scmp.eq.s32.totalorder %s23, 1
    %p182 = por %p180, %p181
    %p184 = scmp.ne.s32.totalorder %s169, %s183
    %p185 = scmp.eq.s32.totalorder %s23, 0
    %p186 = por %p184, %p185
    %s188 = sadd.s32 %s187, 1
    %p191 = scmp.eq.s32.totalorder %s17, 1
    %p192 = scmp.ne.s32.totalorder %s187, %s189
    %p193 = scmp.eq.s32.totalorder %s17, 0
    %p194 = por %p192, %p193
    %p195 = scmp.ne.s32.totalorder %s187, %s189
    %p196 = scmp.eq.s32.totalorder %s22, 1
    %p197 = por %p195, %p196
    %p198 = scmp.ne.s32.totalorder %s189, %s190
    %p199 = scmp.eq.s32.totalorder %s22, 0
    %p200 = por %p198, %p199
    %p201 = scmp.ne.s32.totalorder %s189, %s190
    %p202 = scmp.eq.s32.totalorder %s23, 1
    %p203 = por %p201, %p202
    %p205 = scmp.ne.s32.totalorder %s190, %s204
    %p206 = scmp.eq.s32.totalorder %s23, 0
    %p207 = por %p205, %p206
    %s209 = sadd.s32 %s208, 1
    %p212 = scmp.eq.s32.totalorder %s17, 1
    %p213 = scmp.ne.s32.totalorder %s208, %s210
    %p214 = scmp.eq.s32.totalorder %s17, 0
    %p215 = por %p213, %p214
    %p216 = scmp.ne.s32.totalorder %s208, %s210
    %p217 = scmp.eq.s32.totalorder %s22, 1
    %p218 = por %p216, %p217
    %p219 = scmp.ne.s32.totalorder %s210, %s211
    %p220 = scmp.eq.s32.totalorder %s22, 0
    %p221 = por %p219, %p220
    %p222 = scmp.ne.s32.totalorder %s210, %s211
    %p223 = scmp.eq.s32.totalorder %s23, 1
    %p224 = por %p222, %p223
    %p226 = scmp.ne.s32.totalorder %s211, %s225
    %p227 = scmp.eq.s32.totalorder %s23, 0
    %p228 = por %p226, %p227
    %s230 = sadd.s32 %s229, 1
    %p233 = scmp.eq.s32.totalorder %s17, 1
    %p234 = scmp.ne.s32.totalorder %s229, %s231
    %p235 = scmp.eq.s32.totalorder %s17, 0
    %p236 = por %p234, %p235
    %p237 = scmp.ne.s32.totalorder %s229, %s231
    %p238 = scmp.eq.s32.totalorder %s22, 1
    %p239 = por %p237, %p238
    %p240 = scmp.ne.s32.totalorder %s231, %s232
    %p241 = scmp.eq.s32.totalorder %s22, 0
    %p242 = por %p240, %p241
    %p243 = scmp.ne.s32.totalorder %s231, %s232
    %p244 = scmp.eq.s32.totalorder %s23, 1
    %p245 = por %p243, %p244
    %p247 = scmp.ne.s32.totalorder %s232, %s246
    %p248 = scmp.eq.s32.totalorder %s23, 0
    %p249 = por %p247, %p248
    %s251 = sadd.s32 %s250, 1
    %p254 = scmp.eq.s32.totalorder %s17, 1
    %p255 = scmp.ne.s32.totalorder %s250, %s252
    %p256 = scmp.eq.s32.totalorder %s17, 0
    %p257 = por %p255, %p256
    %p258 = scmp.ne.s32.totalorder %s250, %s252
    %p259 = scmp.eq.s32.totalorder %s22, 1
    %p260 = por %p258, %p259
    %p261 = scmp.ne.s32.totalorder %s252, %s253
    %p262 = scmp.eq.s32.totalorder %s22, 0
    %p263 = por %p261, %p262
    %p264 = scmp.ne.s32.totalorder %s252, %s253
    %p265 = scmp.eq.s32.totalorder %s23, 1
    %p266 = por %p264, %p265
    %p268 = scmp.ne.s32.totalorder %s253, %s267
    %p269 = scmp.eq.s32.totalorder %s23, 0
    %p270 = por %p268, %p269
    %s271 = ssub.s32 %s17, %s24
    %p272 = scmp.eq.s32.totalorder %s271, 0
    %s274 = sadd.s32 %s273, 1
    %s275 = scalar_select %p272, %s273, %s274
    %p278 = pneg %p272
    %p279 = scmp.eq.s32.totalorder %s17, 1
    %p280 = por %p278, %p279
    %p281 = scmp.ne.s32.totalorder %s273, %s276
    %p282 = scmp.eq.s32.totalorder %s17, 0
    %p283 = por %p281, %p282
    %p284 = scmp.ne.s32.totalorder %s273, %s276
    %p285 = scmp.eq.s32.totalorder %s22, 1
    %p286 = por %p284, %p285
    %p287 = scmp.ne.s32.totalorder %s276, %s277
    %p288 = scmp.eq.s32.totalorder %s22, 0
    %p289 = por %p287, %p288
    %p290 = scmp.ne.s32.totalorder %s276, %s277
    %p291 = scmp.eq.s32.totalorder %s23, 1
    %p292 = por %p290, %p291
    %p294 = scmp.ne.s32.totalorder %s277, %s293
    %p295 = scmp.eq.s32.totalorder %s23, 0
    %p296 = por %p294, %p295
    %p297 = scmp.le.s32.totalorder 1, %s17
    %p298 = scmp.lt.s32.totalorder %s17, 3
    %p299 = pnand %p297, %p298
    %p300 = pneg %p299
    // Predicated region
    $region9: #{decoder_forward.7} parent=5 // pred_check
      _
    $region10: #{decoder_forward.7} parent=5 // pred_check_branch
      %302 = sbr.rel (%p299) target = $region12
    $region11: #{decoder_forward.7} parent=5 // pred_region
      %s303 = ssub.s32 %s17, 1
      // Predicated region
      $region13: #{decoder_forward.7} parent=11 // pred_check
        %p304 = pneg %p116
      $region14: #{decoder_forward.7} parent=11 // pred_check_branch
        %306 = sbr.rel (%p304) target = $region16
      $region15: #{decoder_forward.7} parent=11 // pred_region
        _
      $region16: #{decoder_forward.7} parent=11 // pred_fallthru
        _
      // Predicated region
      $region17: #{decoder_forward.7} parent=11 // pred_check
        %p307 = pneg %p137
      $region18: #{decoder_forward.7} parent=11 // pred_check_branch
        %309 = sbr.rel (%p307) target = $region20
      $region19: #{decoder_forward.7} parent=11 // pred_region
        _
      $region20: #{decoder_forward.7} parent=11 // pred_fallthru
        _
      // Predicated region
      $region21: #{decoder_forward.7} parent=11 // pred_check
        %p310 = pneg %p158
      $region22: #{decoder_forward.7} parent=11 // pred_check_branch
        %312 = sbr.rel (%p310) target = $region24
      $region23: #{decoder_forward.7} parent=11 // pred_region
        _
      $region24: #{decoder_forward.7} parent=11 // pred_fallthru
        _
      // Predicated region
      $region25: #{decoder_forward.7} parent=11 // pred_check
        %p313 = pneg %p179
      $region26: #{decoder_forward.7} parent=11 // pred_check_branch
        %315 = sbr.rel (%p313) target = $region28
      $region27: #{decoder_forward.7} parent=11 // pred_region
        _
      $region28: #{decoder_forward.7} parent=11 // pred_fallthru
        _
      // Predicated region
      $region29: #{decoder_forward.7} parent=11 // pred_check
        %p316 = pneg %p200
      $region30: #{decoder_forward.7} parent=11 // pred_check_branch
        %318 = sbr.rel (%p316) target = $region32
      $region31: #{decoder_forward.7} parent=11 // pred_region
        _
      $region32: #{decoder_forward.7} parent=11 // pred_fallthru
        _
      // Predicated region
      $region33: #{decoder_forward.7} parent=11 // pred_check
        %p319 = pneg %p221
      $region34: #{decoder_forward.7} parent=11 // pred_check_branch
        %321 = sbr.rel (%p319) target = $region36
      $region35: #{decoder_forward.7} parent=11 // pred_region
        _
      $region36: #{decoder_forward.7} parent=11 // pred_fallthru
        _
      // Predicated region
      $region37: #{decoder_forward.7} parent=11 // pred_check
        %p322 = pneg %p242
      $region38: #{decoder_forward.7} parent=11 // pred_check_branch
        %324 = sbr.rel (%p322) target = $region40
      $region39: #{decoder_forward.7} parent=11 // pred_region
        _
      $region40: #{decoder_forward.7} parent=11 // pred_fallthru
        _
      // Predicated region
      $region41: #{decoder_forward.7} parent=11 // pred_check
        %p325 = pneg %p263
      $region42: #{decoder_forward.7} parent=11 // pred_check_branch
        %327 = sbr.rel (%p325) target = $region44
      $region43: #{decoder_forward.7} parent=11 // pred_region
        _
      $region44: #{decoder_forward.7} parent=11 // pred_fallthru
        _
    $region12: #{decoder_forward.7} parent=5 // pred_fallthru
      _
    %p328 = scmp.lt.s32.totalorder %s17, 2
    // Predicated region
    $region45: #{decoder_forward.7} parent=5 // pred_check
      %p329 = pneg %p328
    $region46: #{decoder_forward.7} parent=5 // pred_check_branch
      %331 = sbr.rel (%p329) target = $region48
    $region47: #{decoder_forward.7} parent=5 // pred_region
      // Predicated region
      $region49: #{decoder_forward.7} parent=47 // pred_check
        %p332 = pneg %p37
      $region50: #{decoder_forward.7} parent=47 // pred_check_branch
        %334 = sbr.rel (%p332) target = $region52
      $region51: #{decoder_forward.7} parent=47 // pred_region
        %p335 = scmp.lt.s32.totalorder %s17, 1
        %s336 = scalar_select %p335, %s17, 1
        %s337 = smul.addr %s336, 8
        %s338 = scalar_lea.vmem %s0, %s337
      $region52: #{decoder_forward.7} parent=47 // pred_fallthru
        _
      // Predicated region
      $region53: #{decoder_forward.7} parent=47 // pred_check
        %p339 = pneg %p63
      $region54: #{decoder_forward.7} parent=47 // pred_check_branch
        %341 = sbr.rel (%p339) target = $region56
      $region55: #{decoder_forward.7} parent=47 // pred_region
        %p342 = scmp.lt.s32.totalorder %s17, 1
        %s343 = scalar_select %p342, %s17, 1
        %s344 = smul.addr %s343, 8
        %s345 = scalar_lea.vmem %s1, %s344
      $region56: #{decoder_forward.7} parent=47 // pred_fallthru
        _
      // Predicated region
      $region57: #{decoder_forward.7} parent=47 // pred_check
        %p346 = pneg %p89
      $region58: #{decoder_forward.7} parent=47 // pred_check_branch
        %348 = sbr.rel (%p346) target = $region60
      $region59: #{decoder_forward.7} parent=47 // pred_region
        %p349 = scmp.lt.s32.totalorder %s17, 1
        %s350 = scalar_select %p349, %s17, 1
        %s351 = smul.addr %s350, 8
        %s352 = scalar_lea.vmem %s2, %s351
      $region60: #{decoder_forward.7} parent=47 // pred_fallthru
        _
    $region48: #{decoder_forward.7} parent=5 // pred_fallthru
      _
    %p353 = scmp.le.s32.totalorder 1, %s17
    %p354 = scmp.lt.s32.totalorder %s17, 3
    %p355 = pnand %p353, %p354
    %p356 = pneg %p355
    // Predicated region
    $region61: #{decoder_forward.7} parent=5 // pred_check
      _
    $region62: #{decoder_forward.7} parent=5 // pred_check_branch
      %358 = sbr.rel (%p355) target = $region64
    $region63: #{decoder_forward.7} parent=5 // pred_region
      %s359 = ssub.s32 %s17, 1
      %p360 = scmp.lt.s32.totalorder %s22, 1
      %s361 = scalar_select %p360, %s22, 1
      %s362 = smul.addr %s361, 8
      %s363 = scalar_lea.vmem %s0, %s362
      %p364 = pneg %p43
      %p365 = pneg %p40
      %p366 = scmp.lt.s32.totalorder %s22, 1
      %s367 = scalar_select %p366, %s22, 1
      %s368 = smul.addr %s367, 8
      %s369 = scalar_lea.vmem %s1, %s368
      %p370 = pneg %p69
      %p371 = pneg %p66
      %p372 = scmp.lt.s32.totalorder %s22, 1
      %s373 = scalar_select %p372, %s22, 1
      %s374 = smul.addr %s373, 8
      %s375 = scalar_lea.vmem %s2, %s374
      %p376 = pneg %p95
      %p377 = pneg %p92
      %p378 = pneg %p116
      %p379 = pneg %p113
      %p380 = pneg %p137
      %p381 = pneg %p134
      %p382 = pneg %p158
      %p383 = pneg %p155
      %p384 = pneg %p179
      %p385 = pneg %p176
      %p386 = pneg %p200
      %p387 = pneg %p197
      %p388 = pneg %p221
      %p389 = pneg %p218
      %p390 = pneg %p242
      %p391 = pneg %p239
      %p392 = pneg %p263
      %p393 = pneg %p260
      %p394 = pneg %p289
      %p395 = pneg %p286
      %p396 = scmp.lt.s32.totalorder %s22, 1
      %s397 = scalar_select %p396, %s22, 1
      %s398 = smul.addr %s397, 8
      %s399 = scalar_lea.vmem %s11, %s398
      %p400 = scmp.lt.s32.totalorder %s22, 1
      %s401 = scalar_select %p400, %s22, 1
      %s402 = smul.addr %s401, 8
      %s403 = scalar_lea.vmem %s0, %s402
      %p404 = scmp.lt.s32.totalorder %s22, 1
      %s405 = scalar_select %p404, %s22, 1
      %s406 = smul.addr %s405, 8
      %s407 = scalar_lea.vmem %s1, %s406
      %p408 = scmp.lt.s32.totalorder %s22, 1
      %s409 = scalar_select %p408, %s22, 1
      %s410 = smul.addr %s409, 8
      %s411 = scalar_lea.vmem %s2, %s410
      %p412 = scmp.lt.s32.totalorder %s22, 1
      %s413 = scalar_select %p412, %s22, 1
      %s414 = smul.addr %s413, 8
      %s415 = scalar_lea.vmem %s11, %s414
      %v416 = vld [vmem:[%s403] sm:$0xff]
      %v417 = vld [vmem:[%s407] sm:$0xff]
      %v418 = vld [vmem:[%s411] sm:$0xff]
      %v419 = vld [vmem:[%s3] sm:$0xff]
      %v420 = vld [vmem:[%s3 + $0x8] sm:$0xff]
      %v421 = vld [vmem:[%s3 + $0x10] sm:$0xff]
      %v422 = vld [vmem:[%s3 + $0x18] sm:$0xff]
      %v423 = vld [vmem:[%s4] sm:$0x1]
      %v425 = vlaneseq
      %v426 = vshrl.u32 %v425, 7
      %v427 = vsub.s32 0, %v426
      %v428 = vrot.slane %v423, %v427
      %vm430 = vcmask 261120
      %v432 = vsel %vm430, %v416, 0
      %434 = vmatprep.subr.mxu0 0.0
      %435 = vmatpush1.msra.mxu0 %v419
      %436 = vmatprep.subr.mxu0 0.0
      %437 = vmatpush1.msra.mxu0 %v420
      %438 = vmatprep.subr.mxu0 0.0
      %439 = vmatpush1.msra.mxu0 %v421
      %440 = vmatprep.subr.mxu0 0.0
      %441 = vmatpush1.msra.mxu0 %v422
      %442 = vmatprep.subr.mxu0 0.0
      %443 = vmatpush1.msra.mxu0 0.0
      %444 = vmatprep.subr.mxu0 0.0
      %445 = vmatpush1.msra.mxu0 0.0
      %446 = vmatprep.subr.mxu0 0.0
      %447 = vmatpush1.msra.mxu0 0.0
      %448 = vmatprep.subr.mxu0 0.0
      %449 = vmatpush1.msra.mxu0 0.0
      %450 = vmatprep.subr.mxu0 0.0
      %451 = vmatpush1.msra.mxu0 0.0
      %452 = vmatprep.subr.mxu0 0.0
      %453 = vmatpush1.msra.mxu0 0.0
      %454 = vmatprep.subr.mxu0 0.0
      %455 = vmatpush1.msra.mxu0 0.0
      %456 = vmatprep.subr.mxu0 0.0
      %457 = vmatpush1.msra.mxu0 0.0
      %458 = vmatprep.subr.mxu0 0.0
      %459 = vmatpush1.msra.mxu0 0.0
      %460 = vmatprep.subr.mxu0 0.0
      %461 = vmatpush1.msra.mxu0 0.0
      %462 = vmatprep.subr.mxu0 0.0
      %463 = vmatpush1.msra.mxu0 0.0
      %464 = vmatprep.subr.mxu0 0.0
      %465 = vmatpush1.msra.mxu0 0.0
      %466 = vmatprep.subr.mxu0 0.0
      %467 = vmatpush1.msra.mxu0 0.0
      %468 = vmatprep.subr.mxu0 0.0
      %469 = vmatpush1.msra.mxu0 0.0
      %470 = vmatprep.subr.mxu0 0.0
      %471 = vmatpush1.msra.mxu0 0.0
      %472 = vmatprep.subr.mxu0 0.0
      %473 = vmatpush1.msra.mxu0 0.0
      %474 = vmatprep.subr.mxu0 0.0
      %475 = vmatpush1.msra.mxu0 0.0
      %476 = vmatprep.subr.mxu0 0.0
      %477 = vmatpush1.msra.mxu0 0.0
      %478 = vmatprep.subr.mxu0 0.0
      %479 = vmatpush1.msra.mxu0 0.0
      %480 = vmatprep.subr.mxu0 0.0
      %481 = vmatpush1.msra.mxu0 0.0
      %482 = vmatprep.subr.mxu0 0.0
      %483 = vmatpush1.msra.mxu0 0.0
      %484 = vmatprep.subr.mxu0 0.0
      %485 = vmatpush1.msra.mxu0 0.0
      %486 = vmatprep.subr.mxu0 0.0
      %487 = vmatpush1.msra.mxu0 0.0
      %488 = vmatprep.subr.mxu0 0.0
      %489 = vmatpush1.msra.mxu0 0.0
      %490 = vmatprep.subr.mxu0 0.0
      %491 = vmatpush1.msra.mxu0 0.0
      %492 = vmatprep.subr.mxu0 0.0
      %493 = vmatpush1.msra.mxu0 0.0
      %494 = vmatprep.subr.mxu0 0.0
      %495 = vmatpush1.msra.mxu0 0.0
      %496 = vmatprep.subr.mxu0 0.0
      %497 = vmatpush1.msra.mxu0 0.0
      %498 = vmatprep.mubr.f32.mxu0 0.0
      %499 = vmatmul.mubr.f32.gmra.mrb[0].mxu0 %v432
      %v500 = vpop.f32.mrb[0].mxu0
      %v501 = vadd.f32 %v428, %v500
      %v502 = vpop.f32.mrb[0].mxu0
      %503 = vdwg.mxu0
      %v504 = vld [vmem:[%s5] sm:$0xff]
      %v505 = vld [vmem:[%s5 + $0x8] sm:$0xff]
      %v506 = vld [vmem:[%s5 + $0x10] sm:$0xff]
      %v507 = vld [vmem:[%s5 + $0x18] sm:$0xff]
      %v508 = vld [vmem:[%s6] sm:$0x1]
      %v510 = vlaneseq
      %v511 = vshrl.u32 %v510, 7
      %v512 = vsub.s32 0, %v511
      %v513 = vrot.slane %v508, %v512
      %v516 = vsel %vm430, %v417, 0
      %518 = vmatprep.subr.mxu0 0.0
      %519 = vmatpush1.msra.mxu0 %v504
      %520 = vmatprep.subr.mxu0 0.0
      %521 = vmatpush1.msra.mxu0 %v505
      %522 = vmatprep.subr.mxu0 0.0
      %523 = vmatpush1.msra.mxu0 %v506
      %524 = vmatprep.subr.mxu0 0.0
      %525 = vmatpush1.msra.mxu0 %v507
      %526 = vmatprep.subr.mxu0 0.0
      %527 = vmatpush1.msra.mxu0 0.0
      %528 = vmatprep.subr.mxu0 0.0
      %529 = vmatpush1.msra.mxu0 0.0
      %530 = vmatprep.subr.mxu0 0.0
      %531 = vmatpush1.msra.mxu0 0.0
      %532 = vmatprep.subr.mxu0 0.0
      %533 = vmatpush1.msra.mxu0 0.0
      %534 = vmatprep.subr.mxu0 0.0
      %535 = vmatpush1.msra.mxu0 0.0
      %536 = vmatprep.subr.mxu0 0.0
      %537 = vmatpush1.msra.mxu0 0.0
      %538 = vmatprep.subr.mxu0 0.0
      %539 = vmatpush1.msra.mxu0 0.0
      %540 = vmatprep.subr.mxu0 0.0
      %541 = vmatpush1.msra.mxu0 0.0
      %542 = vmatprep.subr.mxu0 0.0
      %543 = vmatpush1.msra.mxu0 0.0
      %544 = vmatprep.subr.mxu0 0.0
      %545 = vmatpush1.msra.mxu0 0.0
      %546 = vmatprep.subr.mxu0 0.0
      %547 = vmatpush1.msra.mxu0 0.0
      %548 = vmatprep.subr.mxu0 0.0
      %549 = vmatpush1.msra.mxu0 0.0
      %550 = vmatprep.subr.mxu0 0.0
      %551 = vmatpush1.msra.mxu0 0.0
      %552 = vmatprep.subr.mxu0 0.0
      %553 = vmatpush1.msra.mxu0 0.0
      %554 = vmatprep.subr.mxu0 0.0
      %555 = vmatpush1.msra.mxu0 0.0
      %556 = vmatprep.subr.mxu0 0.0
      %557 = vmatpush1.msra.mxu0 0.0
      %558 = vmatprep.subr.mxu0 0.0
      %559 = vmatpush1.msra.mxu0 0.0
      %560 = vmatprep.subr.mxu0 0.0
      %561 = vmatpush1.msra.mxu0 0.0
      %562 = vmatprep.subr.mxu0 0.0
      %563 = vmatpush1.msra.mxu0 0.0
      %564 = vmatprep.subr.mxu0 0.0
      %565 = vmatpush1.msra.mxu0 0.0
      %566 = vmatprep.subr.mxu0 0.0
      %567 = vmatpush1.msra.mxu0 0.0
      %568 = vmatprep.subr.mxu0 0.0
      %569 = vmatpush1.msra.mxu0 0.0
      %570 = vmatprep.subr.mxu0 0.0
      %571 = vmatpush1.msra.mxu0 0.0
      %572 = vmatprep.subr.mxu0 0.0
      %573 = vmatpush1.msra.mxu0 0.0
      %574 = vmatprep.subr.mxu0 0.0
      %575 = vmatpush1.msra.mxu0 0.0
      %576 = vmatprep.subr.mxu0 0.0
      %577 = vmatpush1.msra.mxu0 0.0
      %578 = vmatprep.subr.mxu0 0.0
      %579 = vmatpush1.msra.mxu0 0.0
      %580 = vmatprep.subr.mxu0 0.0
      %581 = vmatpush1.msra.mxu0 0.0
      %582 = vmatprep.mubr.f32.mxu0 0.0
      %583 = vmatmul.mubr.f32.gmra.mrb[0].mxu0 %v516
      %v584 = vpop.f32.mrb[0].mxu0
      %v585 = vadd.f32 %v513, %v584
      %v586 = vpop.f32.mrb[0].mxu0
      %587 = vdwg.mxu0
      %vm588 = vcmask 64512
      %v590 = vsel %vm588, %v501, 0
      %v593 = vsel %vm588, %v585, 0
      %595 = vmatprep.subr.mxu0 0.0
      %596 = vmatpush1.xpose.msra.mxu0 %v593
      %597 = vmatprep.subr.mxu0 0.0
      %598 = vmatpush1.xpose.msra.mxu0 0.0
      %599 = vmatprep.subr.mxu0 0.0
      %600 = vmatpush1.xpose.msra.mxu0 0.0
      %601 = vmatprep.subr.mxu0 0.0
      %602 = vmatpush1.xpose.msra.mxu0 0.0
      %603 = vmatprep.subr.mxu0 0.0
      %604 = vmatpush1.xpose.msra.mxu0 0.0
      %605 = vmatprep.subr.mxu0 0.0
      %606 = vmatpush1.xpose.msra.mxu0 0.0
      %607 = vmatprep.subr.mxu0 0.0
      %608 = vmatpush1.xpose.msra.mxu0 0.0
      %609 = vmatprep.subr.mxu0 0.0
      %610 = vmatpush1.xpose.msra.mxu0 0.0
      %611 = vmatprep.subr.mxu0 0.0
      %612 = vmatpush1.xpose.msra.mxu0 0.0
      %613 = vmatprep.subr.mxu0 0.0
      %614 = vmatpush1.xpose.msra.mxu0 0.0
      %615 = vmatprep.subr.mxu0 0.0
      %616 = vmatpush1.xpose.msra.mxu0 0.0
      %617 = vmatprep.subr.mxu0 0.0
      %618 = vmatpush1.xpose.msra.mxu0 0.0
      %619 = vmatprep.subr.mxu0 0.0
      %620 = vmatpush1.xpose.msra.mxu0 0.0
      %621 = vmatprep.subr.mxu0 0.0
      %622 = vmatpush1.xpose.msra.mxu0 0.0
      %623 = vmatprep.subr.mxu0 0.0
      %624 = vmatpush1.xpose.msra.mxu0 0.0
      %625 = vmatprep.subr.mxu0 0.0
      %626 = vmatpush1.xpose.msra.mxu0 0.0
      %627 = vmatprep.subr.mxu0 0.0
      %628 = vmatpush1.xpose.msra.mxu0 0.0
      %629 = vmatprep.subr.mxu0 0.0
      %630 = vmatpush1.xpose.msra.mxu0 0.0
      %631 = vmatprep.subr.mxu0 0.0
      %632 = vmatpush1.xpose.msra.mxu0 0.0
      %633 = vmatprep.subr.mxu0 0.0
      %634 = vmatpush1.xpose.msra.mxu0 0.0
      %635 = vmatprep.subr.mxu0 0.0
      %636 = vmatpush1.xpose.msra.mxu0 0.0
      %637 = vmatprep.subr.mxu0 0.0
      %638 = vmatpush1.xpose.msra.mxu0 0.0
      %639 = vmatprep.subr.mxu0 0.0
      %640 = vmatpush1.xpose.msra.mxu0 0.0
      %641 = vmatprep.subr.mxu0 0.0
      %642 = vmatpush1.xpose.msra.mxu0 0.0
      %643 = vmatprep.subr.mxu0 0.0
      %644 = vmatpush1.xpose.msra.mxu0 0.0
      %645 = vmatprep.subr.mxu0 0.0
      %646 = vmatpush1.xpose.msra.mxu0 0.0
      %647 = vmatprep.subr.mxu0 0.0
      %648 = vmatpush1.xpose.msra.mxu0 0.0
      %649 = vmatprep.subr.mxu0 0.0
      %650 = vmatpush1.xpose.msra.mxu0 0.0
      %651 = vmatprep.subr.mxu0 0.0
      %652 = vmatpush1.xpose.msra.mxu0 0.0
      %653 = vmatprep.subr.mxu0 0.0
      %654 = vmatpush1.xpose.msra.mxu0 0.0
      %655 = vmatprep.subr.mxu0 0.0
      %656 = vmatpush1.xpose.msra.mxu0 0.0
      %657 = vmatprep.subr.mxu0 0.0
      %658 = vmatpush1.xpose.msra.mxu0 0.0
      %659 = vmatprep.mubr.f32.mxu0 0.0
      %660 = vmatmul.mubr.f32.gmra.mrb[0].mxu0 %v590
      %v661 = vpop.f32.mrb[0].mxu0
      %v662 = vadd.f32 0.0, %v661
      %v663 = vpop.f32.mrb[0].mxu0
      %664 = vdwg.mxu0
      %v665 = vmul.f32 %v662, 0.35355338
      %v666 = vadd.f32 %v665, %v418
      %v667 = vsel %vm588, %v666, -inf
      %668 = vmax.xlane.f32.xlu0 %v667
      %v669 = vpop.xlane.xlu0 %668
      %v670 = vsub.f32 %v666, %v669
      %v671 = vmul.f32 %v670, 1.442695
      %v672 = vpow.pop %v671
      %v673 = vsel %vm588, %v672, 0.0
      %674 = vadd.xlane.f32.xlu0 %v673
      %v675 = vpop.xlane.xlu0 %674
      %v676 = vrcp.pop %v675
      %v677 = vmul.f32 %v672, %v676
      %678 = vrot.lane.b32.xlu0 %v585, 96
      %v679 = vpop.permute.xlu0 %678
      %v682 = vsel %vm588, %v677, 0
      %684 = vmatprep.subr.mxu0 0.0
      %685 = vmatpush1.msra.mxu0 %v679
      %686 = vmatprep.subr.mxu0 0.0
      %687 = vmatpush1.msra.mxu0 0.0
      %688 = vmatprep.subr.mxu0 0.0
      %689 = vmatpush1.msra.mxu0 0.0
      %690 = vmatprep.subr.mxu0 0.0
      %691 = vmatpush1.msra.mxu0 0.0
      %692 = vmatprep.subr.mxu0 0.0
      %693 = vmatpush1.msra.mxu0 0.0
      %694 = vmatprep.subr.mxu0 0.0
      %695 = vmatpush1.msra.mxu0 0.0
      %696 = vmatprep.subr.mxu0 0.0
      %697 = vmatpush1.msra.mxu0 0.0
      %698 = vmatprep.subr.mxu0 0.0
      %699 = vmatpush1.msra.mxu0 0.0
      %700 = vmatprep.subr.mxu0 0.0
      %701 = vmatpush1.msra.mxu0 0.0
      %702 = vmatprep.subr.mxu0 0.0
      %703 = vmatpush1.msra.mxu0 0.0
      %704 = vmatprep.subr.mxu0 0.0
      %705 = vmatpush1.msra.mxu0 0.0
      %706 = vmatprep.subr.mxu0 0.0
      %707 = vmatpush1.msra.mxu0 0.0
      %708 = vmatprep.subr.mxu0 0.0
      %709 = vmatpush1.msra.mxu0 0.0
      %710 = vmatprep.subr.mxu0 0.0
      %711 = vmatpush1.msra.mxu0 0.0
      %712 = vmatprep.subr.mxu0 0.0
      %713 = vmatpush1.msra.mxu0 0.0
      %714 = vmatprep.subr.mxu0 0.0
      %715 = vmatpush1.msra.mxu0 0.0
      %716 = vmatprep.subr.mxu0 0.0
      %717 = vmatpush1.msra.mxu0 0.0
      %718 = vmatprep.subr.mxu0 0.0
      %719 = vmatpush1.msra.mxu0 0.0
      %720 = vmatprep.subr.mxu0 0.0
      %721 = vmatpush1.msra.mxu0 0.0
      %722 = vmatprep.subr.mxu0 0.0
      %723 = vmatpush1.msra.mxu0 0.0
      %724 = vmatprep.subr.mxu0 0.0
      %725 = vmatpush1.msra.mxu0 0.0
      %726 = vmatprep.subr.mxu0 0.0
      %727 = vmatpush1.msra.mxu0 0.0
      %728 = vmatprep.subr.mxu0 0.0
      %729 = vmatpush1.msra.mxu0 0.0
      %730 = vmatprep.subr.mxu0 0.0
      %731 = vmatpush1.msra.mxu0 0.0
      %732 = vmatprep.subr.mxu0 0.0
      %733 = vmatpush1.msra.mxu0 0.0
      %734 = vmatprep.subr.mxu0 0.0
      %735 = vmatpush1.msra.mxu0 0.0
      %736 = vmatprep.subr.mxu0 0.0
      %737 = vmatpush1.msra.mxu0 0.0
      %738 = vmatprep.subr.mxu0 0.0
      %739 = vmatpush1.msra.mxu0 0.0
      %740 = vmatprep.subr.mxu0 0.0
      %741 = vmatpush1.msra.mxu0 0.0
      %742 = vmatprep.subr.mxu0 0.0
      %743 = vmatpush1.msra.mxu0 0.0
      %744 = vmatprep.subr.mxu0 0.0
      %745 = vmatpush1.msra.mxu0 0.0
      %746 = vmatprep.subr.mxu0 0.0
      %747 = vmatpush1.msra.mxu0 0.0
      %748 = vmatprep.mubr.f32.mxu0 0.0
      %749 = vmatmul.mubr.f32.gmra.mrb[0].mxu0 %v682
      %v750 = vpop.f32.mrb[0].mxu0
      %v751 = vadd.f32 0.0, %v750
      %v752 = vpop.f32.mrb[0].mxu0
      %753 = vdwg.mxu0
      %v754 = vld [vmem:[%s7] sm:$0xff]
      %755 = vrot.lane.b32.xlu0 %v501, 120
      %v756 = vpop.permute.xlu0 %755
      %757 = vrot.lane.b32.xlu0 %v585, 120
      %v758 = vpop.permute.xlu0 %757
      %v759 = vsel %vm588, %v756, 0
      %v761 = vsel %vm588, %v758, 0
      %763 = vmatprep.subr.mxu0 0.0
      %764 = vmatpush1.xpose.msra.mxu0 %v761
      %765 = vmatprep.subr.mxu0 0.0
      %766 = vmatpush1.xpose.msra.mxu0 0.0
      %767 = vmatprep.subr.mxu0 0.0
      %768 = vmatpush1.xpose.msra.mxu0 0.0
      %769 = vmatprep.subr.mxu0 0.0
      %770 = vmatpush1.xpose.msra.mxu0 0.0
      %771 = vmatprep.subr.mxu0 0.0
      %772 = vmatpush1.xpose.msra.mxu0 0.0
      %773 = vmatprep.subr.mxu0 0.0
      %774 = vmatpush1.xpose.msra.mxu0 0.0
      %775 = vmatprep.subr.mxu0 0.0
      %776 = vmatpush1.xpose.msra.mxu0 0.0
      %777 = vmatprep.subr.mxu0 0.0
      %778 = vmatpush1.xpose.msra.mxu0 0.0
      %779 = vmatprep.subr.mxu0 0.0
      %780 = vmatpush1.xpose.msra.mxu0 0.0
      %781 = vmatprep.subr.mxu0 0.0
      %782 = vmatpush1.xpose.msra.mxu0 0.0
      %783 = vmatprep.subr.mxu0 0.0
      %784 = vmatpush1.xpose.msra.mxu0 0.0
      %785 = vmatprep.subr.mxu0 0.0
      %786 = vmatpush1.xpose.msra.mxu0 0.0
      %787 = vmatprep.subr.mxu0 0.0
      %788 = vmatpush1.xpose.msra.mxu0 0.0
      %789 = vmatprep.subr.mxu0 0.0
      %790 = vmatpush1.xpose.msra.mxu0 0.0
      %791 = vmatprep.subr.mxu0 0.0
      %792 = vmatpush1.xpose.msra.mxu0 0.0
      %793 = vmatprep.subr.mxu0 0.0
      %794 = vmatpush1.xpose.msra.mxu0 0.0
      %795 = vmatprep.subr.mxu0 0.0
      %796 = vmatpush1.xpose.msra.mxu0 0.0
      %797 = vmatprep.subr.mxu0 0.0
      %798 = vmatpush1.xpose.msra.mxu0 0.0
      %799 = vmatprep.subr.mxu0 0.0
      %800 = vmatpush1.xpose.msra.mxu0 0.0
      %801 = vmatprep.subr.mxu0 0.0
      %802 = vmatpush1.xpose.msra.mxu0 0.0
      %803 = vmatprep.subr.mxu0 0.0
      %804 = vmatpush1.xpose.msra.mxu0 0.0
      %805 = vmatprep.subr.mxu0 0.0
      %806 = vmatpush1.xpose.msra.mxu0 0.0
      %807 = vmatprep.subr.mxu0 0.0
      %808 = vmatpush1.xpose.msra.mxu0 0.0
      %809 = vmatprep.subr.mxu0 0.0
      %810 = vmatpush1.xpose.msra.mxu0 0.0
      %811 = vmatprep.subr.mxu0 0.0
      %812 = vmatpush1.xpose.msra.mxu0 0.0
      %813 = vmatprep.subr.mxu0 0.0
      %814 = vmatpush1.xpose.msra.mxu0 0.0
      %815 = vmatprep.subr.mxu0 0.0
      %816 = vmatpush1.xpose.msra.mxu0 0.0
      %817 = vmatprep.subr.mxu0 0.0
      %818 = vmatpush1.xpose.msra.mxu0 0.0
      %819 = vmatprep.subr.mxu0 0.0
      %820 = vmatpush1.xpose.msra.mxu0 0.0
      %821 = vmatprep.subr.mxu0 0.0
      %822 = vmatpush1.xpose.msra.mxu0 0.0
      %823 = vmatprep.subr.mxu0 0.0
      %824 = vmatpush1.xpose.msra.mxu0 0.0
      %825 = vmatprep.subr.mxu0 0.0
      %826 = vmatpush1.xpose.msra.mxu0 0.0
      %827 = vmatprep.mubr.f32.mxu0 0.0
      %828 = vmatmul.mubr.f32.gmra.mrb[0].mxu0 %v759
      %v829 = vpop.f32.mrb[0].mxu0
      %v830 = vadd.f32 0.0, %v829
      %v831 = vpop.f32.mrb[0].mxu0
      %832 = vdwg.mxu0
      %v833 = vmul.f32 %v830, 0.35355338
      %v834 = vadd.f32 %v833, %v418
      %v835 = vsel %vm588, %v834, -inf
      %836 = vmax.xlane.f32.xlu0 %v835
      %v837 = vpop.xlane.xlu0 %836
      %v838 = vsub.f32 %v834, %v837
      %v839 = vmul.f32 %v838, 1.442695
      %v840 = vpow.pop %v839
      %v841 = vsel %vm588, %v840, 0.0
      %842 = vadd.xlane.f32.xlu0 %v841
      %v843 = vpop.xlane.xlu0 %842
      %v844 = vrcp.pop %v843
      %v845 = vmul.f32 %v840, %v844
      %846 = vrot.lane.b32.xlu0 %v585, 88
      %v847 = vpop.permute.xlu0 %846
      %v850 = vsel %vm588, %v845, 0
      %852 = vmatprep.subr.mxu0 0.0
      %853 = vmatpush1.msra.mxu0 %v847
      %854 = vmatprep.subr.mxu0 0.0
      %855 = vmatpush1.msra.mxu0 0.0
      %856 = vmatprep.subr.mxu0 0.0
      %857 = vmatpush1.msra.mxu0 0.0
      %858 = vmatprep.subr.mxu0 0.0
      %859 = vmatpush1.msra.mxu0 0.0
      %860 = vmatprep.subr.mxu0 0.0
      %861 = vmatpush1.msra.mxu0 0.0
      %862 = vmatprep.subr.mxu0 0.0
      %863 = vmatpush1.msra.mxu0 0.0
      %864 = vmatprep.subr.mxu0 0.0
      %865 = vmatpush1.msra.mxu0 0.0
      %866 = vmatprep.subr.mxu0 0.0
      %867 = vmatpush1.msra.mxu0 0.0
      %868 = vmatprep.subr.mxu0 0.0
      %869 = vmatpush1.msra.mxu0 0.0
      %870 = vmatprep.subr.mxu0 0.0
      %871 = vmatpush1.msra.mxu0 0.0
      %872 = vmatprep.subr.mxu0 0.0
      %873 = vmatpush1.msra.mxu0 0.0
      %874 = vmatprep.subr.mxu0 0.0
      %875 = vmatpush1.msra.mxu0 0.0
      %876 = vmatprep.subr.mxu0 0.0
      %877 = vmatpush1.msra.mxu0 0.0
      %878 = vmatprep.subr.mxu0 0.0
      %879 = vmatpush1.msra.mxu0 0.0
      %880 = vmatprep.subr.mxu0 0.0
      %881 = vmatpush1.msra.mxu0 0.0
      %882 = vmatprep.subr.mxu0 0.0
      %883 = vmatpush1.msra.mxu0 0.0
      %884 = vmatprep.subr.mxu0 0.0
      %885 = vmatpush1.msra.mxu0 0.0
      %886 = vmatprep.subr.mxu0 0.0
      %887 = vmatpush1.msra.mxu0 0.0
      %888 = vmatprep.subr.mxu0 0.0
      %889 = vmatpush1.msra.mxu0 0.0
      %890 = vmatprep.subr.mxu0 0.0
      %891 = vmatpush1.msra.mxu0 0.0
      %892 = vmatprep.subr.mxu0 0.0
      %893 = vmatpush1.msra.mxu0 0.0
      %894 = vmatprep.subr.mxu0 0.0
      %895 = vmatpush1.msra.mxu0 0.0
      %896 = vmatprep.subr.mxu0 0.0
      %897 = vmatpush1.msra.mxu0 0.0
      %898 = vmatprep.subr.mxu0 0.0
      %899 = vmatpush1.msra.mxu0 0.0
      %900 = vmatprep.subr.mxu0 0.0
      %901 = vmatpush1.msra.mxu0 0.0
      %902 = vmatprep.subr.mxu0 0.0
      %903 = vmatpush1.msra.mxu0 0.0
      %904 = vmatprep.subr.mxu0 0.0
      %905 = vmatpush1.msra.mxu0 0.0
      %906 = vmatprep.subr.mxu0 0.0
      %907 = vmatpush1.msra.mxu0 0.0
      %908 = vmatprep.subr.mxu0 0.0
      %909 = vmatpush1.msra.mxu0 0.0
      %910 = vmatprep.subr.mxu0 0.0
      %911 = vmatpush1.msra.mxu0 0.0
      %912 = vmatprep.subr.mxu0 0.0
      %913 = vmatpush1.msra.mxu0 0.0
      %914 = vmatprep.subr.mxu0 0.0
      %915 = vmatpush1.msra.mxu0 0.0
      %916 = vmatprep.mubr.f32.mxu0 0.0
      %917 = vmatmul.mubr.f32.gmra.mrb[0].mxu0 %v850
      %v918 = vpop.f32.mrb[0].mxu0
      %v919 = vadd.f32 0.0, %v918
      %v920 = vpop.f32.mrb[0].mxu0
      %921 = vdwg.mxu0
      %v922 = vld [vmem:[%s7 + $0x8] sm:$0xff]
      %v924 = vsel %vm588, %v919, 0
      %926 = vmatprep.subr.mxu0 0.0
      %927 = vmatpush1.msra.mxu0 %v922
      %928 = vmatprep.subr.mxu0 0.0
      %929 = vmatpush1.msra.mxu0 0.0
      %930 = vmatprep.subr.mxu0 0.0
      %931 = vmatpush1.msra.mxu0 0.0
      %932 = vmatprep.subr.mxu0 0.0
      %933 = vmatpush1.msra.mxu0 0.0
      %934 = vmatprep.subr.mxu0 0.0
      %935 = vmatpush1.msra.mxu0 0.0
      %936 = vmatprep.subr.mxu0 0.0
      %937 = vmatpush1.msra.mxu0 0.0
      %938 = vmatprep.subr.mxu0 0.0
      %939 = vmatpush1.msra.mxu0 0.0
      %940 = vmatprep.subr.mxu0 0.0
      %941 = vmatpush1.msra.mxu0 0.0
      %942 = vmatprep.subr.mxu0 0.0
      %943 = vmatpush1.msra.mxu0 0.0
      %944 = vmatprep.subr.mxu0 0.0
      %945 = vmatpush1.msra.mxu0 0.0
      %946 = vmatprep.subr.mxu0 0.0
      %947 = vmatpush1.msra.mxu0 0.0
      %948 = vmatprep.subr.mxu0 0.0
      %949 = vmatpush1.msra.mxu0 0.0
      %950 = vmatprep.subr.mxu0 0.0
      %951 = vmatpush1.msra.mxu0 0.0
      %952 = vmatprep.subr.mxu0 0.0
      %953 = vmatpush1.msra.mxu0 0.0
      %954 = vmatprep.subr.mxu0 0.0
      %955 = vmatpush1.msra.mxu0 0.0
      %956 = vmatprep.subr.mxu0 0.0
      %957 = vmatpush1.msra.mxu0 0.0
      %958 = vmatprep.subr.mxu0 0.0
      %959 = vmatpush1.msra.mxu0 0.0
      %960 = vmatprep.subr.mxu0 0.0
      %961 = vmatpush1.msra.mxu0 0.0
      %962 = vmatprep.subr.mxu0 0.0
      %963 = vmatpush1.msra.mxu0 0.0
      %964 = vmatprep.subr.mxu0 0.0
      %965 = vmatpush1.msra.mxu0 0.0
      %966 = vmatprep.subr.mxu0 0.0
      %967 = vmatpush1.msra.mxu0 0.0
      %968 = vmatprep.subr.mxu0 0.0
      %969 = vmatpush1.msra.mxu0 0.0
      %970 = vmatprep.subr.mxu0 0.0
      %971 = vmatpush1.msra.mxu0 0.0
      %972 = vmatprep.subr.mxu0 0.0
      %973 = vmatpush1.msra.mxu0 0.0
      %974 = vmatprep.subr.mxu0 0.0
      %975 = vmatpush1.msra.mxu0 0.0
      %976 = vmatprep.subr.mxu0 0.0
      %977 = vmatpush1.msra.mxu0 0.0
      %978 = vmatprep.subr.mxu0 0.0
      %979 = vmatpush1.msra.mxu0 0.0
      %980 = vmatprep.subr.mxu0 0.0
      %981 = vmatpush1.msra.mxu0 0.0
      %982 = vmatprep.subr.mxu0 0.0
      %983 = vmatpush1.msra.mxu0 0.0
      %984 = vmatprep.subr.mxu0 0.0
      %985 = vmatpush1.msra.mxu0 0.0
      %986 = vmatprep.subr.mxu0 0.0
      %987 = vmatpush1.msra.mxu0 0.0
      %988 = vmatprep.subr.mxu0 0.0
      %989 = vmatpush1.msra.mxu0 0.0
      %990 = vmatprep.mubr.f32.mxu0 0.0
      %991 = vmatmul.mubr.f32.gmra.mrb[0].mxu0 %v924
      %v992 = vpop.f32.mrb[0].mxu0
      %v993 = vadd.f32 0.0, %v992
      %v994 = vpop.f32.mrb[0].mxu0
      %995 = vdwg.mxu0
      %v997 = vsel %vm588, %v751, 0
      %999 = vmatprep.subr.mxu0 0.0
      %1000 = vmatpush1.msra.mxu0 %v754
      %1001 = vmatprep.subr.mxu0 0.0
      %1002 = vmatpush1.msra.mxu0 0.0
      %1003 = vmatprep.subr.mxu0 0.0
      %1004 = vmatpush1.msra.mxu0 0.0
      %1005 = vmatprep.subr.mxu0 0.0
      %1006 = vmatpush1.msra.mxu0 0.0
      %1007 = vmatprep.subr.mxu0 0.0
      %1008 = vmatpush1.msra.mxu0 0.0
      %1009 = vmatprep.subr.mxu0 0.0
      %1010 = vmatpush1.msra.mxu0 0.0
      %1011 = vmatprep.subr.mxu0 0.0
      %1012 = vmatpush1.msra.mxu0 0.0
      %1013 = vmatprep.subr.mxu0 0.0
      %1014 = vmatpush1.msra.mxu0 0.0
      %1015 = vmatprep.subr.mxu0 0.0
      %1016 = vmatpush1.msra.mxu0 0.0
      %1017 = vmatprep.subr.mxu0 0.0
      %1018 = vmatpush1.msra.mxu0 0.0
      %1019 = vmatprep.subr.mxu0 0.0
      %1020 = vmatpush1.msra.mxu0 0.0
      %1021 = vmatprep.subr.mxu0 0.0
      %1022 = vmatpush1.msra.mxu0 0.0
      %1023 = vmatprep.subr.mxu0 0.0
      %1024 = vmatpush1.msra.mxu0 0.0
      %1025 = vmatprep.subr.mxu0 0.0
      %1026 = vmatpush1.msra.mxu0 0.0
      %1027 = vmatprep.subr.mxu0 0.0
      %1028 = vmatpush1.msra.mxu0 0.0
      %1029 = vmatprep.subr.mxu0 0.0
      %1030 = vmatpush1.msra.mxu0 0.0
      %1031 = vmatprep.subr.mxu0 0.0
      %1032 = vmatpush1.msra.mxu0 0.0
      %1033 = vmatprep.subr.mxu0 0.0
      %1034 = vmatpush1.msra.mxu0 0.0
      %1035 = vmatprep.subr.mxu0 0.0
      %1036 = vmatpush1.msra.mxu0 0.0
      %1037 = vmatprep.subr.mxu0 0.0
      %1038 = vmatpush1.msra.mxu0 0.0
      %1039 = vmatprep.subr.mxu0 0.0
      %1040 = vmatpush1.msra.mxu0 0.0
      %1041 = vmatprep.subr.mxu0 0.0
      %1042 = vmatpush1.msra.mxu0 0.0
      %1043 = vmatprep.subr.mxu0 0.0
      %1044 = vmatpush1.msra.mxu0 0.0
      %1045 = vmatprep.subr.mxu0 0.0
      %1046 = vmatpush1.msra.mxu0 0.0
      %1047 = vmatprep.subr.mxu0 0.0
      %1048 = vmatpush1.msra.mxu0 0.0
      %1049 = vmatprep.subr.mxu0 0.0
      %1050 = vmatpush1.msra.mxu0 0.0
      %1051 = vmatprep.subr.mxu0 0.0
      %1052 = vmatpush1.msra.mxu0 0.0
      %1053 = vmatprep.subr.mxu0 0.0
      %1054 = vmatpush1.msra.mxu0 0.0
      %1055 = vmatprep.subr.mxu0 0.0
      %1056 = vmatpush1.msra.mxu0 0.0
      %1057 = vmatprep.subr.mxu0 0.0
      %1058 = vmatpush1.msra.mxu0 0.0
      %1059 = vmatprep.subr.mxu0 0.0
      %1060 = vmatpush1.msra.mxu0 0.0
      %1061 = vmatprep.subr.mxu0 0.0
      %1062 = vmatpush1.msra.mxu0 0.0
      %1063 = vmatprep.mubr.f32.mxu0 0.0
      %1064 = vmatmul.mubr.f32.gmra.mrb[0].mxu0 %v997
      %v1065 = vpop.f32.mrb[0].mxu0
      %v1066 = vadd.f32 %v993, %v1065
      %v1067 = vpop.f32.mrb[0].mxu0
      %1068 = vdwg.mxu0
      %1069 = vrot.lane.b32.xlu0 %v501, 112
      %v1070 = vpop.permute.xlu0 %1069
      %1071 = vrot.lane.b32.xlu0 %v585, 112
      %v1072 = vpop.permute.xlu0 %1071
      %v1073 = vsel %vm588, %v1070, 0
      %v1075 = vsel %vm588, %v1072, 0
      %1077 = vmatprep.subr.mxu0 0.0
      %1078 = vmatpush1.xpose.msra.mxu0 %v1075
      %1079 = vmatprep.subr.mxu0 0.0
      %1080 = vmatpush1.xpose.msra.mxu0 0.0
      %1081 = vmatprep.subr.mxu0 0.0
      %1082 = vmatpush1.xpose.msra.mxu0 0.0
      %1083 = vmatprep.subr.mxu0 0.0
      %1084 = vmatpush1.xpose.msra.mxu0 0.0
      %1085 = vmatprep.subr.mxu0 0.0
      %1086 = vmatpush1.xpose.msra.mxu0 0.0
      %1087 = vmatprep.subr.mxu0 0.0
      %1088 = vmatpush1.xpose.msra.mxu0 0.0
      %1089 = vmatprep.subr.mxu0 0.0
      %1090 = vmatpush1.xpose.msra.mxu0 0.0
      %1091 = vmatprep.subr.mxu0 0.0
      %1092 = vmatpush1.xpose.msra.mxu0 0.0
      %1093 = vmatprep.subr.mxu0 0.0
      %1094 = vmatpush1.xpose.msra.mxu0 0.0
      %1095 = vmatprep.subr.mxu0 0.0
      %1096 = vmatpush1.xpose.msra.mxu0 0.0
      %1097 = vmatprep.subr.mxu0 0.0
      %1098 = vmatpush1.xpose.msra.mxu0 0.0
      %1099 = vmatprep.subr.mxu0 0.0
      %1100 = vmatpush1.xpose.msra.mxu0 0.0
      %1101 = vmatprep.subr.mxu0 0.0
      %1102 = vmatpush1.xpose.msra.mxu0 0.0
      %1103 = vmatprep.subr.mxu0 0.0
      %1104 = vmatpush1.xpose.msra.mxu0 0.0
      %1105 = vmatprep.subr.mxu0 0.0
      %1106 = vmatpush1.xpose.msra.mxu0 0.0
      %1107 = vmatprep.subr.mxu0 0.0
      %1108 = vmatpush1.xpose.msra.mxu0 0.0
      %1109 = vmatprep.subr.mxu0 0.0
      %1110 = vmatpush1.xpose.msra.mxu0 0.0
      %1111 = vmatprep.subr.mxu0 0.0
      %1112 = vmatpush1.xpose.msra.mxu0 0.0
      %1113 = vmatprep.subr.mxu0 0.0
      %1114 = vmatpush1.xpose.msra.mxu0 0.0
      %1115 = vmatprep.subr.mxu0 0.0
      %1116 = vmatpush1.xpose.msra.mxu0 0.0
      %1117 = vmatprep.subr.mxu0 0.0
      %1118 = vmatpush1.xpose.msra.mxu0 0.0
      %1119 = vmatprep.subr.mxu0 0.0
      %1120 = vmatpush1.xpose.msra.mxu0 0.0
      %1121 = vmatprep.subr.mxu0 0.0
      %1122 = vmatpush1.xpose.msra.mxu0 0.0
      %1123 = vmatprep.subr.mxu0 0.0
      %1124 = vmatpush1.xpose.msra.mxu0 0.0
      %1125 = vmatprep.subr.mxu0 0.0
      %1126 = vmatpush1.xpose.msra.mxu0 0.0
      %1127 = vmatprep.subr.mxu0 0.0
      %1128 = vmatpush1.xpose.msra.mxu0 0.0
      %1129 = vmatprep.subr.mxu0 0.0
      %1130 = vmatpush1.xpose.msra.mxu0 0.0
      %1131 = vmatprep.subr.mxu0 0.0
      %1132 = vmatpush1.xpose.msra.mxu0 0.0
      %1133 = vmatprep.subr.mxu0 0.0
      %1134 = vmatpush1.xpose.msra.mxu0 0.0
      %1135 = vmatprep.subr.mxu0 0.0
      %1136 = vmatpush1.xpose.msra.mxu0 0.0
      %1137 = vmatprep.subr.mxu0 0.0
      %1138 = vmatpush1.xpose.msra.mxu0 0.0
      %1139 = vmatprep.subr.mxu0 0.0
      %1140 = vmatpush1.xpose.msra.mxu0 0.0
      %1141 = vmatprep.mubr.f32.mxu0 0.0
      %1142 = vmatmul.mubr.f32.gmra.mrb[0].mxu0 %v1073
      %v1143 = vpop.f32.mrb[0].mxu0
      %v1144 = vadd.f32 0.0, %v1143
      %v1145 = vpop.f32.mrb[0].mxu0
      %1146 = vdwg.mxu0
      %v1147 = vmul.f32 %v1144, 0.35355338
      %v1148 = vadd.f32 %v1147, %v418
      %v1149 = vsel %vm588, %v1148, -inf
      %1150 = vmax.xlane.f32.xlu0 %v1149
      %v1151 = vpop.xlane.xlu0 %1150
      %v1152 = vsub.f32 %v1148, %v1151
      %v1153 = vmul.f32 %v1152, 1.442695
      %v1154 = vpow.pop %v1153
      %v1155 = vsel %vm588, %v1154, 0.0
      %1156 = vadd.xlane.f32.xlu0 %v1155
      %v1157 = vpop.xlane.xlu0 %1156
      %v1158 = vrcp.pop %v1157
      %v1159 = vmul.f32 %v1154, %v1158
      %1160 = vrot.lane.b32.xlu0 %v585, 80
      %v1161 = vpop.permute.xlu0 %1160
      %v1164 = vsel %vm588, %v1159, 0
      %1166 = vmatprep.subr.mxu0 0.0
      %1167 = vmatpush1.msra.mxu0 %v1161
      %1168 = vmatprep.subr.mxu0 0.0
      %1169 = vmatpush1.msra.mxu0 0.0
      %1170 = vmatprep.subr.mxu0 0.0
      %1171 = vmatpush1.msra.mxu0 0.0
      %1172 = vmatprep.subr.mxu0 0.0
      %1173 = vmatpush1.msra.mxu0 0.0
      %1174 = vmatprep.subr.mxu0 0.0
      %1175 = vmatpush1.msra.mxu0 0.0
      %1176 = vmatprep.subr.mxu0 0.0
      %1177 = vmatpush1.msra.mxu0 0.0
      %1178 = vmatprep.subr.mxu0 0.0
      %1179 = vmatpush1.msra.mxu0 0.0
      %1180 = vmatprep.subr.mxu0 0.0
      %1181 = vmatpush1.msra.mxu0 0.0
      %1182 = vmatprep.subr.mxu0 0.0
      %1183 = vmatpush1.msra.mxu0 0.0
      %1184 = vmatprep.subr.mxu0 0.0
      %1185 = vmatpush1.msra.mxu0 0.0
      %1186 = vmatprep.subr.mxu0 0.0
      %1187 = vmatpush1.msra.mxu0 0.0
      %1188 = vmatprep.subr.mxu0 0.0
      %1189 = vmatpush1.msra.mxu0 0.0
      %1190 = vmatprep.subr.mxu0 0.0
      %1191 = vmatpush1.msra.mxu0 0.0
      %1192 = vmatprep.subr.mxu0 0.0
      %1193 = vmatpush1.msra.mxu0 0.0
      %1194 = vmatprep.subr.mxu0 0.0
      %1195 = vmatpush1.msra.mxu0 0.0
      %1196 = vmatprep.subr.mxu0 0.0
      %1197 = vmatpush1.msra.mxu0 0.0
      %1198 = vmatprep.subr.mxu0 0.0
      %1199 = vmatpush1.msra.mxu0 0.0
      %1200 = vmatprep.subr.mxu0 0.0
      %1201 = vmatpush1.msra.mxu0 0.0
      %1202 = vmatprep.subr.mxu0 0.0
      %1203 = vmatpush1.msra.mxu0 0.0
      %1204 = vmatprep.subr.mxu0 0.0
      %1205 = vmatpush1.msra.mxu0 0.0
      %1206 = vmatprep.subr.mxu0 0.0
      %1207 = vmatpush1.msra.mxu0 0.0
      %1208 = vmatprep.subr.mxu0 0.0
      %1209 = vmatpush1.msra.mxu0 0.0
      %1210 = vmatprep.subr.mxu0 0.0
      %1211 = vmatpush1.msra.mxu0 0.0
      %1212 = vmatprep.subr.mxu0 0.0
      %1213 = vmatpush1.msra.mxu0 0.0
      %1214 = vmatprep.subr.mxu0 0.0
      %1215 = vmatpush1.msra.mxu0 0.0
      %1216 = vmatprep.subr.mxu0 0.0
      %1217 = vmatpush1.msra.mxu0 0.0
      %1218 = vmatprep.subr.mxu0 0.0
      %1219 = vmatpush1.msra.mxu0 0.0
      %1220 = vmatprep.subr.mxu0 0.0
      %1221 = vmatpush1.msra.mxu0 0.0
      %1222 = vmatprep.subr.mxu0 0.0
      %1223 = vmatpush1.msra.mxu0 0.0
      %1224 = vmatprep.subr.mxu0 0.0
      %1225 = vmatpush1.msra.mxu0 0.0
      %1226 = vmatprep.subr.mxu0 0.0
      %1227 = vmatpush1.msra.mxu0 0.0
      %1228 = vmatprep.subr.mxu0 0.0
      %1229 = vmatpush1.msra.mxu0 0.0
      %1230 = vmatprep.mubr.f32.mxu0 0.0
      %1231 = vmatmul.mubr.f32.gmra.mrb[0].mxu0 %v1164
      %v1232 = vpop.f32.mrb[0].mxu0
      %v1233 = vadd.f32 0.0, %v1232
      %v1234 = vpop.f32.mrb[0].mxu0
      %1235 = vdwg.mxu0
      %v1236 = vld [vmem:[%s7 + $0x10] sm:$0xff]
      %v1238 = vsel %vm588, %v1233, 0
      %1240 = vmatprep.subr.mxu0 0.0
      %1241 = vmatpush1.msra.mxu0 %v1236
      %1242 = vmatprep.subr.mxu0 0.0
      %1243 = vmatpush1.msra.mxu0 0.0
      %1244 = vmatprep.subr.mxu0 0.0
      %1245 = vmatpush1.msra.mxu0 0.0
      %1246 = vmatprep.subr.mxu0 0.0
      %1247 = vmatpush1.msra.mxu0 0.0
      %1248 = vmatprep.subr.mxu0 0.0
      %1249 = vmatpush1.msra.mxu0 0.0
      %1250 = vmatprep.subr.mxu0 0.0
      %1251 = vmatpush1.msra.mxu0 0.0
      %1252 = vmatprep.subr.mxu0 0.0
      %1253 = vmatpush1.msra.mxu0 0.0
      %1254 = vmatprep.subr.mxu0 0.0
      %1255 = vmatpush1.msra.mxu0 0.0
      %1256 = vmatprep.subr.mxu0 0.0
      %1257 = vmatpush1.msra.mxu0 0.0
      %1258 = vmatprep.subr.mxu0 0.0
      %1259 = vmatpush1.msra.mxu0 0.0
      %1260 = vmatprep.subr.mxu0 0.0
      %1261 = vmatpush1.msra.mxu0 0.0
      %1262 = vmatprep.subr.mxu0 0.0
      %1263 = vmatpush1.msra.mxu0 0.0
      %1264 = vmatprep.subr.mxu0 0.0
      %1265 = vmatpush1.msra.mxu0 0.0
      %1266 = vmatprep.subr.mxu0 0.0
      %1267 = vmatpush1.msra.mxu0 0.0
      %1268 = vmatprep.subr.mxu0 0.0
      %1269 = vmatpush1.msra.mxu0 0.0
      %1270 = vmatprep.subr.mxu0 0.0
      %1271 = vmatpush1.msra.mxu0 0.0
      %1272 = vmatprep.subr.mxu0 0.0
      %1273 = vmatpush1.msra.mxu0 0.0
      %1274 = vmatprep.subr.mxu0 0.0
      %1275 = vmatpush1.msra.mxu0 0.0
      %1276 = vmatprep.subr.mxu0 0.0
      %1277 = vmatpush1.msra.mxu0 0.0
      %1278 = vmatprep.subr.mxu0 0.0
      %1279 = vmatpush1.msra.mxu0 0.0
      %1280 = vmatprep.subr.mxu0 0.0
      %1281 = vmatpush1.msra.mxu0 0.0
      %1282 = vmatprep.subr.mxu0 0.0
      %1283 = vmatpush1.msra.mxu0 0.0
      %1284 = vmatprep.subr.mxu0 0.0
      %1285 = vmatpush1.msra.mxu0 0.0
      %1286 = vmatprep.subr.mxu0 0.0
      %1287 = vmatpush1.msra.mxu0 0.0
      %1288 = vmatprep.subr.mxu0 0.0
      %1289 = vmatpush1.msra.mxu0 0.0
      %1290 = vmatprep.subr.mxu0 0.0
      %1291 = vmatpush1.msra.mxu0 0.0
      %1292 = vmatprep.subr.mxu0 0.0
      %1293 = vmatpush1.msra.mxu0 0.0
      %1294 = vmatprep.subr.mxu0 0.0
      %1295 = vmatpush1.msra.mxu0 0.0
      %1296 = vmatprep.subr.mxu0 0.0
      %1297 = vmatpush1.msra.mxu0 0.0
      %1298 = vmatprep.subr.mxu0 0.0
      %1299 = vmatpush1.msra.mxu0 0.0
      %1300 = vmatprep.subr.mxu0 0.0
      %1301 = vmatpush1.msra.mxu0 0.0
      %1302 = vmatprep.subr.mxu0 0.0
      %1303 = vmatpush1.msra.mxu0 0.0
      %1304 = vmatprep.mubr.f32.mxu0 0.0
      %1305 = vmatmul.mubr.f32.gmra.mrb[0].mxu0 %v1238
      %v1306 = vpop.f32.mrb[0].mxu0
      %v1307 = vadd.f32 0.0, %v1306
      %v1308 = vpop.f32.mrb[0].mxu0
      %1309 = vdwg.mxu0
      %v1310 = vadd.f32 %v1066, %v1307
      %1311 = vrot.lane.b32.xlu0 %v501, 104
      %v1312 = vpop.permute.xlu0 %1311
      %1313 = vrot.lane.b32.xlu0 %v585, 104
      %v1314 = vpop.permute.xlu0 %1313
      %v1315 = vsel %vm588, %v1312, 0
      %v1317 = vsel %vm588, %v1314, 0
      %1319 = vmatprep.subr.mxu0 0.0
      %1320 = vmatpush1.xpose.msra.mxu0 %v1317
      %1321 = vmatprep.subr.mxu0 0.0
      %1322 = vmatpush1.xpose.msra.mxu0 0.0
      %1323 = vmatprep.subr.mxu0 0.0
      %1324 = vmatpush1.xpose.msra.mxu0 0.0
      %1325 = vmatprep.subr.mxu0 0.0
      %1326 = vmatpush1.xpose.msra.mxu0 0.0
      %1327 = vmatprep.subr.mxu0 0.0
      %1328 = vmatpush1.xpose.msra.mxu0 0.0
      %1329 = vmatprep.subr.mxu0 0.0
      %1330 = vmatpush1.xpose.msra.mxu0 0.0
      %1331 = vmatprep.subr.mxu0 0.0
      %1332 = vmatpush1.xpose.msra.mxu0 0.0
      %1333 = vmatprep.subr.mxu0 0.0
      %1334 = vmatpush1.xpose.msra.mxu0 0.0
      %1335 = vmatprep.subr.mxu0 0.0
      %1336 = vmatpush1.xpose.msra.mxu0 0.0
      %1337 = vmatprep.subr.mxu0 0.0
      %1338 = vmatpush1.xpose.msra.mxu0 0.0
      %1339 = vmatprep.subr.mxu0 0.0
      %1340 = vmatpush1.xpose.msra.mxu0 0.0
      %1341 = vmatprep.subr.mxu0 0.0
      %1342 = vmatpush1.xpose.msra.mxu0 0.0
      %1343 = vmatprep.subr.mxu0 0.0
      %1344 = vmatpush1.xpose.msra.mxu0 0.0
      %1345 = vmatprep.subr.mxu0 0.0
      %1346 = vmatpush1.xpose.msra.mxu0 0.0
      %1347 = vmatprep.subr.mxu0 0.0
      %1348 = vmatpush1.xpose.msra.mxu0 0.0
      %1349 = vmatprep.subr.mxu0 0.0
      %1350 = vmatpush1.xpose.msra.mxu0 0.0
      %1351 = vmatprep.subr.mxu0 0.0
      %1352 = vmatpush1.xpose.msra.mxu0 0.0
      %1353 = vmatprep.subr.mxu0 0.0
      %1354 = vmatpush1.xpose.msra.mxu0 0.0
      %1355 = vmatprep.subr.mxu0 0.0
      %1356 = vmatpush1.xpose.msra.mxu0 0.0
      %1357 = vmatprep.subr.mxu0 0.0
      %1358 = vmatpush1.xpose.msra.mxu0 0.0
      %1359 = vmatprep.subr.mxu0 0.0
      %1360 = vmatpush1.xpose.msra.mxu0 0.0
      %1361 = vmatprep.subr.mxu0 0.0
      %1362 = vmatpush1.xpose.msra.mxu0 0.0
      %1363 = vmatprep.subr.mxu0 0.0
      %1364 = vmatpush1.xpose.msra.mxu0 0.0
      %1365 = vmatprep.subr.mxu0 0.0
      %1366 = vmatpush1.xpose.msra.mxu0 0.0
      %1367 = vmatprep.subr.mxu0 0.0
      %1368 = vmatpush1.xpose.msra.mxu0 0.0
      %1369 = vmatprep.subr.mxu0 0.0
      %1370 = vmatpush1.xpose.msra.mxu0 0.0
      %1371 = vmatprep.subr.mxu0 0.0
      %1372 = vmatpush1.xpose.msra.mxu0 0.0
      %1373 = vmatprep.subr.mxu0 0.0
      %1374 = vmatpush1.xpose.msra.mxu0 0.0
      %1375 = vmatprep.subr.mxu0 0.0
      %1376 = vmatpush1.xpose.msra.mxu0 0.0
      %1377 = vmatprep.subr.mxu0 0.0
      %1378 = vmatpush1.xpose.msra.mxu0 0.0
      %1379 = vmatprep.subr.mxu0 0.0
      %1380 = vmatpush1.xpose.msra.mxu0 0.0
      %1381 = vmatprep.subr.mxu0 0.0
      %1382 = vmatpush1.xpose.msra.mxu0 0.0
      %1383 = vmatprep.mubr.f32.mxu0 0.0
      %1384 = vmatmul.mubr.f32.gmra.mrb[0].mxu0 %v1315
      %v1385 = vpop.f32.mrb[0].mxu0
      %v1386 = vadd.f32 0.0, %v1385
      %v1387 = vpop.f32.mrb[0].mxu0
      %1388 = vdwg.mxu0
      %v1389 = vmul.f32 %v1386, 0.35355338
      %v1390 = vadd.f32 %v1389, %v418
      %v1391 = vsel %vm588, %v1390, -inf
      %1392 = vmax.xlane.f32.xlu0 %v1391
      %v1393 = vpop.xlane.xlu0 %1392
      %v1394 = vsub.f32 %v1390, %v1393
      %v1395 = vmul.f32 %v1394, 1.442695
      %v1396 = vpow.pop %v1395
      %v1397 = vsel %vm588, %v1396, 0.0
      %1398 = vadd.xlane.f32.xlu0 %v1397
      %v1399 = vpop.xlane.xlu0 %1398
      %v1400 = vrcp.pop %v1399
      %v1401 = vmul.f32 %v1396, %v1400
      %1402 = vrot.lane.b32.xlu0 %v585, 72
      %v1403 = vpop.permute.xlu0 %1402
      %v1406 = vsel %vm588, %v1401, 0
      %1408 = vmatprep.subr.mxu0 0.0
      %1409 = vmatpush1.msra.mxu0 %v1403
      %1410 = vmatprep.subr.mxu0 0.0
      %1411 = vmatpush1.msra.mxu0 0.0
      %1412 = vmatprep.subr.mxu0 0.0
      %1413 = vmatpush1.msra.mxu0 0.0
      %1414 = vmatprep.subr.mxu0 0.0
      %1415 = vmatpush1.msra.mxu0 0.0
      %1416 = vmatprep.subr.mxu0 0.0
      %1417 = vmatpush1.msra.mxu0 0.0
      %1418 = vmatprep.subr.mxu0 0.0
      %1419 = vmatpush1.msra.mxu0 0.0
      %1420 = vmatprep.subr.mxu0 0.0
      %1421 = vmatpush1.msra.mxu0 0.0
      %1422 = vmatprep.subr.mxu0 0.0
      %1423 = vmatpush1.msra.mxu0 0.0
      %1424 = vmatprep.subr.mxu0 0.0
      %1425 = vmatpush1.msra.mxu0 0.0
      %1426 = vmatprep.subr.mxu0 0.0
      %1427 = vmatpush1.msra.mxu0 0.0
      %1428 = vmatprep.subr.mxu0 0.0
      %1429 = vmatpush1.msra.mxu0 0.0
      %1430 = vmatprep.subr.mxu0 0.0
      %1431 = vmatpush1.msra.mxu0 0.0
      %1432 = vmatprep.subr.mxu0 0.0
      %1433 = vmatpush1.msra.mxu0 0.0
      %1434 = vmatprep.subr.mxu0 0.0
      %1435 = vmatpush1.msra.mxu0 0.0
      %1436 = vmatprep.subr.mxu0 0.0
      %1437 = vmatpush1.msra.mxu0 0.0
      %1438 = vmatprep.subr.mxu0 0.0
      %1439 = vmatpush1.msra.mxu0 0.0
      %1440 = vmatprep.subr.mxu0 0.0
      %1441 = vmatpush1.msra.mxu0 0.0
      %1442 = vmatprep.subr.mxu0 0.0
      %1443 = vmatpush1.msra.mxu0 0.0
      %1444 = vmatprep.subr.mxu0 0.0
      %1445 = vmatpush1.msra.mxu0 0.0
      %1446 = vmatprep.subr.mxu0 0.0
      %1447 = vmatpush1.msra.mxu0 0.0
      %1448 = vmatprep.subr.mxu0 0.0
      %1449 = vmatpush1.msra.mxu0 0.0
      %1450 = vmatprep.subr.mxu0 0.0
      %1451 = vmatpush1.msra.mxu0 0.0
      %1452 = vmatprep.subr.mxu0 0.0
      %1453 = vmatpush1.msra.mxu0 0.0
      %1454 = vmatprep.subr.mxu0 0.0
      %1455 = vmatpush1.msra.mxu0 0.0
      %1456 = vmatprep.subr.mxu0 0.0
      %1457 = vmatpush1.msra.mxu0 0.0
      %1458 = vmatprep.subr.mxu0 0.0
      %1459 = vmatpush1.msra.mxu0 0.0
      %1460 = vmatprep.subr.mxu0 0.0
      %1461 = vmatpush1.msra.mxu0 0.0
      %1462 = vmatprep.subr.mxu0 0.0
      %1463 = vmatpush1.msra.mxu0 0.0
      %1464 = vmatprep.subr.mxu0 0.0
      %1465 = vmatpush1.msra.mxu0 0.0
      %1466 = vmatprep.subr.mxu0 0.0
      %1467 = vmatpush1.msra.mxu0 0.0
      %1468 = vmatprep.subr.mxu0 0.0
      %1469 = vmatpush1.msra.mxu0 0.0
      %1470 = vmatprep.subr.mxu0 0.0
      %1471 = vmatpush1.msra.mxu0 0.0
      %1472 = vmatprep.mubr.f32.mxu0 0.0
      %1473 = vmatmul.mubr.f32.gmra.mrb[0].mxu0 %v1406
      %v1474 = vpop.f32.mrb[0].mxu0
      %v1475 = vadd.f32 0.0, %v1474
      %v1476 = vpop.f32.mrb[0].mxu0
      %1477 = vdwg.mxu0
      %v1478 = vld [vmem:[%s7 + $0x18] sm:$0xff]
      %v1480 = vsel %vm588, %v1475, 0
      %1482 = vmatprep.subr.mxu0 0.0
      %1483 = vmatpush1.msra.mxu0 %v1478
      %1484 = vmatprep.subr.mxu0 0.0
      %1485 = vmatpush1.msra.mxu0 0.0
      %1486 = vmatprep.subr.mxu0 0.0
      %1487 = vmatpush1.msra.mxu0 0.0
      %1488 = vmatprep.subr.mxu0 0.0
      %1489 = vmatpush1.msra.mxu0 0.0
      %1490 = vmatprep.subr.mxu0 0.0
      %1491 = vmatpush1.msra.mxu0 0.0
      %1492 = vmatprep.subr.mxu0 0.0
      %1493 = vmatpush1.msra.mxu0 0.0
      %1494 = vmatprep.subr.mxu0 0.0
      %1495 = vmatpush1.msra.mxu0 0.0
      %1496 = vmatprep.subr.mxu0 0.0
      %1497 = vmatpush1.msra.mxu0 0.0
      %1498 = vmatprep.subr.mxu0 0.0
      %1499 = vmatpush1.msra.mxu0 0.0
      %1500 = vmatprep.subr.mxu0 0.0
      %1501 = vmatpush1.msra.mxu0 0.0
      %1502 = vmatprep.subr.mxu0 0.0
      %1503 = vmatpush1.msra.mxu0 0.0
      %1504 = vmatprep.subr.mxu0 0.0
      %1505 = vmatpush1.msra.mxu0 0.0
      %1506 = vmatprep.subr.mxu0 0.0
      %1507 = vmatpush1.msra.mxu0 0.0
      %1508 = vmatprep.subr.mxu0 0.0
      %1509 = vmatpush1.msra.mxu0 0.0
      %1510 = vmatprep.subr.mxu0 0.0
      %1511 = vmatpush1.msra.mxu0 0.0
      %1512 = vmatprep.subr.mxu0 0.0
      %1513 = vmatpush1.msra.mxu0 0.0
      %1514 = vmatprep.subr.mxu0 0.0
      %1515 = vmatpush1.msra.mxu0 0.0
      %1516 = vmatprep.subr.mxu0 0.0
      %1517 = vmatpush1.msra.mxu0 0.0
      %1518 = vmatprep.subr.mxu0 0.0
      %1519 = vmatpush1.msra.mxu0 0.0
      %1520 = vmatprep.subr.mxu0 0.0
      %1521 = vmatpush1.msra.mxu0 0.0
      %1522 = vmatprep.subr.mxu0 0.0
      %1523 = vmatpush1.msra.mxu0 0.0
      %1524 = vmatprep.subr.mxu0 0.0
      %1525 = vmatpush1.msra.mxu0 0.0
      %1526 = vmatprep.subr.mxu0 0.0
      %1527 = vmatpush1.msra.mxu0 0.0
      %1528 = vmatprep.subr.mxu0 0.0
      %1529 = vmatpush1.msra.mxu0 0.0
      %1530 = vmatprep.subr.mxu0 0.0
      %1531 = vmatpush1.msra.mxu0 0.0
      %1532 = vmatprep.subr.mxu0 0.0
      %1533 = vmatpush1.msra.mxu0 0.0
      %1534 = vmatprep.subr.mxu0 0.0
      %1535 = vmatpush1.msra.mxu0 0.0
      %1536 = vmatprep.subr.mxu0 0.0
      %1537 = vmatpush1.msra.mxu0 0.0
      %1538 = vmatprep.subr.mxu0 0.0
      %1539 = vmatpush1.msra.mxu0 0.0
      %1540 = vmatprep.subr.mxu0 0.0
      %1541 = vmatpush1.msra.mxu0 0.0
      %1542 = vmatprep.subr.mxu0 0.0
      %1543 = vmatpush1.msra.mxu0 0.0
      %1544 = vmatprep.subr.mxu0 0.0
      %1545 = vmatpush1.msra.mxu0 0.0
      %1546 = vmatprep.mubr.f32.mxu0 0.0
      %1547 = vmatmul.mubr.f32.gmra.mrb[0].mxu0 %v1480
      %v1548 = vpop.f32.mrb[0].mxu0
      %v1549 = vadd.f32 0.0, %v1548
      %v1550 = vpop.f32.mrb[0].mxu0
      %1551 = vdwg.mxu0
      %v1552 = vadd.f32 %v1310, %v1549
      %v1553 = vld [vmem:[%s8] sm:$0x1]
      %v1555 = vlaneseq
      %v1556 = vshrl.u32 %v1555, 7
      %v1557 = vsub.s32 0, %v1556
      %v1558 = vrot.slane %v1553, %v1557
      %v1560 = vadd.f32 %v1552, %v1558
      %v1561 = vadd.f32 %v416, %v1560
      %v1562 = vsel %vm430, %v1561, 0.0
      %1563 = vadd.xlane.f32.xlu0 %v1562
      %v1564 = vpop.xlane.xlu0 %1563
      %v1565 = vrcp.pop 32.0
      %v1566 = vmul.f32 %v1564, %v1565
      %v1567 = vsub.f32 %v1561, %v1566
      %v1568 = vmul.f32 %v1567, %v1567
      %v1569 = vsel %vm430, %v1568, 0.0
      %1570 = vadd.xlane.f32.xlu0 %v1569
      %v1571 = vpop.xlane.xlu0 %1570
      %v1572 = vmul.f32 %v1571, %v1565
      %v1573 = vadd.f32 %v1572, 1e-05
      %v1574 = vrsqrt.pop %v1573
      %v1575 = vmul.f32 %v1567, %v1574
      %v1576 = vld [vmem:[%s9] sm:$0x1]
      %v1578 = vlaneseq
      %v1579 = vshrl.u32 %v1578, 7
      %v1580 = vsub.s32 0, %v1579
      %v1581 = vrot.slane %v1576, %v1580
      %v1583 = vmul.f32 %v1575, %v1581
      %v1584 = vld [vmem:[%s10] sm:$0x1]
      %v1586 = vlaneseq
      %v1587 = vshrl.u32 %v1586, 7
      %v1588 = vsub.s32 0, %v1587
      %v1589 = vrot.slane %v1584, %v1588
      %v1591 = vadd.f32 %v1583, %v1589
      %1592 = vst.msk [vmem:[%s415] sm:$0xff] %vm430, %v1591
      %p1593 = scmp.lt.s32.totalorder %s22, 1
      %s1594 = scalar_select %p1593, %s22, 1
      %s1595 = smul.addr %s1594, 8
      %s1596 = scalar_lea.vmem %s11, %s1595
      // Predicated region
      $region65: #{decoder_forward.7} parent=63 // pred_check
        %p1597 = pneg %p286
      $region66: #{decoder_forward.7} parent=63 // pred_check_branch
        %1599 = sbr.rel (%p1597) target = $region68
      $region67: #{decoder_forward.7} parent=63 // pred_region
        _
      $region68: #{decoder_forward.7} parent=63 // pred_fallthru
        _
    $region64: #{decoder_forward.7} parent=5 // pred_fallthru
      _
    %p1600 = scmp.le.s32.totalorder 2, %s17
    // Predicated region
    $region69: #{decoder_forward.7} parent=5 // pred_check
      %p1601 = pneg %p1600
    $region70: #{decoder_forward.7} parent=5 // pred_check_branch
      %1603 = sbr.rel (%p1601) target = $region72
    $region71: #{decoder_forward.7} parent=5 // pred_region
      %s1604 = ssub.s32 %s17, 2
      // Predicated region
      $region73: #{decoder_forward.7} parent=71 // pred_check
        %p1605 = pneg %p292
      $region74: #{decoder_forward.7} parent=71 // pred_check_branch
        %1607 = sbr.rel (%p1605) target = $region76
      $region75: #{decoder_forward.7} parent=71 // pred_region
        %p1608 = scmp.lt.s32.totalorder %s23, 1
        %s1609 = scalar_select %p1608, %s23, 1
        %s1610 = smul.addr %s1609, 8
        %s1611 = scalar_lea.vmem %s11, %s1610
      $region76: #{decoder_forward.7} parent=71 // pred_fallthru
        _
    $region72: #{decoder_forward.7} parent=5 // pred_fallthru
      _
  $region6: #{decoder_forward.7} parent=0 // loop_footer
    %s21 = sadd.s32 1, %s17
  $region7: #{decoder_forward.7} parent=0 // loop_footer_branch
    %16 = sbr.rel target = $region3
  $region8: #{decoder_forward.7} parent=0 // loop_exit
    _

// kernel: decoder_forward.11
$region0: #{decoder_forward.11}
  #allocation0 [shape = 'u32[]', space=smem, size = 0x4, offset = 0x4, fixed_abs, tag = 'smem constant byte address 0x4 - core index']
  #allocation1 [shape = 'u32[144,128]{1,0:T(1,128)}', space=vmem, size = 0x12000, scoped, tag = 'internal scratch']
  %s0 = inlined_call_operand.vmem [shape: f32[2,8,32], index: 0, kind: input, shape index: {}]
  %s1 = inlined_call_operand.vmem [shape: f32[2,8,32], index: 1, kind: input, shape index: {}]
  %s2 = inlined_call_operand.vmem [shape: f32[2,8,8], index: 2, kind: input, shape index: {}]
  %s3 = inlined_call_operand.vmem [shape: f32[32,32], index: 3, kind: input, shape index: {}]
  %s4 = inlined_call_operand.vmem [shape: f32[1,32], index: 4, kind: input, shape index: {}]
  %s5 = inlined_call_operand.vmem [shape: f32[32,64], index: 5, kind: input, shape index: {}]
  %s6 = inlined_call_operand.vmem [shape: f32[1,64], index: 6, kind: input, shape index: {}]
  %s7 = inlined_call_operand.vmem [shape: f32[32,32], index: 7, kind: input, shape index: {}]
  %s8 = inlined_call_operand.vmem [shape: f32[1,32], index: 8, kind: input, shape index: {}]
  %s9 = inlined_call_operand.vmem [shape: f32[1,32], index: 9, kind: input, shape index: {}]
  %s10 = inlined_call_operand.vmem [shape: f32[1,32], index: 10, kind: input, shape index: {}]
  %s11 = inlined_call_operand.vmem [shape: f32[2,8,32], index: 11, kind: output, shape index: {0}]
  %s12 = inlined_call_operand.hbm [shape: f32[2,4,8,8], index: 12, kind: output, shape index: {1}]
  %13 = xla_tuple %s11, %s12
  %s14 = sld [smem:[#allocation0]]
  $region85: #{decoder_forward.11} parent=0
    _
  %s16 = ssub.s32 1, %s14
  %s17 = scalar_select 0, %s16, %s14
  $region1: #{decoder_forward.11} parent=0
    #allocation2 [shape = 'u8[32768]{0}', space=vmem, size = 0x8000, scoped, tag = 'output window, operand 1']
    #allocation3 [shape = 's32[2]{0}', space=sflag, size = 0x8, scoped, tag = 'scoped memory for decoder_forward.11']
    %18 = vsyncpa [#allocation3], 0
    %s19 = scalar_lea.sflag [#allocation3], 1
    %20 = vsyncpa %s19, 0
    loop: start=0, step=1, limit=4
    $region2: #{decoder_forward.11} parent=1 // loop_pre_header
      _
    $region3: #{decoder_forward.11} parent=1 // loop_header
      %s22 = sphi 0, %s26
      %p23 = scmp.ge.s32.totalorder %s22, 4
      %s32 = sphi 0, %s34
      %s35 = sphi 0, %s32
      %s36 = sphi 0, %s35
      %s52 = sphi 0, %s36
      %s58 = sphi 0, %s60
      %s61 = sphi 0, %s58
      %s62 = sphi 0, %s61
      %s78 = sphi 0, %s62
      %s84 = sphi 0, %s86
      %s87 = sphi 0, %s84
      %s88 = sphi 0, %s87
      %s104 = sphi 0, %s88
      %s108 = sphi 0, %s108
      %s110 = sphi 0, %s108
      %s111 = sphi 0, %s110
      %s125 = sphi 0, %s111
      %s129 = sphi 0, %s129
      %s131 = sphi 0, %s129
      %s132 = sphi 0, %s131
      %s146 = sphi 0, %s132
      %s150 = sphi 0, %s150
      %s152 = sphi 0, %s150
      %s153 = sphi 0, %s152
      %s167 = sphi 0, %s153
      %s171 = sphi 0, %s171
      %s173 = sphi 0, %s171
      %s174 = sphi 0, %s173
      %s188 = sphi 0, %s174
      %s192 = sphi 0, %s192
      %s194 = sphi 0, %s192
      %s195 = sphi 0, %s194
      %s209 = sphi 0, %s195
      %s213 = sphi 0, %s213
      %s215 = sphi 0, %s213
      %s216 = sphi 0, %s215
      %s230 = sphi 0, %s216
      %s234 = sphi 0, %s234
      %s236 = sphi 0, %s234
      %s237 = sphi 0, %s236
      %s251 = sphi 0, %s237
      %s255 = sphi 0, %s255
      %s257 = sphi 0, %s255
      %s258 = sphi 0, %s257
      %s272 = sphi 0, %s258
      %s278 = sphi 0, %s280
      %s281 = sphi 0, %s278
      %s282 = sphi 0, %s281
      %s298 = sphi 0, %s282
      %s304 = sphi 0, %s306
      %s307 = sphi 0, %s304
      %s308 = sphi 0, %s307
      %s324 = sphi 0, %s308
    $region4: #{decoder_forward.11} parent=1 // loop_header_branch
      %25 = sbr.rel (%p23) target = $region8
    $region5: #{decoder_forward.11} parent=1 // loop_body
      %s27 = ssub.s32 %s22, 1
      %s28 = ssub.s32 %s22, 2
      %s29 = sadd.s32 %s22, 1
      %s30 = ssub.s32 %s22, %s29
      %p31 = scmp.eq.s32.totalorder %s30, 0
      %s33 = sadd.s32 %s32, 1
      %s34 = scalar_select %p31, %s32, %s33
      %p37 = pneg %p31
      %p38 = scmp.eq.s32.totalorder %s22, 1
      %p39 = por %p37, %p38
      %p40 = scmp.ne.s32.totalorder %s32, %s35
      %p41 = scmp.eq.s32.totalorder %s22, 0
      %p42 = por %p40, %p41
      %p43 = scmp.ne.s32.totalorder %s32, %s35
      %p44 = scmp.eq.s32.totalorder %s27, 1
      %p45 = por %p43, %p44
      %p46 = scmp.ne.s32.totalorder %s35, %s36
      %p47 = scmp.eq.s32.totalorder %s27, 0
      %p48 = por %p46, %p47
      %p49 = scmp.ne.s32.totalorder %s35, %s36
      %p50 = scmp.eq.s32.totalorder %s28, 1
      %p51 = por %p49, %p50
      %p53 = scmp.ne.s32.totalorder %s36, %s52
      %p54 = scmp.eq.s32.totalorder %s28, 0
      %p55 = por %p53, %p54
      %s56 = ssub.s32 %s22, %s29
      %p57 = scmp.eq.s32.totalorder %s56, 0
      %s59 = sadd.s32 %s58, 1
      %s60 = scalar_select %p57, %s58, %s59
      %p63 = pneg %p57
      %p64 = scmp.eq.s32.totalorder %s22, 1
      %p65 = por %p63, %p64
      %p66 = scmp.ne.s32.totalorder %s58, %s61
      %p67 = scmp.eq.s32.totalorder %s22, 0
      %p68 = por %p66, %p67
      %p69 = scmp.ne.s32.totalorder %s58, %s61
      %p70 = scmp.eq.s32.totalorder %s27, 1
      %p71 = por %p69, %p70
      %p72 = scmp.ne.s32.totalorder %s61, %s62
      %p73 = scmp.eq.s32.totalorder %s27, 0
      %p74 = por %p72, %p73
      %p75 = scmp.ne.s32.totalorder %s61, %s62
      %p76 = scmp.eq.s32.totalorder %s28, 1
      %p77 = por %p75, %p76
      %p79 = scmp.ne.s32.totalorder %s62, %s78
      %p80 = scmp.eq.s32.totalorder %s28, 0
      %p81 = por %p79, %p80
      %s82 = ssub.s32 %s22, %s29
      %p83 = scmp.eq.s32.totalorder %s82, 0
      %s85 = sadd.s32 %s84, 1
      %s86 = scalar_select %p83, %s84, %s85
      %p89 = pneg %p83
      %p90 = scmp.eq.s32.totalorder %s22, 1
      %p91 = por %p89, %p90
      %p92 = scmp.ne.s32.totalorder %s84, %s87
      %p93 = scmp.eq.s32.totalorder %s22, 0
      %p94 = por %p92, %p93
      %p95 = scmp.ne.s32.totalorder %s84, %s87
      %p96 = scmp.eq.s32.totalorder %s27, 1
      %p97 = por %p95, %p96
      %p98 = scmp.ne.s32.totalorder %s87, %s88
      %p99 = scmp.eq.s32.totalorder %s27, 0
      %p100 = por %p98, %p99
      %p101 = scmp.ne.s32.totalorder %s87, %s88
      %p102 = scmp.eq.s32.totalorder %s28, 1
      %p103 = por %p101, %p102
      %p105 = scmp.ne.s32.totalorder %s88, %s104
      %p106 = scmp.eq.s32.totalorder %s28, 0
      %p107 = por %p105, %p106
      %s109 = sadd.s32 %s108, 1
      %p112 = scmp.eq.s32.totalorder %s22, 1
      %p113 = scmp.ne.s32.totalorder %s108, %s110
      %p114 = scmp.eq.s32.totalorder %s22, 0
      %p115 = por %p113, %p114
      %p116 = scmp.ne.s32.totalorder %s108, %s110
      %p117 = scmp.eq.s32.totalorder %s27, 1
      %p118 = por %p116, %p117
      %p119 = scmp.ne.s32.totalorder %s110, %s111
      %p120 = scmp.eq.s32.totalorder %s27, 0
      %p121 = por %p119, %p120
      %p122 = scmp.ne.s32.totalorder %s110, %s111
      %p123 = scmp.eq.s32.totalorder %s28, 1
      %p124 = por %p122, %p123
      %p126 = scmp.ne.s32.totalorder %s111, %s125
      %p127 = scmp.eq.s32.totalorder %s28, 0
      %p128 = por %p126, %p127
      %s130 = sadd.s32 %s129, 1
      %p133 = scmp.eq.s32.totalorder %s22, 1
      %p134 = scmp.ne.s32.totalorder %s129, %s131
      %p135 = scmp.eq.s32.totalorder %s22, 0
      %p136 = por %p134, %p135
      %p137 = scmp.ne.s32.totalorder %s129, %s131
      %p138 = scmp.eq.s32.totalorder %s27, 1
      %p139 = por %p137, %p138
      %p140 = scmp.ne.s32.totalorder %s131, %s132
      %p141 = scmp.eq.s32.totalorder %s27, 0
      %p142 = por %p140, %p141
      %p143 = scmp.ne.s32.totalorder %s131, %s132
      %p144 = scmp.eq.s32.totalorder %s28, 1
      %p145 = por %p143, %p144
      %p147 = scmp.ne.s32.totalorder %s132, %s146
      %p148 = scmp.eq.s32.totalorder %s28, 0
      %p149 = por %p147, %p148
      %s151 = sadd.s32 %s150, 1
      %p154 = scmp.eq.s32.totalorder %s22, 1
      %p155 = scmp.ne.s32.totalorder %s150, %s152
      %p156 = scmp.eq.s32.totalorder %s22, 0
      %p157 = por %p155, %p156
      %p158 = scmp.ne.s32.totalorder %s150, %s152
      %p159 = scmp.eq.s32.totalorder %s27, 1
      %p160 = por %p158, %p159
      %p161 = scmp.ne.s32.totalorder %s152, %s153
      %p162 = scmp.eq.s32.totalorder %s27, 0
      %p163 = por %p161, %p162
      %p164 = scmp.ne.s32.totalorder %s152, %s153
      %p165 = scmp.eq.s32.totalorder %s28, 1
      %p166 = por %p164, %p165
      %p168 = scmp.ne.s32.totalorder %s153, %s167
      %p169 = scmp.eq.s32.totalorder %s28, 0
      %p170 = por %p168, %p169
      %s172 = sadd.s32 %s171, 1
      %p175 = scmp.eq.s32.totalorder %s22, 1
      %p176 = scmp.ne.s32.totalorder %s171, %s173
      %p177 = scmp.eq.s32.totalorder %s22, 0
      %p178 = por %p176, %p177
      %p179 = scmp.ne.s32.totalorder %s171, %s173
      %p180 = scmp.eq.s32.totalorder %s27, 1
      %p181 = por %p179, %p180
      %p182 = scmp.ne.s32.totalorder %s173, %s174
      %p183 = scmp.eq.s32.totalorder %s27, 0
      %p184 = por %p182, %p183
      %p185 = scmp.ne.s32.totalorder %s173, %s174
      %p186 = scmp.eq.s32.totalorder %s28, 1
      %p187 = por %p185, %p186
      %p189 = scmp.ne.s32.totalorder %s174, %s188
      %p190 = scmp.eq.s32.totalorder %s28, 0
      %p191 = por %p189, %p190
      %s193 = sadd.s32 %s192, 1
      %p196 = scmp.eq.s32.totalorder %s22, 1
      %p197 = scmp.ne.s32.totalorder %s192, %s194
      %p198 = scmp.eq.s32.totalorder %s22, 0
      %p199 = por %p197, %p198
      %p200 = scmp.ne.s32.totalorder %s192, %s194
      %p201 = scmp.eq.s32.totalorder %s27, 1
      %p202 = por %p200, %p201
      %p203 = scmp.ne.s32.totalorder %s194, %s195
      %p204 = scmp.eq.s32.totalorder %s27, 0
      %p205 = por %p203, %p204
      %p206 = scmp.ne.s32.totalorder %s194, %s195
      %p207 = scmp.eq.s32.totalorder %s28, 1
      %p208 = por %p206, %p207
      %p210 = scmp.ne.s32.totalorder %s195, %s209
      %p211 = scmp.eq.s32.totalorder %s28, 0
      %p212 = por %p210, %p211
      %s214 = sadd.s32 %s213, 1
      %p217 = scmp.eq.s32.totalorder %s22, 1
      %p218 = scmp.ne.s32.totalorder %s213, %s215
      %p219 = scmp.eq.s32.totalorder %s22, 0
      %p220 = por %p218, %p219
      %p221 = scmp.ne.s32.totalorder %s213, %s215
      %p222 = scmp.eq.s32.totalorder %s27, 1
      %p223 = por %p221, %p222
      %p224 = scmp.ne.s32.totalorder %s215, %s216
      %p225 = scmp.eq.s32.totalorder %s27, 0
      %p226 = por %p224, %p225
      %p227 = scmp.ne.s32.totalorder %s215, %s216
      %p228 = scmp.eq.s32.totalorder %s28, 1
      %p229 = por %p227, %p228
      %p231 = scmp.ne.s32.totalorder %s216, %s230
      %p232 = scmp.eq.s32.totalorder %s28, 0
      %p233 = por %p231, %p232
      %s235 = sadd.s32 %s234, 1
      %p238 = scmp.eq.s32.totalorder %s22, 1
      %p239 = scmp.ne.s32.totalorder %s234, %s236
      %p240 = scmp.eq.s32.totalorder %s22, 0
      %p241 = por %p239, %p240
      %p242 = scmp.ne.s32.totalorder %s234, %s236
      %p243 = scmp.eq.s32.totalorder %s27, 1
      %p244 = por %p242, %p243
      %p245 = scmp.ne.s32.totalorder %s236, %s237
      %p246 = scmp.eq.s32.totalorder %s27, 0
      %p247 = por %p245, %p246
      %p248 = scmp.ne.s32.totalorder %s236, %s237
      %p249 = scmp.eq.s32.totalorder %s28, 1
      %p250 = por %p248, %p249
      %p252 = scmp.ne.s32.totalorder %s237, %s251
      %p253 = scmp.eq.s32.totalorder %s28, 0
      %p254 = por %p252, %p253
      %s256 = sadd.s32 %s255, 1
      %p259 = scmp.eq.s32.totalorder %s22, 1
      %p260 = scmp.ne.s32.totalorder %s255, %s257
      %p261 = scmp.eq.s32.totalorder %s22, 0
      %p262 = por %p260, %p261
      %p263 = scmp.ne.s32.totalorder %s255, %s257
      %p264 = scmp.eq.s32.totalorder %s27, 1
      %p265 = por %p263, %p264
      %p266 = scmp.ne.s32.totalorder %s257, %s258
      %p267 = scmp.eq.s32.totalorder %s27, 0
      %p268 = por %p266, %p267
      %p269 = scmp.ne.s32.totalorder %s257, %s258
      %p270 = scmp.eq.s32.totalorder %s28, 1
      %p271 = por %p269, %p270
      %p273 = scmp.ne.s32.totalorder %s258, %s272
      %p274 = scmp.eq.s32.totalorder %s28, 0
      %p275 = por %p273, %p274
      %s276 = ssub.s32 %s22, %s29
      %p277 = scmp.eq.s32.totalorder %s276, 0
      %s279 = sadd.s32 %s278, 1
      %s280 = scalar_select %p277, %s278, %s279
      %p283 = pneg %p277
      %p284 = scmp.eq.s32.totalorder %s22, 1
      %p285 = por %p283, %p284
      %p286 = scmp.ne.s32.totalorder %s278, %s281
      %p287 = scmp.eq.s32.totalorder %s22, 0
      %p288 = por %p286, %p287
      %p289 = scmp.ne.s32.totalorder %s278, %s281
      %p290 = scmp.eq.s32.totalorder %s27, 1
      %p291 = por %p289, %p290
      %p292 = scmp.ne.s32.totalorder %s281, %s282
      %p293 = scmp.eq.s32.totalorder %s27, 0
      %p294 = por %p292, %p293
      %p295 = scmp.ne.s32.totalorder %s281, %s282
      %p296 = scmp.eq.s32.totalorder %s28, 1
      %p297 = por %p295, %p296
      %p299 = scmp.ne.s32.totalorder %s282, %s298
      %p300 = scmp.eq.s32.totalorder %s28, 0
      %p301 = por %p299, %p300
      %s302 = ssub.s32 %s22, %s29
      %p303 = scmp.eq.s32.totalorder %s302, 0
      %s305 = sadd.s32 %s304, 1
      %s306 = scalar_select %p303, %s304, %s305
      %p309 = pneg %p303
      %p310 = scmp.eq.s32.totalorder %s22, 1
      %p311 = por %p309, %p310
      %p312 = scmp.ne.s32.totalorder %s304, %s307
      %p313 = scmp.eq.s32.totalorder %s22, 0
      %p314 = por %p312, %p313
      %p315 = scmp.ne.s32.totalorder %s304, %s307
      %p316 = scmp.eq.s32.totalorder %s27, 1
      %p317 = por %p315, %p316
      %p318 = scmp.ne.s32.totalorder %s307, %s308
      %p319 = scmp.eq.s32.totalorder %s27, 0
      %p320 = por %p318, %p319
      %p321 = scmp.ne.s32.totalorder %s307, %s308
      %p322 = scmp.eq.s32.totalorder %s28, 1
      %p323 = por %p321, %p322
      %p325 = scmp.ne.s32.totalorder %s308, %s324
      %p326 = scmp.eq.s32.totalorder %s28, 0
      %p327 = por %p325, %p326
      %p328 = scmp.le.s32.totalorder 1, %s22
      %p329 = scmp.lt.s32.totalorder %s22, 3
      %p330 = pnand %p328, %p329
      %p331 = pneg %p330
      // Predicated region
      $region9: #{decoder_forward.11} parent=5 // pred_check
        _
      $region10: #{decoder_forward.11} parent=5 // pred_check_branch
        %333 = sbr.rel (%p330) target = $region12
      $region11: #{decoder_forward.11} parent=5 // pred_region
        %s334 = ssub.s32 %s22, 1
        // Predicated region
        $region13: #{decoder_forward.11} parent=11 // pred_check
          %p335 = pneg %p121
        $region14: #{decoder_forward.11} parent=11 // pred_check_branch
          %337 = sbr.rel (%p335) target = $region16
        $region15: #{decoder_forward.11} parent=11 // pred_region
          _
        $region16: #{decoder_forward.11} parent=11 // pred_fallthru
          _
        // Predicated region
        $region17: #{decoder_forward.11} parent=11 // pred_check
          %p338 = pneg %p142
        $region18: #{decoder_forward.11} parent=11 // pred_check_branch
          %340 = sbr.rel (%p338) target = $region20
        $region19: #{decoder_forward.11} parent=11 // pred_region
          _
        $region20: #{decoder_forward.11} parent=11 // pred_fallthru
          _
        // Predicated region
        $region21: #{decoder_forward.11} parent=11 // pred_check
          %p341 = pneg %p163
        $region22: #{decoder_forward.11} parent=11 // pred_check_branch
          %343 = sbr.rel (%p341) target = $region24
        $region23: #{decoder_forward.11} parent=11 // pred_region
          _
        $region24: #{decoder_forward.11} parent=11 // pred_fallthru
          _
        // Predicated region
        $region25: #{decoder_forward.11} parent=11 // pred_check
          %p344 = pneg %p184
        $region26: #{decoder_forward.11} parent=11 // pred_check_branch
          %346 = sbr.rel (%p344) target = $region28
        $region27: #{decoder_forward.11} parent=11 // pred_region
          _
        $region28: #{decoder_forward.11} parent=11 // pred_fallthru
          _
        // Predicated region
        $region29: #{decoder_forward.11} parent=11 // pred_check
          %p347 = pneg %p205
        $region30: #{decoder_forward.11} parent=11 // pred_check_branch
          %349 = sbr.rel (%p347) target = $region32
        $region31: #{decoder_forward.11} parent=11 // pred_region
          _
        $region32: #{decoder_forward.11} parent=11 // pred_fallthru
          _
        // Predicated region
        $region33: #{decoder_forward.11} parent=11 // pred_check
          %p350 = pneg %p226
        $region34: #{decoder_forward.11} parent=11 // pred_check_branch
          %352 = sbr.rel (%p350) target = $region36
        $region35: #{decoder_forward.11} parent=11 // pred_region
          _
        $region36: #{decoder_forward.11} parent=11 // pred_fallthru
          _
        // Predicated region
        $region37: #{decoder_forward.11} parent=11 // pred_check
          %p353 = pneg %p247
        $region38: #{decoder_forward.11} parent=11 // pred_check_branch
          %355 = sbr.rel (%p353) target = $region40
        $region39: #{decoder_forward.11} parent=11 // pred_region
          _
        $region40: #{decoder_forward.11} parent=11 // pred_fallthru
          _
        // Predicated region
        $region41: #{decoder_forward.11} parent=11 // pred_check
          %p356 = pneg %p268
        $region42: #{decoder_forward.11} parent=11 // pred_check_branch
          %358 = sbr.rel (%p356) target = $region44
        $region43: #{decoder_forward.11} parent=11 // pred_region
          _
        $region44: #{decoder_forward.11} parent=11 // pred_fallthru
          _
      $region12: #{decoder_forward.11} parent=5 // pred_fallthru
        _
      %p359 = scmp.lt.s32.totalorder %s22, 2
      // Predicated region
      $region45: #{decoder_forward.11} parent=5 // pred_check
        %p360 = pneg %p359
      $region46: #{decoder_forward.11} parent=5 // pred_check_branch
        %362 = sbr.rel (%p360) target = $region48
      $region47: #{decoder_forward.11} parent=5 // pred_region
        // Predicated region
        $region49: #{decoder_forward.11} parent=47 // pred_check
          %p363 = pneg %p42
        $region50: #{decoder_forward.11} parent=47 // pred_check_branch
          %365 = sbr.rel (%p363) target = $region52
        $region51: #{decoder_forward.11} parent=47 // pred_region
          %p366 = scmp.lt.s32.totalorder %s22, 1
          %s367 = scalar_select %p366, %s22, 1
          %s368 = smul.addr %s367, 8
          %s369 = scalar_lea.vmem %s0, %s368
        $region52: #{decoder_forward.11} parent=47 // pred_fallthru
          _
        // Predicated region
        $region53: #{decoder_forward.11} parent=47 // pred_check
          %p370 = pneg %p68
        $region54: #{decoder_forward.11} parent=47 // pred_check_branch
          %372 = sbr.rel (%p370) target = $region56
        $region55: #{decoder_forward.11} parent=47 // pred_region
          %p373 = scmp.lt.s32.totalorder %s22, 1
          %s374 = scalar_select %p373, %s22, 1
          %s375 = smul.addr %s374, 8
          %s376 = scalar_lea.vmem %s1, %s375
        $region56: #{decoder_forward.11} parent=47 // pred_fallthru
          _
        // Predicated region
        $region57: #{decoder_forward.11} parent=47 // pred_check
          %p377 = pneg %p94
        $region58: #{decoder_forward.11} parent=47 // pred_check_branch
          %379 = sbr.rel (%p377) target = $region60
        $region59: #{decoder_forward.11} parent=47 // pred_region
          %p380 = scmp.lt.s32.totalorder %s22, 1
          %s381 = scalar_select %p380, %s22, 1
          %s382 = smul.addr %s381, 8
          %s383 = scalar_lea.vmem %s2, %s382
        $region60: #{decoder_forward.11} parent=47 // pred_fallthru
          _
      $region48: #{decoder_forward.11} parent=5 // pred_fallthru
        _
      %p384 = scmp.le.s32.totalorder 1, %s22
      %p385 = scmp.lt.s32.totalorder %s22, 3
      %p386 = pnand %p384, %p385
      %p387 = pneg %p386
      // Predicated region
      $region61: #{decoder_forward.11} parent=5 // pred_check
        _
      $region62: #{decoder_forward.11} parent=5 // pred_check_branch
        %389 = sbr.rel (%p386) target = $region64
      $region63: #{decoder_forward.11} parent=5 // pred_region
        %s390 = ssub.s32 %s22, 1
        %p391 = scmp.lt.s32.totalorder %s27, 1
        %s392 = scalar_select %p391, %s27, 1
        %s393 = smul.addr %s392, 8
        %s394 = scalar_lea.vmem %s0, %s393
        %p395 = pneg %p48
        %p396 = pneg %p45
        %p397 = scmp.lt.s32.totalorder %s27, 1
        %s398 = scalar_select %p397, %s27, 1
        %s399 = smul.addr %s398, 8
        %s400 = scalar_lea.vmem %s1, %s399
        %p401 = pneg %p74
        %p402 = pneg %p71
        %p403 = scmp.lt.s32.totalorder %s27, 1
        %s404 = scalar_select %p403, %s27, 1
        %s405 = smul.addr %s404, 8
        %s406 = scalar_lea.vmem %s2, %s405
        %p407 = pneg %p100
        %p408 = pneg %p97
        %p409 = pneg %p121
        %p410 = pneg %p118
        %p411 = pneg %p142
        %p412 = pneg %p139
        %p413 = pneg %p163
        %p414 = pneg %p160
        %p415 = pneg %p184
        %p416 = pneg %p181
        %p417 = pneg %p205
        %p418 = pneg %p202
        %p419 = pneg %p226
        %p420 = pneg %p223
        %p421 = pneg %p247
        %p422 = pneg %p244
        %p423 = pneg %p268
        %p424 = pneg %p265
        %p425 = pneg %p294
        %p426 = pneg %p291
        %p427 = scmp.lt.s32.totalorder %s27, 1
        %s428 = scalar_select %p427, %s27, 1
        %s429 = smul.addr %s428, 8
        %s430 = scalar_lea.vmem %s11, %s429
        %p431 = pneg %p320
        %p432 = pneg %p317
        %s433 = sand.u32 %s307, 1
        %s434 = scalar_lea.sflag [#allocation3], %s433
        %s435 = sand.u32 %s307, 1
        %s436 = smul.addr %s435, 32
        %s437 = scalar_lea.vmem [#allocation2], %s436
        %p438 = scmp.lt.s32.totalorder %s27, 1
        %s439 = scalar_select %p438, %s27, 1
        %s440 = smul.addr %s439, 8
        %s441 = scalar_lea.vmem %s0, %s440
        %p442 = scmp.lt.s32.totalorder %s27, 1
        %s443 = scalar_select %p442, %s27, 1
        %s444 = smul.addr %s443, 8
        %s445 = scalar_lea.vmem %s1, %s444
        %p446 = scmp.lt.s32.totalorder %s27, 1
        %s447 = scalar_select %p446, %s27, 1
        %s448 = smul.addr %s447, 8
        %s449 = scalar_lea.vmem %s2, %s448
        %p450 = scmp.lt.s32.totalorder %s27, 1
        %s451 = scalar_select %p450, %s27, 1
        %s452 = smul.addr %s451, 8
        %s453 = scalar_lea.vmem %s11, %s452
        %v454 = vld [vmem:[%s441] sm:$0xff]
        %v455 = vld [vmem:[%s445] sm:$0xff]
        %v456 = vld [vmem:[%s449] sm:$0xff]
        %v457 = vld [vmem:[%s3] sm:$0xff]
        %v458 = vld [vmem:[%s3 + $0x8] sm:$0xff]
        %v459 = vld [vmem:[%s3 + $0x10] sm:$0xff]
        %v460 = vld [vmem:[%s3 + $0x18] sm:$0xff]
        %v461 = vld [vmem:[%s4] sm:$0x1]
        %v463 = vlaneseq
        %v464 = vshrl.u32 %v463, 7
        %v465 = vsub.s32 0, %v464
        %v466 = vrot.slane %v461, %v465
        %vm468 = vcmask 261120
        %v470 = vsel %vm468, %v454, 0
        %472 = vmatprep.subr.mxu0 0.0
        %473 = vmatpush1.msra.mxu0 %v457
        %474 = vmatprep.subr.mxu0 0.0
        %475 = vmatpush1.msra.mxu0 %v458
        %476 = vmatprep.subr.mxu0 0.0
        %477 = vmatpush1.msra.mxu0 %v459
        %478 = vmatprep.subr.mxu0 0.0
        %479 = vmatpush1.msra.mxu0 %v460
        %480 = vmatprep.subr.mxu0 0.0
        %481 = vmatpush1.msra.mxu0 0.0
        %482 = vmatprep.subr.mxu0 0.0
        %483 = vmatpush1.msra.mxu0 0.0
        %484 = vmatprep.subr.mxu0 0.0
        %485 = vmatpush1.msra.mxu0 0.0
        %486 = vmatprep.subr.mxu0 0.0
        %487 = vmatpush1.msra.mxu0 0.0
        %488 = vmatprep.subr.mxu0 0.0
        %489 = vmatpush1.msra.mxu0 0.0
        %490 = vmatprep.subr.mxu0 0.0
        %491 = vmatpush1.msra.mxu0 0.0
        %492 = vmatprep.subr.mxu0 0.0
        %493 = vmatpush1.msra.mxu0 0.0
        %494 = vmatprep.subr.mxu0 0.0
        %495 = vmatpush1.msra.mxu0 0.0
        %496 = vmatprep.subr.mxu0 0.0
        %497 = vmatpush1.msra.mxu0 0.0
        %498 = vmatprep.subr.mxu0 0.0
        %499 = vmatpush1.msra.mxu0 0.0
        %500 = vmatprep.subr.mxu0 0.0
        %501 = vmatpush1.msra.mxu0 0.0
        %502 = vmatprep.subr.mxu0 0.0
        %503 = vmatpush1.msra.mxu0 0.0
        %504 = vmatprep.subr.mxu0 0.0
        %505 = vmatpush1.msra.mxu0 0.0
        %506 = vmatprep.subr.mxu0 0.0
        %507 = vmatpush1.msra.mxu0 0.0
        %508 = vmatprep.subr.mxu0 0.0
        %509 = vmatpush1.msra.mxu0 0.0
        %510 = vmatprep.subr.mxu0 0.0
        %511 = vmatpush1.msra.mxu0 0.0
        %512 = vmatprep.subr.mxu0 0.0
        %513 = vmatpush1.msra.mxu0 0.0
        %514 = vmatprep.subr.mxu0 0.0
        %515 = vmatpush1.msra.mxu0 0.0
        %516 = vmatprep.subr.mxu0 0.0
        %517 = vmatpush1.msra.mxu0 0.0
        %518 = vmatprep.subr.mxu0 0.0
        %519 = vmatpush1.msra.mxu0 0.0
        %520 = vmatprep.subr.mxu0 0.0
        %521 = vmatpush1.msra.mxu0 0.0
        %522 = vmatprep.subr.mxu0 0.0
        %523 = vmatpush1.msra.mxu0 0.0
        %524 = vmatprep.subr.mxu0 0.0
        %525 = vmatpush1.msra.mxu0 0.0
        %526 = vmatprep.subr.mxu0 0.0
        %527 = vmatpush1.msra.mxu0 0.0
        %528 = vmatprep.subr.mxu0 0.0
        %529 = vmatpush1.msra.mxu0 0.0
        %530 = vmatprep.subr.mxu0 0.0
        %531 = vmatpush1.msra.mxu0 0.0
        %532 = vmatprep.subr.mxu0 0.0
        %533 = vmatpush1.msra.mxu0 0.0
        %534 = vmatprep.subr.mxu0 0.0
        %535 = vmatpush1.msra.mxu0 0.0
        %536 = vmatprep.mubr.f32.mxu0 0.0
        %537 = vmatmul.mubr.f32.gmra.mrb[0].mxu0 %v470
        %v538 = vpop.f32.mrb[0].mxu0
        %v539 = vadd.f32 %v466, %v538
        %v540 = vpop.f32.mrb[0].mxu0
        %541 = vdwg.mxu0
        %v542 = vld [vmem:[%s5] sm:$0xff]
        %v543 = vld [vmem:[%s5 + $0x8] sm:$0xff]
        %v544 = vld [vmem:[%s5 + $0x10] sm:$0xff]
        %v545 = vld [vmem:[%s5 + $0x18] sm:$0xff]
        %v546 = vld [vmem:[%s6] sm:$0x1]
        %v548 = vlaneseq
        %v549 = vshrl.u32 %v548, 7
        %v550 = vsub.s32 0, %v549
        %v551 = vrot.slane %v546, %v550
        %v554 = vsel %vm468, %v455, 0
        %556 = vmatprep.subr.mxu0 0.0
        %557 = vmatpush1.msra.mxu0 %v542
        %558 = vmatprep.subr.mxu0 0.0
        %559 = vmatpush1.msra.mxu0 %v543
        %560 = vmatprep.subr.mxu0 0.0
        %561 = vmatpush1.msra.mxu0 %v544
        %562 = vmatprep.subr.mxu0 0.0
        %563 = vmatpush1.msra.mxu0 %v545
        %564 = vmatprep.subr.mxu0 0.0
        %565 = vmatpush1.msra.mxu0 0.0
        %566 = vmatprep.subr.mxu0 0.0
        %567 = vmatpush1.msra.mxu0 0.0
        %568 = vmatprep.subr.mxu0 0.0
        %569 = vmatpush1.msra.mxu0 0.0
        %570 = vmatprep.subr.mxu0 0.0
        %571 = vmatpush1.msra.mxu0 0.0
        %572 = vmatprep.subr.mxu0 0.0
        %573 = vmatpush1.msra.mxu0 0.0
        %574 = vmatprep.subr.mxu0 0.0
        %575 = vmatpush1.msra.mxu0 0.0
        %576 = vmatprep.subr.mxu0 0.0
        %577 = vmatpush1.msra.mxu0 0.0
        %578 = vmatprep.subr.mxu0 0.0
        %579 = vmatpush1.msra.mxu0 0.0
        %580 = vmatprep.subr.mxu0 0.0
        %581 = vmatpush1.msra.mxu0 0.0
        %582 = vmatprep.subr.mxu0 0.0
        %583 = vmatpush1.msra.mxu0 0.0
        %584 = vmatprep.subr.mxu0 0.0
        %585 = vmatpush1.msra.mxu0 0.0
        %586 = vmatprep.subr.mxu0 0.0
        %587 = vmatpush1.msra.mxu0 0.0
        %588 = vmatprep.subr.mxu0 0.0
        %589 = vmatpush1.msra.mxu0 0.0
        %590 = vmatprep.subr.mxu0 0.0
        %591 = vmatpush1.msra.mxu0 0.0
        %592 = vmatprep.subr.mxu0 0.0
        %593 = vmatpush1.msra.mxu0 0.0
        %594 = vmatprep.subr.mxu0 0.0
        %595 = vmatpush1.msra.mxu0 0.0
        %596 = vmatprep.subr.mxu0 0.0
        %597 = vmatpush1.msra.mxu0 0.0
        %598 = vmatprep.subr.mxu0 0.0
        %599 = vmatpush1.msra.mxu0 0.0
        %600 = vmatprep.subr.mxu0 0.0
        %601 = vmatpush1.msra.mxu0 0.0
        %602 = vmatprep.subr.mxu0 0.0
        %603 = vmatpush1.msra.mxu0 0.0
        %604 = vmatprep.subr.mxu0 0.0
        %605 = vmatpush1.msra.mxu0 0.0
        %606 = vmatprep.subr.mxu0 0.0
        %607 = vmatpush1.msra.mxu0 0.0
        %608 = vmatprep.subr.mxu0 0.0
        %609 = vmatpush1.msra.mxu0 0.0
        %610 = vmatprep.subr.mxu0 0.0
        %611 = vmatpush1.msra.mxu0 0.0
        %612 = vmatprep.subr.mxu0 0.0
        %613 = vmatpush1.msra.mxu0 0.0
        %614 = vmatprep.subr.mxu0 0.0
        %615 = vmatpush1.msra.mxu0 0.0
        %616 = vmatprep.subr.mxu0 0.0
        %617 = vmatpush1.msra.mxu0 0.0
        %618 = vmatprep.subr.mxu0 0.0
        %619 = vmatpush1.msra.mxu0 0.0
        %620 = vmatprep.mubr.f32.mxu0 0.0
        %621 = vmatmul.mubr.f32.gmra.mrb[0].mxu0 %v554
        %v622 = vpop.f32.mrb[0].mxu0
        %v623 = vadd.f32 %v551, %v622
        %v624 = vpop.f32.mrb[0].mxu0
        %625 = vdwg.mxu0
        %vm626 = vcmask 64512
        %v628 = vsel %vm626, %v539, 0
        %v631 = vsel %vm626, %v623, 0
        %633 = vmatprep.subr.mxu0 0.0
        %634 = vmatpush1.xpose.msra.mxu0 %v631
        %635 = vmatprep.subr.mxu0 0.0
        %636 = vmatpush1.xpose.msra.mxu0 0.0
        %637 = vmatprep.subr.mxu0 0.0
        %638 = vmatpush1.xpose.msra.mxu0 0.0
        %639 = vmatprep.subr.mxu0 0.0
        %640 = vmatpush1.xpose.msra.mxu0 0.0
        %641 = vmatprep.subr.mxu0 0.0
        %642 = vmatpush1.xpose.msra.mxu0 0.0
        %643 = vmatprep.subr.mxu0 0.0
        %644 = vmatpush1.xpose.msra.mxu0 0.0
        %645 = vmatprep.subr.mxu0 0.0
        %646 = vmatpush1.xpose.msra.mxu0 0.0
        %647 = vmatprep.subr.mxu0 0.0
        %648 = vmatpush1.xpose.msra.mxu0 0.0
        %649 = vmatprep.subr.mxu0 0.0
        %650 = vmatpush1.xpose.msra.mxu0 0.0
        %651 = vmatprep.subr.mxu0 0.0
        %652 = vmatpush1.xpose.msra.mxu0 0.0
        %653 = vmatprep.subr.mxu0 0.0
        %654 = vmatpush1.xpose.msra.mxu0 0.0
        %655 = vmatprep.subr.mxu0 0.0
        %656 = vmatpush1.xpose.msra.mxu0 0.0
        %657 = vmatprep.subr.mxu0 0.0
        %658 = vmatpush1.xpose.msra.mxu0 0.0
        %659 = vmatprep.subr.mxu0 0.0
        %660 = vmatpush1.xpose.msra.mxu0 0.0
        %661 = vmatprep.subr.mxu0 0.0
        %662 = vmatpush1.xpose.msra.mxu0 0.0
        %663 = vmatprep.subr.mxu0 0.0
        %664 = vmatpush1.xpose.msra.mxu0 0.0
        %665 = vmatprep.subr.mxu0 0.0
        %666 = vmatpush1.xpose.msra.mxu0 0.0
        %667 = vmatprep.subr.mxu0 0.0
        %668 = vmatpush1.xpose.msra.mxu0 0.0
        %669 = vmatprep.subr.mxu0 0.0
        %670 = vmatpush1.xpose.msra.mxu0 0.0
        %671 = vmatprep.subr.mxu0 0.0
        %672 = vmatpush1.xpose.msra.mxu0 0.0
        %673 = vmatprep.subr.mxu0 0.0
        %674 = vmatpush1.xpose.msra.mxu0 0.0
        %675 = vmatprep.subr.mxu0 0.0
        %676 = vmatpush1.xpose.msra.mxu0 0.0
        %677 = vmatprep.subr.mxu0 0.0
        %678 = vmatpush1.xpose.msra.mxu0 0.0
        %679 = vmatprep.subr.mxu0 0.0
        %680 = vmatpush1.xpose.msra.mxu0 0.0
        %681 = vmatprep.subr.mxu0 0.0
        %682 = vmatpush1.xpose.msra.mxu0 0.0
        %683 = vmatprep.subr.mxu0 0.0
        %684 = vmatpush1.xpose.msra.mxu0 0.0
        %685 = vmatprep.subr.mxu0 0.0
        %686 = vmatpush1.xpose.msra.mxu0 0.0
        %687 = vmatprep.subr.mxu0 0.0
        %688 = vmatpush1.xpose.msra.mxu0 0.0
        %689 = vmatprep.subr.mxu0 0.0
        %690 = vmatpush1.xpose.msra.mxu0 0.0
        %691 = vmatprep.subr.mxu0 0.0
        %692 = vmatpush1.xpose.msra.mxu0 0.0
        %693 = vmatprep.subr.mxu0 0.0
        %694 = vmatpush1.xpose.msra.mxu0 0.0
        %695 = vmatprep.subr.mxu0 0.0
        %696 = vmatpush1.xpose.msra.mxu0 0.0
        %697 = vmatprep.mubr.f32.mxu0 0.0
        %698 = vmatmul.mubr.f32.gmra.mrb[0].mxu0 %v628
        %v699 = vpop.f32.mrb[0].mxu0
        %v700 = vadd.f32 0.0, %v699
        %v701 = vpop.f32.mrb[0].mxu0
        %702 = vdwg.mxu0
        %v703 = vmul.f32 %v700, 0.35355338
        %v704 = vadd.f32 %v703, %v456
        %v705 = vsel %vm626, %v704, -inf
        %706 = vmax.xlane.f32.xlu0 %v705
        %v707 = vpop.xlane.xlu0 %706
        %v708 = vsub.f32 %v704, %v707
        %v709 = vmul.f32 %v708, 1.442695
        %v710 = vpow.pop %v709
        %v711 = vsel %vm626, %v710, 0.0
        %712 = vadd.xlane.f32.xlu0 %v711
        %v713 = vpop.xlane.xlu0 %712
        %v714 = vrcp.pop %v713
        %v715 = vmul.f32 %v710, %v714
        %716 = vrot.lane.b32.xlu0 %v623, 96
        %v717 = vpop.permute.xlu0 %716
        %v720 = vsel %vm626, %v715, 0
        %722 = vmatprep.subr.mxu0 0.0
        %723 = vmatpush1.msra.mxu0 %v717
        %724 = vmatprep.subr.mxu0 0.0
        %725 = vmatpush1.msra.mxu0 0.0
        %726 = vmatprep.subr.mxu0 0.0
        %727 = vmatpush1.msra.mxu0 0.0
        %728 = vmatprep.subr.mxu0 0.0
        %729 = vmatpush1.msra.mxu0 0.0
        %730 = vmatprep.subr.mxu0 0.0
        %731 = vmatpush1.msra.mxu0 0.0
        %732 = vmatprep.subr.mxu0 0.0
        %733 = vmatpush1.msra.mxu0 0.0
        %734 = vmatprep.subr.mxu0 0.0
        %735 = vmatpush1.msra.mxu0 0.0
        %736 = vmatprep.subr.mxu0 0.0
        %737 = vmatpush1.msra.mxu0 0.0
        %738 = vmatprep.subr.mxu0 0.0
        %739 = vmatpush1.msra.mxu0 0.0
        %740 = vmatprep.subr.mxu0 0.0
        %741 = vmatpush1.msra.mxu0 0.0
        %742 = vmatprep.subr.mxu0 0.0
        %743 = vmatpush1.msra.mxu0 0.0
        %744 = vmatprep.subr.mxu0 0.0
        %745 = vmatpush1.msra.mxu0 0.0
        %746 = vmatprep.subr.mxu0 0.0
        %747 = vmatpush1.msra.mxu0 0.0
        %748 = vmatprep.subr.mxu0 0.0
        %749 = vmatpush1.msra.mxu0 0.0
        %750 = vmatprep.subr.mxu0 0.0
        %751 = vmatpush1.msra.mxu0 0.0
        %752 = vmatprep.subr.mxu0 0.0
        %753 = vmatpush1.msra.mxu0 0.0
        %754 = vmatprep.subr.mxu0 0.0
        %755 = vmatpush1.msra.mxu0 0.0
        %756 = vmatprep.subr.mxu0 0.0
        %757 = vmatpush1.msra.mxu0 0.0
        %758 = vmatprep.subr.mxu0 0.0
        %759 = vmatpush1.msra.mxu0 0.0
        %760 = vmatprep.subr.mxu0 0.0
        %761 = vmatpush1.msra.mxu0 0.0
        %762 = vmatprep.subr.mxu0 0.0
        %763 = vmatpush1.msra.mxu0 0.0
        %764 = vmatprep.subr.mxu0 0.0
        %765 = vmatpush1.msra.mxu0 0.0
        %766 = vmatprep.subr.mxu0 0.0
        %767 = vmatpush1.msra.mxu0 0.0
        %768 = vmatprep.subr.mxu0 0.0
        %769 = vmatpush1.msra.mxu0 0.0
        %770 = vmatprep.subr.mxu0 0.0
        %771 = vmatpush1.msra.mxu0 0.0
        %772 = vmatprep.subr.mxu0 0.0
        %773 = vmatpush1.msra.mxu0 0.0
        %774 = vmatprep.subr.mxu0 0.0
        %775 = vmatpush1.msra.mxu0 0.0
        %776 = vmatprep.subr.mxu0 0.0
        %777 = vmatpush1.msra.mxu0 0.0
        %778 = vmatprep.subr.mxu0 0.0
        %779 = vmatpush1.msra.mxu0 0.0
        %780 = vmatprep.subr.mxu0 0.0
        %781 = vmatpush1.msra.mxu0 0.0
        %782 = vmatprep.subr.mxu0 0.0
        %783 = vmatpush1.msra.mxu0 0.0
        %784 = vmatprep.subr.mxu0 0.0
        %785 = vmatpush1.msra.mxu0 0.0
        %786 = vmatprep.mubr.f32.mxu0 0.0
        %787 = vmatmul.mubr.f32.gmra.mrb[0].mxu0 %v720
        %v788 = vpop.f32.mrb[0].mxu0
        %v789 = vadd.f32 0.0, %v788
        %v790 = vpop.f32.mrb[0].mxu0
        %791 = vdwg.mxu0
        %v792 = vld [vmem:[%s7] sm:$0xff]
        %793 = vst.msk [vmem:[%s437] sm:$0xff] %vm626, %v715
        %794 = vrot.lane.b32.xlu0 %v539, 120
        %v795 = vpop.permute.xlu0 %794
        %796 = vrot.lane.b32.xlu0 %v623, 120
        %v797 = vpop.permute.xlu0 %796
        %v798 = vsel %vm626, %v795, 0
        %v800 = vsel %vm626, %v797, 0
        %802 = vmatprep.subr.mxu0 0.0
        %803 = vmatpush1.xpose.msra.mxu0 %v800
        %804 = vmatprep.subr.mxu0 0.0
        %805 = vmatpush1.xpose.msra.mxu0 0.0
        %806 = vmatprep.subr.mxu0 0.0
        %807 = vmatpush1.xpose.msra.mxu0 0.0
        %808 = vmatprep.subr.mxu0 0.0
        %809 = vmatpush1.xpose.msra.mxu0 0.0
        %810 = vmatprep.subr.mxu0 0.0
        %811 = vmatpush1.xpose.msra.mxu0 0.0
        %812 = vmatprep.subr.mxu0 0.0
        %813 = vmatpush1.xpose.msra.mxu0 0.0
        %814 = vmatprep.subr.mxu0 0.0
        %815 = vmatpush1.xpose.msra.mxu0 0.0
        %816 = vmatprep.subr.mxu0 0.0
        %817 = vmatpush1.xpose.msra.mxu0 0.0
        %818 = vmatprep.subr.mxu0 0.0
        %819 = vmatpush1.xpose.msra.mxu0 0.0
        %820 = vmatprep.subr.mxu0 0.0
        %821 = vmatpush1.xpose.msra.mxu0 0.0
        %822 = vmatprep.subr.mxu0 0.0
        %823 = vmatpush1.xpose.msra.mxu0 0.0
        %824 = vmatprep.subr.mxu0 0.0
        %825 = vmatpush1.xpose.msra.mxu0 0.0
        %826 = vmatprep.subr.mxu0 0.0
        %827 = vmatpush1.xpose.msra.mxu0 0.0
        %828 = vmatprep.subr.mxu0 0.0
        %829 = vmatpush1.xpose.msra.mxu0 0.0
        %830 = vmatprep.subr.mxu0 0.0
        %831 = vmatpush1.xpose.msra.mxu0 0.0
        %832 = vmatprep.subr.mxu0 0.0
        %833 = vmatpush1.xpose.msra.mxu0 0.0
        %834 = vmatprep.subr.mxu0 0.0
        %835 = vmatpush1.xpose.msra.mxu0 0.0
        %836 = vmatprep.subr.mxu0 0.0
        %837 = vmatpush1.xpose.msra.mxu0 0.0
        %838 = vmatprep.subr.mxu0 0.0
        %839 = vmatpush1.xpose.msra.mxu0 0.0
        %840 = vmatprep.subr.mxu0 0.0
        %841 = vmatpush1.xpose.msra.mxu0 0.0
        %842 = vmatprep.subr.mxu0 0.0
        %843 = vmatpush1.xpose.msra.mxu0 0.0
        %844 = vmatprep.subr.mxu0 0.0
        %845 = vmatpush1.xpose.msra.mxu0 0.0
        %846 = vmatprep.subr.mxu0 0.0
        %847 = vmatpush1.xpose.msra.mxu0 0.0
        %848 = vmatprep.subr.mxu0 0.0
        %849 = vmatpush1.xpose.msra.mxu0 0.0
        %850 = vmatprep.subr.mxu0 0.0
        %851 = vmatpush1.xpose.msra.mxu0 0.0
        %852 = vmatprep.subr.mxu0 0.0
        %853 = vmatpush1.xpose.msra.mxu0 0.0
        %854 = vmatprep.subr.mxu0 0.0
        %855 = vmatpush1.xpose.msra.mxu0 0.0
        %856 = vmatprep.subr.mxu0 0.0
        %857 = vmatpush1.xpose.msra.mxu0 0.0
        %858 = vmatprep.subr.mxu0 0.0
        %859 = vmatpush1.xpose.msra.mxu0 0.0
        %860 = vmatprep.subr.mxu0 0.0
        %861 = vmatpush1.xpose.msra.mxu0 0.0
        %862 = vmatprep.subr.mxu0 0.0
        %863 = vmatpush1.xpose.msra.mxu0 0.0
        %864 = vmatprep.subr.mxu0 0.0
        %865 = vmatpush1.xpose.msra.mxu0 0.0
        %866 = vmatprep.mubr.f32.mxu0 0.0
        %867 = vmatmul.mubr.f32.gmra.mrb[0].mxu0 %v798
        %v868 = vpop.f32.mrb[0].mxu0
        %v869 = vadd.f32 0.0, %v868
        %v870 = vpop.f32.mrb[0].mxu0
        %871 = vdwg.mxu0
        %v872 = vmul.f32 %v869, 0.35355338
        %v873 = vadd.f32 %v872, %v456
        %v874 = vsel %vm626, %v873, -inf
        %875 = vmax.xlane.f32.xlu0 %v874
        %v876 = vpop.xlane.xlu0 %875
        %v877 = vsub.f32 %v873, %v876
        %v878 = vmul.f32 %v877, 1.442695
        %v879 = vpow.pop %v878
        %v880 = vsel %vm626, %v879, 0.0
        %881 = vadd.xlane.f32.xlu0 %v880
        %v882 = vpop.xlane.xlu0 %881
        %v883 = vrcp.pop %v882
        %v884 = vmul.f32 %v879, %v883
        %885 = vrot.lane.b32.xlu0 %v623, 88
        %v886 = vpop.permute.xlu0 %885
        %v889 = vsel %vm626, %v884, 0
        %891 = vmatprep.subr.mxu0 0.0
        %892 = vmatpush1.msra.mxu0 %v886
        %893 = vmatprep.subr.mxu0 0.0
        %894 = vmatpush1.msra.mxu0 0.0
        %895 = vmatprep.subr.mxu0 0.0
        %896 = vmatpush1.msra.mxu0 0.0
        %897 = vmatprep.subr.mxu0 0.0
        %898 = vmatpush1.msra.mxu0 0.0
        %899 = vmatprep.subr.mxu0 0.0
        %900 = vmatpush1.msra.mxu0 0.0
        %901 = vmatprep.subr.mxu0 0.0
        %902 = vmatpush1.msra.mxu0 0.0
        %903 = vmatprep.subr.mxu0 0.0
        %904 = vmatpush1.msra.mxu0 0.0
        %905 = vmatprep.subr.mxu0 0.0
        %906 = vmatpush1.msra.mxu0 0.0
        %907 = vmatprep.subr.mxu0 0.0
        %908 = vmatpush1.msra.mxu0 0.0
        %909 = vmatprep.subr.mxu0 0.0
        %910 = vmatpush1.msra.mxu0 0.0
        %911 = vmatprep.subr.mxu0 0.0
        %912 = vmatpush1.msra.mxu0 0.0
        %913 = vmatprep.subr.mxu0 0.0
        %914 = vmatpush1.msra.mxu0 0.0
        %915 = vmatprep.subr.mxu0 0.0
        %916 = vmatpush1.msra.mxu0 0.0
        %917 = vmatprep.subr.mxu0 0.0
        %918 = vmatpush1.msra.mxu0 0.0
        %919 = vmatprep.subr.mxu0 0.0
        %920 = vmatpush1.msra.mxu0 0.0
        %921 = vmatprep.subr.mxu0 0.0
        %922 = vmatpush1.msra.mxu0 0.0
        %923 = vmatprep.subr.mxu0 0.0
        %924 = vmatpush1.msra.mxu0 0.0
        %925 = vmatprep.subr.mxu0 0.0
        %926 = vmatpush1.msra.mxu0 0.0
        %927 = vmatprep.subr.mxu0 0.0
        %928 = vmatpush1.msra.mxu0 0.0
        %929 = vmatprep.subr.mxu0 0.0
        %930 = vmatpush1.msra.mxu0 0.0
        %931 = vmatprep.subr.mxu0 0.0
        %932 = vmatpush1.msra.mxu0 0.0
        %933 = vmatprep.subr.mxu0 0.0
        %934 = vmatpush1.msra.mxu0 0.0
        %935 = vmatprep.subr.mxu0 0.0
        %936 = vmatpush1.msra.mxu0 0.0
        %937 = vmatprep.subr.mxu0 0.0
        %938 = vmatpush1.msra.mxu0 0.0
        %939 = vmatprep.subr.mxu0 0.0
        %940 = vmatpush1.msra.mxu0 0.0
        %941 = vmatprep.subr.mxu0 0.0
        %942 = vmatpush1.msra.mxu0 0.0
        %943 = vmatprep.subr.mxu0 0.0
        %944 = vmatpush1.msra.mxu0 0.0
        %945 = vmatprep.subr.mxu0 0.0
        %946 = vmatpush1.msra.mxu0 0.0
        %947 = vmatprep.subr.mxu0 0.0
        %948 = vmatpush1.msra.mxu0 0.0
        %949 = vmatprep.subr.mxu0 0.0
        %950 = vmatpush1.msra.mxu0 0.0
        %951 = vmatprep.subr.mxu0 0.0
        %952 = vmatpush1.msra.mxu0 0.0
        %953 = vmatprep.subr.mxu0 0.0
        %954 = vmatpush1.msra.mxu0 0.0
        %955 = vmatprep.mubr.f32.mxu0 0.0
        %956 = vmatmul.mubr.f32.gmra.mrb[0].mxu0 %v889
        %v957 = vpop.f32.mrb[0].mxu0
        %v958 = vadd.f32 0.0, %v957
        %v959 = vpop.f32.mrb[0].mxu0
        %960 = vdwg.mxu0
        %v961 = vld [vmem:[%s7 + $0x8] sm:$0xff]
        %v963 = vsel %vm626, %v958, 0
        %965 = vmatprep.subr.mxu0 0.0
        %966 = vmatpush1.msra.mxu0 %v961
        %967 = vmatprep.subr.mxu0 0.0
        %968 = vmatpush1.msra.mxu0 0.0
        %969 = vmatprep.subr.mxu0 0.0
        %970 = vmatpush1.msra.mxu0 0.0
        %971 = vmatprep.subr.mxu0 0.0
        %972 = vmatpush1.msra.mxu0 0.0
        %973 = vmatprep.subr.mxu0 0.0
        %974 = vmatpush1.msra.mxu0 0.0
        %975 = vmatprep.subr.mxu0 0.0
        %976 = vmatpush1.msra.mxu0 0.0
        %977 = vmatprep.subr.mxu0 0.0
        %978 = vmatpush1.msra.mxu0 0.0
        %979 = vmatprep.subr.mxu0 0.0
        %980 = vmatpush1.msra.mxu0 0.0
        %981 = vmatprep.subr.mxu0 0.0
        %982 = vmatpush1.msra.mxu0 0.0
        %983 = vmatprep.subr.mxu0 0.0
        %984 = vmatpush1.msra.mxu0 0.0
        %985 = vmatprep.subr.mxu0 0.0
        %986 = vmatpush1.msra.mxu0 0.0
        %987 = vmatprep.subr.mxu0 0.0
        %988 = vmatpush1.msra.mxu0 0.0
        %989 = vmatprep.subr.mxu0 0.0
        %990 = vmatpush1.msra.mxu0 0.0
        %991 = vmatprep.subr.mxu0 0.0
        %992 = vmatpush1.msra.mxu0 0.0
        %993 = vmatprep.subr.mxu0 0.0
        %994 = vmatpush1.msra.mxu0 0.0
        %995 = vmatprep.subr.mxu0 0.0
        %996 = vmatpush1.msra.mxu0 0.0
        %997 = vmatprep.subr.mxu0 0.0
        %998 = vmatpush1.msra.mxu0 0.0
        %999 = vmatprep.subr.mxu0 0.0
        %1000 = vmatpush1.msra.mxu0 0.0
        %1001 = vmatprep.subr.mxu0 0.0
        %1002 = vmatpush1.msra.mxu0 0.0
        %1003 = vmatprep.subr.mxu0 0.0
        %1004 = vmatpush1.msra.mxu0 0.0
        %1005 = vmatprep.subr.mxu0 0.0
        %1006 = vmatpush1.msra.mxu0 0.0
        %1007 = vmatprep.subr.mxu0 0.0
        %1008 = vmatpush1.msra.mxu0 0.0
        %1009 = vmatprep.subr.mxu0 0.0
        %1010 = vmatpush1.msra.mxu0 0.0
        %1011 = vmatprep.subr.mxu0 0.0
        %1012 = vmatpush1.msra.mxu0 0.0
        %1013 = vmatprep.subr.mxu0 0.0
        %1014 = vmatpush1.msra.mxu0 0.0
        %1015 = vmatprep.subr.mxu0 0.0
        %1016 = vmatpush1.msra.mxu0 0.0
        %1017 = vmatprep.subr.mxu0 0.0
        %1018 = vmatpush1.msra.mxu0 0.0
        %1019 = vmatprep.subr.mxu0 0.0
        %1020 = vmatpush1.msra.mxu0 0.0
        %1021 = vmatprep.subr.mxu0 0.0
        %1022 = vmatpush1.msra.mxu0 0.0
        %1023 = vmatprep.subr.mxu0 0.0
        %1024 = vmatpush1.msra.mxu0 0.0
        %1025 = vmatprep.subr.mxu0 0.0
        %1026 = vmatpush1.msra.mxu0 0.0
        %1027 = vmatprep.subr.mxu0 0.0
        %1028 = vmatpush1.msra.mxu0 0.0
        %1029 = vmatprep.mubr.f32.mxu0 0.0
        %1030 = vmatmul.mubr.f32.gmra.mrb[0].mxu0 %v963
        %v1031 = vpop.f32.mrb[0].mxu0
        %v1032 = vadd.f32 0.0, %v1031
        %v1033 = vpop.f32.mrb[0].mxu0
        %1034 = vdwg.mxu0
        %v1036 = vsel %vm626, %v789, 0
        %1038 = vmatprep.subr.mxu0 0.0
        %1039 = vmatpush1.msra.mxu0 %v792
        %1040 = vmatprep.subr.mxu0 0.0
        %1041 = vmatpush1.msra.mxu0 0.0
        %1042 = vmatprep.subr.mxu0 0.0
        %1043 = vmatpush1.msra.mxu0 0.0
        %1044 = vmatprep.subr.mxu0 0.0
        %1045 = vmatpush1.msra.mxu0 0.0
        %1046 = vmatprep.subr.mxu0 0.0
        %1047 = vmatpush1.msra.mxu0 0.0
        %1048 = vmatprep.subr.mxu0 0.0
        %1049 = vmatpush1.msra.mxu0 0.0
        %1050 = vmatprep.subr.mxu0 0.0
        %1051 = vmatpush1.msra.mxu0 0.0
        %1052 = vmatprep.subr.mxu0 0.0
        %1053 = vmatpush1.msra.mxu0 0.0
        %1054 = vmatprep.subr.mxu0 0.0
        %1055 = vmatpush1.msra.mxu0 0.0
        %1056 = vmatprep.subr.mxu0 0.0
        %1057 = vmatpush1.msra.mxu0 0.0
        %1058 = vmatprep.subr.mxu0 0.0
        %1059 = vmatpush1.msra.mxu0 0.0
        %1060 = vmatprep.subr.mxu0 0.0
        %1061 = vmatpush1.msra.mxu0 0.0
        %1062 = vmatprep.subr.mxu0 0.0
        %1063 = vmatpush1.msra.mxu0 0.0
        %1064 = vmatprep.subr.mxu0 0.0
        %1065 = vmatpush1.msra.mxu0 0.0
        %1066 = vmatprep.subr.mxu0 0.0
        %1067 = vmatpush1.msra.mxu0 0.0
        %1068 = vmatprep.subr.mxu0 0.0
        %1069 = vmatpush1.msra.mxu0 0.0
        %1070 = vmatprep.subr.mxu0 0.0
        %1071 = vmatpush1.msra.mxu0 0.0
        %1072 = vmatprep.subr.mxu0 0.0
        %1073 = vmatpush1.msra.mxu0 0.0
        %1074 = vmatprep.subr.mxu0 0.0
        %1075 = vmatpush1.msra.mxu0 0.0
        %1076 = vmatprep.subr.mxu0 0.0
        %1077 = vmatpush1.msra.mxu0 0.0
        %1078 = vmatprep.subr.mxu0 0.0
        %1079 = vmatpush1.msra.mxu0 0.0
        %1080 = vmatprep.subr.mxu0 0.0
        %1081 = vmatpush1.msra.mxu0 0.0
        %1082 = vmatprep.subr.mxu0 0.0
        %1083 = vmatpush1.msra.mxu0 0.0
        %1084 = vmatprep.subr.mxu0 0.0
        %1085 = vmatpush1.msra.mxu0 0.0
        %1086 = vmatprep.subr.mxu0 0.0
        %1087 = vmatpush1.msra.mxu0 0.0
        %1088 = vmatprep.subr.mxu0 0.0
        %1089 = vmatpush1.msra.mxu0 0.0
        %1090 = vmatprep.subr.mxu0 0.0
        %1091 = vmatpush1.msra.mxu0 0.0
        %1092 = vmatprep.subr.mxu0 0.0
        %1093 = vmatpush1.msra.mxu0 0.0
        %1094 = vmatprep.subr.mxu0 0.0
        %1095 = vmatpush1.msra.mxu0 0.0
        %1096 = vmatprep.subr.mxu0 0.0
        %1097 = vmatpush1.msra.mxu0 0.0
        %1098 = vmatprep.subr.mxu0 0.0
        %1099 = vmatpush1.msra.mxu0 0.0
        %1100 = vmatprep.subr.mxu0 0.0
        %1101 = vmatpush1.msra.mxu0 0.0
        %1102 = vmatprep.mubr.f32.mxu0 0.0
        %1103 = vmatmul.mubr.f32.gmra.mrb[0].mxu0 %v1036
        %v1104 = vpop.f32.mrb[0].mxu0
        %v1105 = vadd.f32 %v1032, %v1104
        %v1106 = vpop.f32.mrb[0].mxu0
        %1107 = vdwg.mxu0
        %s1108 = scalar_lea.vmem %s437, 8 [#allocation2]
        %1109 = vst.msk [vmem:[%s1108] sm:$0xff] %vm626, %v884
        %1110 = vrot.lane.b32.xlu0 %v539, 112
        %v1111 = vpop.permute.xlu0 %1110
        %1112 = vrot.lane.b32.xlu0 %v623, 112
        %v1113 = vpop.permute.xlu0 %1112
        %v1114 = vsel %vm626, %v1111, 0
        %v1116 = vsel %vm626, %v1113, 0
        %1118 = vmatprep.subr.mxu0 0.0
        %1119 = vmatpush1.xpose.msra.mxu0 %v1116
        %1120 = vmatprep.subr.mxu0 0.0
        %1121 = vmatpush1.xpose.msra.mxu0 0.0
        %1122 = vmatprep.subr.mxu0 0.0
        %1123 = vmatpush1.xpose.msra.mxu0 0.0
        %1124 = vmatprep.subr.mxu0 0.0
        %1125 = vmatpush1.xpose.msra.mxu0 0.0
        %1126 = vmatprep.subr.mxu0 0.0
        %1127 = vmatpush1.xpose.msra.mxu0 0.0
        %1128 = vmatprep.subr.mxu0 0.0
        %1129 = vmatpush1.xpose.msra.mxu0 0.0
        %1130 = vmatprep.subr.mxu0 0.0
        %1131 = vmatpush1.xpose.msra.mxu0 0.0
        %1132 = vmatprep.subr.mxu0 0.0
        %1133 = vmatpush1.xpose.msra.mxu0 0.0
        %1134 = vmatprep.subr.mxu0 0.0
        %1135 = vmatpush1.xpose.msra.mxu0 0.0
        %1136 = vmatprep.subr.mxu0 0.0
        %1137 = vmatpush1.xpose.msra.mxu0 0.0
        %1138 = vmatprep.subr.mxu0 0.0
        %1139 = vmatpush1.xpose.msra.mxu0 0.0
        %1140 = vmatprep.subr.mxu0 0.0
        %1141 = vmatpush1.xpose.msra.mxu0 0.0
        %1142 = vmatprep.subr.mxu0 0.0
        %1143 = vmatpush1.xpose.msra.mxu0 0.0
        %1144 = vmatprep.subr.mxu0 0.0
        %1145 = vmatpush1.xpose.msra.mxu0 0.0
        %1146 = vmatprep.subr.mxu0 0.0
        %1147 = vmatpush1.xpose.msra.mxu0 0.0
        %1148 = vmatprep.subr.mxu0 0.0
        %1149 = vmatpush1.xpose.msra.mxu0 0.0
        %1150 = vmatprep.subr.mxu0 0.0
        %1151 = vmatpush1.xpose.msra.mxu0 0.0
        %1152 = vmatprep.subr.mxu0 0.0
        %1153 = vmatpush1.xpose.msra.mxu0 0.0
        %1154 = vmatprep.subr.mxu0 0.0
        %1155 = vmatpush1.xpose.msra.mxu0 0.0
        %1156 = vmatprep.subr.mxu0 0.0
        %1157 = vmatpush1.xpose.msra.mxu0 0.0
        %1158 = vmatprep.subr.mxu0 0.0
        %1159 = vmatpush1.xpose.msra.mxu0 0.0
        %1160 = vmatprep.subr.mxu0 0.0
        %1161 = vmatpush1.xpose.msra.mxu0 0.0
        %1162 = vmatprep.subr.mxu0 0.0
        %1163 = vmatpush1.xpose.msra.mxu0 0.0
        %1164 = vmatprep.subr.mxu0 0.0
        %1165 = vmatpush1.xpose.msra.mxu0 0.0
        %1166 = vmatprep.subr.mxu0 0.0
        %1167 = vmatpush1.xpose.msra.mxu0 0.0
        %1168 = vmatprep.subr.mxu0 0.0
        %1169 = vmatpush1.xpose.msra.mxu0 0.0
        %1170 = vmatprep.subr.mxu0 0.0
        %1171 = vmatpush1.xpose.msra.mxu0 0.0
        %1172 = vmatprep.subr.mxu0 0.0
        %1173 = vmatpush1.xpose.msra.mxu0 0.0
        %1174 = vmatprep.subr.mxu0 0.0
        %1175 = vmatpush1.xpose.msra.mxu0 0.0
        %1176 = vmatprep.subr.mxu0 0.0
        %1177 = vmatpush1.xpose.msra.mxu0 0.0
        %1178 = vmatprep.subr.mxu0 0.0
        %1179 = vmatpush1.xpose.msra.mxu0 0.0
        %1180 = vmatprep.subr.mxu0 0.0
        %1181 = vmatpush1.xpose.msra.mxu0 0.0
        %1182 = vmatprep.mubr.f32.mxu0 0.0
        %1183 = vmatmul.mubr.f32.gmra.mrb[0].mxu0 %v1114
        %v1184 = vpop.f32.mrb[0].mxu0
        %v1185 = vadd.f32 0.0, %v1184
        %v1186 = vpop.f32.mrb[0].mxu0
        %1187 = vdwg.mxu0
        %v1188 = vmul.f32 %v1185, 0.35355338
        %v1189 = vadd.f32 %v1188, %v456
        %v1190 = vsel %vm626, %v1189, -inf
        %1191 = vmax.xlane.f32.xlu0 %v1190
        %v1192 = vpop.xlane.xlu0 %1191
        %v1193 = vsub.f32 %v1189, %v1192
        %v1194 = vmul.f32 %v1193, 1.442695
        %v1195 = vpow.pop %v1194
        %v1196 = vsel %vm626, %v1195, 0.0
        %1197 = vadd.xlane.f32.xlu0 %v1196
        %v1198 = vpop.xlane.xlu0 %1197
        %v1199 = vrcp.pop %v1198
        %v1200 = vmul.f32 %v1195, %v1199
        %1201 = vrot.lane.b32.xlu0 %v623, 80
        %v1202 = vpop.permute.xlu0 %1201
        %v1205 = vsel %vm626, %v1200, 0
        %1207 = vmatprep.subr.mxu0 0.0
        %1208 = vmatpush1.msra.mxu0 %v1202
        %1209 = vmatprep.subr.mxu0 0.0
        %1210 = vmatpush1.msra.mxu0 0.0
        %1211 = vmatprep.subr.mxu0 0.0
        %1212 = vmatpush1.msra.mxu0 0.0
        %1213 = vmatprep.subr.mxu0 0.0
        %1214 = vmatpush1.msra.mxu0 0.0
        %1215 = vmatprep.subr.mxu0 0.0
        %1216 = vmatpush1.msra.mxu0 0.0
        %1217 = vmatprep.subr.mxu0 0.0
        %1218 = vmatpush1.msra.mxu0 0.0
        %1219 = vmatprep.subr.mxu0 0.0
        %1220 = vmatpush1.msra.mxu0 0.0
        %1221 = vmatprep.subr.mxu0 0.0
        %1222 = vmatpush1.msra.mxu0 0.0
        %1223 = vmatprep.subr.mxu0 0.0
        %1224 = vmatpush1.msra.mxu0 0.0
        %1225 = vmatprep.subr.mxu0 0.0
        %1226 = vmatpush1.msra.mxu0 0.0
        %1227 = vmatprep.subr.mxu0 0.0
        %1228 = vmatpush1.msra.mxu0 0.0
        %1229 = vmatprep.subr.mxu0 0.0
        %1230 = vmatpush1.msra.mxu0 0.0
        %1231 = vmatprep.subr.mxu0 0.0
        %1232 = vmatpush1.msra.mxu0 0.0
        %1233 = vmatprep.subr.mxu0 0.0
        %1234 = vmatpush1.msra.mxu0 0.0
        %1235 = vmatprep.subr.mxu0 0.0
        %1236 = vmatpush1.msra.mxu0 0.0
        %1237 = vmatprep.subr.mxu0 0.0
        %1238 = vmatpush1.msra.mxu0 0.0
        %1239 = vmatprep.subr.mxu0 0.0
        %1240 = vmatpush1.msra.mxu0 0.0
        %1241 = vmatprep.subr.mxu0 0.0
        %1242 = vmatpush1.msra.mxu0 0.0
        %1243 = vmatprep.subr.mxu0 0.0
        %1244 = vmatpush1.msra.mxu0 0.0
        %1245 = vmatprep.subr.mxu0 0.0
        %1246 = vmatpush1.msra.mxu0 0.0
        %1247 = vmatprep.subr.mxu0 0.0
        %1248 = vmatpush1.msra.mxu0 0.0
        %1249 = vmatprep.subr.mxu0 0.0
        %1250 = vmatpush1.msra.mxu0 0.0
        %1251 = vmatprep.subr.mxu0 0.0
        %1252 = vmatpush1.msra.mxu0 0.0
        %1253 = vmatprep.subr.mxu0 0.0
        %1254 = vmatpush1.msra.mxu0 0.0
        %1255 = vmatprep.subr.mxu0 0.0
        %1256 = vmatpush1.msra.mxu0 0.0
        %1257 = vmatprep.subr.mxu0 0.0
        %1258 = vmatpush1.msra.mxu0 0.0
        %1259 = vmatprep.subr.mxu0 0.0
        %1260 = vmatpush1.msra.mxu0 0.0
        %1261 = vmatprep.subr.mxu0 0.0
        %1262 = vmatpush1.msra.mxu0 0.0
        %1263 = vmatprep.subr.mxu0 0.0
        %1264 = vmatpush1.msra.mxu0 0.0
        %1265 = vmatprep.subr.mxu0 0.0
        %1266 = vmatpush1.msra.mxu0 0.0
        %1267 = vmatprep.subr.mxu0 0.0
        %1268 = vmatpush1.msra.mxu0 0.0
        %1269 = vmatprep.subr.mxu0 0.0
        %1270 = vmatpush1.msra.mxu0 0.0
        %1271 = vmatprep.mubr.f32.mxu0 0.0
        %1272 = vmatmul.mubr.f32.gmra.mrb[0].mxu0 %v1205
        %v1273 = vpop.f32.mrb[0].mxu0
        %v1274 = vadd.f32 0.0, %v1273
        %v1275 = vpop.f32.mrb[0].mxu0
        %1276 = vdwg.mxu0
        %v1277 = vld [vmem:[%s7 + $0x10] sm:$0xff]
        %v1279 = vsel %vm626, %v1274, 0
        %1281 = vmatprep.subr.mxu0 0.0
        %1282 = vmatpush1.msra.mxu0 %v1277
        %1283 = vmatprep.subr.mxu0 0.0
        %1284 = vmatpush1.msra.mxu0 0.0
        %1285 = vmatprep.subr.mxu0 0.0
        %1286 = vmatpush1.msra.mxu0 0.0
        %1287 = vmatprep.subr.mxu0 0.0
        %1288 = vmatpush1.msra.mxu0 0.0
        %1289 = vmatprep.subr.mxu0 0.0
        %1290 = vmatpush1.msra.mxu0 0.0
        %1291 = vmatprep.subr.mxu0 0.0
        %1292 = vmatpush1.msra.mxu0 0.0
        %1293 = vmatprep.subr.mxu0 0.0
        %1294 = vmatpush1.msra.mxu0 0.0
        %1295 = vmatprep.subr.mxu0 0.0
        %1296 = vmatpush1.msra.mxu0 0.0
        %1297 = vmatprep.subr.mxu0 0.0
        %1298 = vmatpush1.msra.mxu0 0.0
        %1299 = vmatprep.subr.mxu0 0.0
        %1300 = vmatpush1.msra.mxu0 0.0
        %1301 = vmatprep.subr.mxu0 0.0
        %1302 = vmatpush1.msra.mxu0 0.0
        %1303 = vmatprep.subr.mxu0 0.0
        %1304 = vmatpush1.msra.mxu0 0.0
        %1305 = vmatprep.subr.mxu0 0.0
        %1306 = vmatpush1.msra.mxu0 0.0
        %1307 = vmatprep.subr.mxu0 0.0
        %1308 = vmatpush1.msra.mxu0 0.0
        %1309 = vmatprep.subr.mxu0 0.0
        %1310 = vmatpush1.msra.mxu0 0.0
        %1311 = vmatprep.subr.mxu0 0.0
        %1312 = vmatpush1.msra.mxu0 0.0
        %1313 = vmatprep.subr.mxu0 0.0
        %1314 = vmatpush1.msra.mxu0 0.0
        %1315 = vmatprep.subr.mxu0 0.0
        %1316 = vmatpush1.msra.mxu0 0.0
        %1317 = vmatprep.subr.mxu0 0.0
        %1318 = vmatpush1.msra.mxu0 0.0
        %1319 = vmatprep.subr.mxu0 0.0
        %1320 = vmatpush1.msra.mxu0 0.0
        %1321 = vmatprep.subr.mxu0 0.0
        %1322 = vmatpush1.msra.mxu0 0.0
        %1323 = vmatprep.subr.mxu0 0.0
        %1324 = vmatpush1.msra.mxu0 0.0
        %1325 = vmatprep.subr.mxu0 0.0
        %1326 = vmatpush1.msra.mxu0 0.0
        %1327 = vmatprep.subr.mxu0 0.0
        %1328 = vmatpush1.msra.mxu0 0.0
        %1329 = vmatprep.subr.mxu0 0.0
        %1330 = vmatpush1.msra.mxu0 0.0
        %1331 = vmatprep.subr.mxu0 0.0
        %1332 = vmatpush1.msra.mxu0 0.0
        %1333 = vmatprep.subr.mxu0 0.0
        %1334 = vmatpush1.msra.mxu0 0.0
        %1335 = vmatprep.subr.mxu0 0.0
        %1336 = vmatpush1.msra.mxu0 0.0
        %1337 = vmatprep.subr.mxu0 0.0
        %1338 = vmatpush1.msra.mxu0 0.0
        %1339 = vmatprep.subr.mxu0 0.0
        %1340 = vmatpush1.msra.mxu0 0.0
        %1341 = vmatprep.subr.mxu0 0.0
        %1342 = vmatpush1.msra.mxu0 0.0
        %1343 = vmatprep.subr.mxu0 0.0
        %1344 = vmatpush1.msra.mxu0 0.0
        %1345 = vmatprep.mubr.f32.mxu0 0.0
        %1346 = vmatmul.mubr.f32.gmra.mrb[0].mxu0 %v1279
        %v1347 = vpop.f32.mrb[0].mxu0
        %v1348 = vadd.f32 0.0, %v1347
        %v1349 = vpop.f32.mrb[0].mxu0
        %1350 = vdwg.mxu0
        %v1351 = vadd.f32 %v1105, %v1348
        %s1352 = scalar_lea.vmem %s437, 16 [#allocation2]
        %1353 = vst.msk [vmem:[%s1352] sm:$0xff] %vm626, %v1200
        %1354 = vrot.lane.b32.xlu0 %v539, 104
        %v1355 = vpop.permute.xlu0 %1354
        %1356 = vrot.lane.b32.xlu0 %v623, 104
        %v1357 = vpop.permute.xlu0 %1356
        %v1358 = vsel %vm626, %v1355, 0
        %v1360 = vsel %vm626, %v1357, 0
        %1362 = vmatprep.subr.mxu0 0.0
        %1363 = vmatpush1.xpose.msra.mxu0 %v1360
        %1364 = vmatprep.subr.mxu0 0.0
        %1365 = vmatpush1.xpose.msra.mxu0 0.0
        %1366 = vmatprep.subr.mxu0 0.0
        %1367 = vmatpush1.xpose.msra.mxu0 0.0
        %1368 = vmatprep.subr.mxu0 0.0
        %1369 = vmatpush1.xpose.msra.mxu0 0.0
        %1370 = vmatprep.subr.mxu0 0.0
        %1371 = vmatpush1.xpose.msra.mxu0 0.0
        %1372 = vmatprep.subr.mxu0 0.0
        %1373 = vmatpush1.xpose.msra.mxu0 0.0
        %1374 = vmatprep.subr.mxu0 0.0
        %1375 = vmatpush1.xpose.msra.mxu0 0.0
        %1376 = vmatprep.subr.mxu0 0.0
        %1377 = vmatpush1.xpose.msra.mxu0 0.0
        %1378 = vmatprep.subr.mxu0 0.0
        %1379 = vmatpush1.xpose.msra.mxu0 0.0
        %1380 = vmatprep.subr.mxu0 0.0
        %1381 = vmatpush1.xpose.msra.mxu0 0.0
        %1382 = vmatprep.subr.mxu0 0.0
        %1383 = vmatpush1.xpose.msra.mxu0 0.0
        %1384 = vmatprep.subr.mxu0 0.0
        %1385 = vmatpush1.xpose.msra.mxu0 0.0
        %1386 = vmatprep.subr.mxu0 0.0
        %1387 = vmatpush1.xpose.msra.mxu0 0.0
        %1388 = vmatprep.subr.mxu0 0.0
        %1389 = vmatpush1.xpose.msra.mxu0 0.0
        %1390 = vmatprep.subr.mxu0 0.0
        %1391 = vmatpush1.xpose.msra.mxu0 0.0
        %1392 = vmatprep.subr.mxu0 0.0
        %1393 = vmatpush1.xpose.msra.mxu0 0.0
        %1394 = vmatprep.subr.mxu0 0.0
        %1395 = vmatpush1.xpose.msra.mxu0 0.0
        %1396 = vmatprep.subr.mxu0 0.0
        %1397 = vmatpush1.xpose.msra.mxu0 0.0
        %1398 = vmatprep.subr.mxu0 0.0
        %1399 = vmatpush1.xpose.msra.mxu0 0.0
        %1400 = vmatprep.subr.mxu0 0.0
        %1401 = vmatpush1.xpose.msra.mxu0 0.0
        %1402 = vmatprep.subr.mxu0 0.0
        %1403 = vmatpush1.xpose.msra.mxu0 0.0
        %1404 = vmatprep.subr.mxu0 0.0
        %1405 = vmatpush1.xpose.msra.mxu0 0.0
        %1406 = vmatprep.subr.mxu0 0.0
        %1407 = vmatpush1.xpose.msra.mxu0 0.0
        %1408 = vmatprep.subr.mxu0 0.0
        %1409 = vmatpush1.xpose.msra.mxu0 0.0
        %1410 = vmatprep.subr.mxu0 0.0
        %1411 = vmatpush1.xpose.msra.mxu0 0.0
        %1412 = vmatprep.subr.mxu0 0.0
        %1413 = vmatpush1.xpose.msra.mxu0 0.0
        %1414 = vmatprep.subr.mxu0 0.0
        %1415 = vmatpush1.xpose.msra.mxu0 0.0
        %1416 = vmatprep.subr.mxu0 0.0
        %1417 = vmatpush1.xpose.msra.mxu0 0.0
        %1418 = vmatprep.subr.mxu0 0.0
        %1419 = vmatpush1.xpose.msra.mxu0 0.0
        %1420 = vmatprep.subr.mxu0 0.0
        %1421 = vmatpush1.xpose.msra.mxu0 0.0
        %1422 = vmatprep.subr.mxu0 0.0
        %1423 = vmatpush1.xpose.msra.mxu0 0.0
        %1424 = vmatprep.subr.mxu0 0.0
        %1425 = vmatpush1.xpose.msra.mxu0 0.0
        %1426 = vmatprep.mubr.f32.mxu0 0.0
        %1427 = vmatmul.mubr.f32.gmra.mrb[0].mxu0 %v1358
        %v1428 = vpop.f32.mrb[0].mxu0
        %v1429 = vadd.f32 0.0, %v1428
        %v1430 = vpop.f32.mrb[0].mxu0
        %1431 = vdwg.mxu0
        %v1432 = vmul.f32 %v1429, 0.35355338
        %v1433 = vadd.f32 %v1432, %v456
        %v1434 = vsel %vm626, %v1433, -inf
        %1435 = vmax.xlane.f32.xlu0 %v1434
        %v1436 = vpop.xlane.xlu0 %1435
        %v1437 = vsub.f32 %v1433, %v1436
        %v1438 = vmul.f32 %v1437, 1.442695
        %v1439 = vpow.pop %v1438
        %v1440 = vsel %vm626, %v1439, 0.0
        %1441 = vadd.xlane.f32.xlu0 %v1440
        %v1442 = vpop.xlane.xlu0 %1441
        %v1443 = vrcp.pop %v1442
        %v1444 = vmul.f32 %v1439, %v1443
        %1445 = vrot.lane.b32.xlu0 %v623, 72
        %v1446 = vpop.permute.xlu0 %1445
        %v1449 = vsel %vm626, %v1444, 0
        %1451 = vmatprep.subr.mxu0 0.0
        %1452 = vmatpush1.msra.mxu0 %v1446
        %1453 = vmatprep.subr.mxu0 0.0
        %1454 = vmatpush1.msra.mxu0 0.0
        %1455 = vmatprep.subr.mxu0 0.0
        %1456 = vmatpush1.msra.mxu0 0.0
        %1457 = vmatprep.subr.mxu0 0.0
        %1458 = vmatpush1.msra.mxu0 0.0
        %1459 = vmatprep.subr.mxu0 0.0
        %1460 = vmatpush1.msra.mxu0 0.0
        %1461 = vmatprep.subr.mxu0 0.0
        %1462 = vmatpush1.msra.mxu0 0.0
        %1463 = vmatprep.subr.mxu0 0.0
        %1464 = vmatpush1.msra.mxu0 0.0
        %1465 = vmatprep.subr.mxu0 0.0
        %1466 = vmatpush1.msra.mxu0 0.0
        %1467 = vmatprep.subr.mxu0 0.0
        %1468 = vmatpush1.msra.mxu0 0.0
        %1469 = vmatprep.subr.mxu0 0.0
        %1470 = vmatpush1.msra.mxu0 0.0
        %1471 = vmatprep.subr.mxu0 0.0
        %1472 = vmatpush1.msra.mxu0 0.0
        %1473 = vmatprep.subr.mxu0 0.0
        %1474 = vmatpush1.msra.mxu0 0.0
        %1475 = vmatprep.subr.mxu0 0.0
        %1476 = vmatpush1.msra.mxu0 0.0
        %1477 = vmatprep.subr.mxu0 0.0
        %1478 = vmatpush1.msra.mxu0 0.0
        %1479 = vmatprep.subr.mxu0 0.0
        %1480 = vmatpush1.msra.mxu0 0.0
        %1481 = vmatprep.subr.mxu0 0.0
        %1482 = vmatpush1.msra.mxu0 0.0
        %1483 = vmatprep.subr.mxu0 0.0
        %1484 = vmatpush1.msra.mxu0 0.0
        %1485 = vmatprep.subr.mxu0 0.0
        %1486 = vmatpush1.msra.mxu0 0.0
        %1487 = vmatprep.subr.mxu0 0.0
        %1488 = vmatpush1.msra.mxu0 0.0
        %1489 = vmatprep.subr.mxu0 0.0
        %1490 = vmatpush1.msra.mxu0 0.0
        %1491 = vmatprep.subr.mxu0 0.0
        %1492 = vmatpush1.msra.mxu0 0.0
        %1493 = vmatprep.subr.mxu0 0.0
        %1494 = vmatpush1.msra.mxu0 0.0
        %1495 = vmatprep.subr.mxu0 0.0
        %1496 = vmatpush1.msra.mxu0 0.0
        %1497 = vmatprep.subr.mxu0 0.0
        %1498 = vmatpush1.msra.mxu0 0.0
        %1499 = vmatprep.subr.mxu0 0.0
        %1500 = vmatpush1.msra.mxu0 0.0
        %1501 = vmatprep.subr.mxu0 0.0
        %1502 = vmatpush1.msra.mxu0 0.0
        %1503 = vmatprep.subr.mxu0 0.0
        %1504 = vmatpush1.msra.mxu0 0.0
        %1505 = vmatprep.subr.mxu0 0.0
        %1506 = vmatpush1.msra.mxu0 0.0
        %1507 = vmatprep.subr.mxu0 0.0
        %1508 = vmatpush1.msra.mxu0 0.0
        %1509 = vmatprep.subr.mxu0 0.0
        %1510 = vmatpush1.msra.mxu0 0.0
        %1511 = vmatprep.subr.mxu0 0.0
        %1512 = vmatpush1.msra.mxu0 0.0
        %1513 = vmatprep.subr.mxu0 0.0
        %1514 = vmatpush1.msra.mxu0 0.0
        %1515 = vmatprep.mubr.f32.mxu0 0.0
        %1516 = vmatmul.mubr.f32.gmra.mrb[0].mxu0 %v1449
        %v1517 = vpop.f32.mrb[0].mxu0
        %v1518 = vadd.f32 0.0, %v1517
        %v1519 = vpop.f32.mrb[0].mxu0
        %1520 = vdwg.mxu0
        %v1521 = vld [vmem:[%s7 + $0x18] sm:$0xff]
        %v1523 = vsel %vm626, %v1518, 0
        %1525 = vmatprep.subr.mxu0 0.0
        %1526 = vmatpush1.msra.mxu0 %v1521
        %1527 = vmatprep.subr.mxu0 0.0
        %1528 = vmatpush1.msra.mxu0 0.0
        %1529 = vmatprep.subr.mxu0 0.0
        %1530 = vmatpush1.msra.mxu0 0.0
        %1531 = vmatprep.subr.mxu0 0.0
        %1532 = vmatpush1.msra.mxu0 0.0
        %1533 = vmatprep.subr.mxu0 0.0
        %1534 = vmatpush1.msra.mxu0 0.0
        %1535 = vmatprep.subr.mxu0 0.0
        %1536 = vmatpush1.msra.mxu0 0.0
        %1537 = vmatprep.subr.mxu0 0.0
        %1538 = vmatpush1.msra.mxu0 0.0
        %1539 = vmatprep.subr.mxu0 0.0
        %1540 = vmatpush1.msra.mxu0 0.0
        %1541 = vmatprep.subr.mxu0 0.0
        %1542 = vmatpush1.msra.mxu0 0.0
        %1543 = vmatprep.subr.mxu0 0.0
        %1544 = vmatpush1.msra.mxu0 0.0
        %1545 = vmatprep.subr.mxu0 0.0
        %1546 = vmatpush1.msra.mxu0 0.0
        %1547 = vmatprep.subr.mxu0 0.0
        %1548 = vmatpush1.msra.mxu0 0.0
        %1549 = vmatprep.subr.mxu0 0.0
        %1550 = vmatpush1.msra.mxu0 0.0
        %1551 = vmatprep.subr.mxu0 0.0
        %1552 = vmatpush1.msra.mxu0 0.0
        %1553 = vmatprep.subr.mxu0 0.0
        %1554 = vmatpush1.msra.mxu0 0.0
        %1555 = vmatprep.subr.mxu0 0.0
        %1556 = vmatpush1.msra.mxu0 0.0
        %1557 = vmatprep.subr.mxu0 0.0
        %1558 = vmatpush1.msra.mxu0 0.0
        %1559 = vmatprep.subr.mxu0 0.0
        %1560 = vmatpush1.msra.mxu0 0.0
        %1561 = vmatprep.subr.mxu0 0.0
        %1562 = vmatpush1.msra.mxu0 0.0
        %1563 = vmatprep.subr.mxu0 0.0
        %1564 = vmatpush1.msra.mxu0 0.0
        %1565 = vmatprep.subr.mxu0 0.0
        %1566 = vmatpush1.msra.mxu0 0.0
        %1567 = vmatprep.subr.mxu0 0.0
        %1568 = vmatpush1.msra.mxu0 0.0
        %1569 = vmatprep.subr.mxu0 0.0
        %1570 = vmatpush1.msra.mxu0 0.0
        %1571 = vmatprep.subr.mxu0 0.0
        %1572 = vmatpush1.msra.mxu0 0.0
        %1573 = vmatprep.subr.mxu0 0.0
        %1574 = vmatpush1.msra.mxu0 0.0
        %1575 = vmatprep.subr.mxu0 0.0
        %1576 = vmatpush1.msra.mxu0 0.0
        %1577 = vmatprep.subr.mxu0 0.0
        %1578 = vmatpush1.msra.mxu0 0.0
        %1579 = vmatprep.subr.mxu0 0.0
        %1580 = vmatpush1.msra.mxu0 0.0
        %1581 = vmatprep.subr.mxu0 0.0
        %1582 = vmatpush1.msra.mxu0 0.0
        %1583 = vmatprep.subr.mxu0 0.0
        %1584 = vmatpush1.msra.mxu0 0.0
        %1585 = vmatprep.subr.mxu0 0.0
        %1586 = vmatpush1.msra.mxu0 0.0
        %1587 = vmatprep.subr.mxu0 0.0
        %1588 = vmatpush1.msra.mxu0 0.0
        %1589 = vmatprep.mubr.f32.mxu0 0.0
        %1590 = vmatmul.mubr.f32.gmra.mrb[0].mxu0 %v1523
        %v1591 = vpop.f32.mrb[0].mxu0
        %v1592 = vadd.f32 0.0, %v1591
        %v1593 = vpop.f32.mrb[0].mxu0
        %1594 = vdwg.mxu0
        %v1595 = vadd.f32 %v1351, %v1592
        %s1596 = scalar_lea.vmem %s437, 24 [#allocation2]
        %1597 = vst.msk [vmem:[%s1596] sm:$0xff] %vm626, %v1444
        %v1598 = vld [vmem:[%s8] sm:$0x1]
        %v1600 = vlaneseq
        %v1601 = vshrl.u32 %v1600, 7
        %v1602 = vsub.s32 0, %v1601
        %v1603 = vrot.slane %v1598, %v1602
        %v1605 = vadd.f32 %v1595, %v1603
        %v1606 = vadd.f32 %v454, %v1605
        %v1607 = vsel %vm468, %v1606, 0.0
        %1608 = vadd.xlane.f32.xlu0 %v1607
        %v1609 = vpop.xlane.xlu0 %1608
        %v1610 = vrcp.pop 32.0
        %v1611 = vmul.f32 %v1609, %v1610
        %v1612 = vsub.f32 %v1606, %v1611
        %v1613 = vmul.f32 %v1612, %v1612
        %v1614 = vsel %vm468, %v1613, 0.0
        %1615 = vadd.xlane.f32.xlu0 %v1614
        %v1616 = vpop.xlane.xlu0 %1615
        %v1617 = vmul.f32 %v1616, %v1610
        %v1618 = vadd.f32 %v1617, 1e-05
        %v1619 = vrsqrt.pop %v1618
        %v1620 = vmul.f32 %v1612, %v1619
        %v1621 = vld [vmem:[%s9] sm:$0x1]
        %v1623 = vlaneseq
        %v1624 = vshrl.u32 %v1623, 7
        %v1625 = vsub.s32 0, %v1624
        %v1626 = vrot.slane %v1621, %v1625
        %v1628 = vmul.f32 %v1620, %v1626
        %v1629 = vld [vmem:[%s10] sm:$0x1]
        %v1631 = vlaneseq
        %v1632 = vshrl.u32 %v1631, 7
        %v1633 = vsub.s32 0, %v1632
        %v1634 = vrot.slane %v1629, %v1633
        %v1636 = vadd.f32 %v1628, %v1634
        %1637 = vst.msk [vmem:[%s453] sm:$0xff] %vm468, %v1636
        %p1638 = scmp.lt.s32.totalorder %s27, 1
        %s1639 = scalar_select %p1638, %s27, 1
        %s1640 = smul.addr %s1639, 8
        %s1641 = scalar_lea.vmem %s11, %s1640
        %s1642 = sand.u32 %s307, 1
        %s1643 = scalar_lea.sflag [#allocation3], %s1642
        %s1644 = sand.u32 %s307, 1
        %s1645 = smul.addr %s1644, 32
        %s1646 = scalar_lea.vmem [#allocation2], %s1645
        // Predicated region
        $region65: #{decoder_forward.11} parent=63 // pred_check
          %p1647 = pneg %p291
        $region66: #{decoder_forward.11} parent=63 // pred_check_branch
          %1649 = sbr.rel (%p1647) target = $region68
        $region67: #{decoder_forward.11} parent=63 // pred_region
          _
        $region68: #{decoder_forward.11} parent=63 // pred_fallthru
          _
        // Predicated region
        $region69: #{decoder_forward.11} parent=63 // pred_check
          %p1650 = pneg %p317
        $region70: #{decoder_forward.11} parent=63 // pred_check_branch
          %1652 = sbr.rel (%p1650) target = $region72
        $region71: #{decoder_forward.11} parent=63 // pred_region
          %s1654 = ssub.s32 512, 512
          %1655 = vsyncadd %s1643, %s1654
          %s1656 = smul.addr %s27, 4
          %s1657 = smul.addr %s1656, 128
          %s1658 = scalar_lea.hbm %s12, %s1657
          %s1659 = sshll.u32 %s1646, 4
          %s1660 = int_to_ptr.vmem [resolvable:$true] %s1659
          %1665 = dma.vmem_to_hbm [thread:$0]  %s1660, 512, %s1658, %s1643, 128, 128, 8
        $region72: #{decoder_forward.11} parent=63 // pred_fallthru
          _
      $region64: #{decoder_forward.11} parent=5 // pred_fallthru
        _
      %p1666 = scmp.le.s32.totalorder 2, %s22
      // Predicated region
      $region73: #{decoder_forward.11} parent=5 // pred_check
        %p1667 = pneg %p1666
      $region74: #{decoder_forward.11} parent=5 // pred_check_branch
        %1669 = sbr.rel (%p1667) target = $region76
      $region75: #{decoder_forward.11} parent=5 // pred_region
        %s1670 = ssub.s32 %s22, 2
        // Predicated region
        $region77: #{decoder_forward.11} parent=75 // pred_check
          %p1671 = pneg %p297
        $region78: #{decoder_forward.11} parent=75 // pred_check_branch
          %1673 = sbr.rel (%p1671) target = $region80
        $region79: #{decoder_forward.11} parent=75 // pred_region
          %p1674 = scmp.lt.s32.totalorder %s28, 1
          %s1675 = scalar_select %p1674, %s28, 1
          %s1676 = smul.addr %s1675, 8
          %s1677 = scalar_lea.vmem %s11, %s1676
        $region80: #{decoder_forward.11} parent=75 // pred_fallthru
          _
        // Predicated region
        $region81: #{decoder_forward.11} parent=75 // pred_check
          %p1678 = pneg %p323
        $region82: #{decoder_forward.11} parent=75 // pred_check_branch
          %1680 = sbr.rel (%p1678) target = $region84
        $region83: #{decoder_forward.11} parent=75 // pred_region
          %s1681 = sand.u32 %s308, 1
          %s1682 = scalar_lea.sflag [#allocation3], %s1681
          %s1683 = sand.u32 %s308, 1
          %s1684 = smul.addr %s1683, 32
          %s1685 = scalar_lea.vmem [#allocation2], %s1684
          %1686 = dma.done %s1682, 512
        $region84: #{decoder_forward.11} parent=75 // pred_fallthru
          _
      $region76: #{decoder_forward.11} parent=5 // pred_fallthru
        _
    $region6: #{decoder_forward.11} parent=1 // loop_footer
      %s26 = sadd.s32 1, %s22
    $region7: #{decoder_forward.11} parent=1 // loop_footer_branch
      %21 = sbr.rel target = $region3
    $region8: #{decoder_forward.11} parent=1 // loop_exit
      _
    %1687 = vsyncpa [#allocation3], 1
    %s1688 = scalar_lea.sflag [#allocation3], 1
    %1689 = vsyncpa %s1688, 1

</llo_original>
